<compile_context>
chip_gen: v5e
topology: v5e:2x2
jax: 0.10.0
libtpu: 0.0.40
codegen_flags: <defaults>
</compile_context>

<pallas_src>
import functools
import math

import jax
import jax.numpy as jnp
from jax.experimental import pallas as pl
from jax.experimental.pallas import tpu as pltpu


_BN_EPS = 1e-3  # BaseConv uses BatchNorm2d with a small eps; folded at build time.


# ---------------------------------------------------------------------------
# Runtime feature probes (tiny pallas_calls, run once).  Each risky Mosaic
# feature has a known-good fallback, so a probe failure never breaks the run.
# ---------------------------------------------------------------------------
_FEATURE_CACHE = {}


def _probe(fn):
    try:
        return bool(fn())
    except Exception:
        return False


def _resident_weights_ok():
    """Whole-array VMEM-resident input refs (single copy, not pipelined)."""
    if "wres" not in _FEATURE_CACHE:
        def run():
            def k(w_ref, x_ref, o_ref):
                o_ref[...] = x_ref[...] + w_ref[...]

            out = pl.pallas_call(
                k,
                out_shape=jax.ShapeDtypeStruct((8, 128), jnp.float32),
                grid=(2,),
                in_specs=[pl.BlockSpec(memory_space=pltpu.MemorySpace.VMEM),
                          pl.BlockSpec((8, 128), lambda n: (0, 0))],
                out_specs=pl.BlockSpec((8, 128), lambda n: (0, 0)),
                compiler_params=pltpu.CompilerParams(
                    dimension_semantics=("parallel",)),
            )(jnp.full((8, 128), 2.0, jnp.float32),
              jnp.full((8, 128), 3.0, jnp.float32))
            jax.block_until_ready(out)
            return bool(jnp.allclose(out, 5.0))

        _FEATURE_CACHE["wres"] = _probe(run)
    return _FEATURE_CACHE["wres"]


def _halo_feature_ok():
    """Optimized 3x3 path: bf16 halo scratch with sub-tile sublane offsets and
    a lane-axis concat (per-dy K=3*Cin im2col)."""
    if "halo" not in _FEATURE_CACHE:
        H, W, C = 4, 4, 2

        def run():
            def k(x_ref, o_ref, pad_ref):
                zr = jnp.zeros((1, W + 2, C), jnp.bfloat16)
                zc = jnp.zeros((H + 2, 1, C), jnp.bfloat16)
                pad_ref[0:1] = zr
                pad_ref[H + 1:H + 2] = zr
                pad_ref[:, 0:1, :] = zc
                pad_ref[:, W + 1:W + 2, :] = zc
                pad_ref[1:H + 1, 1:W + 1, :] = x_ref[...]
                o_ref[...] = jnp.concatenate(
                    [pad_ref[1:H + 1, 0:W, :],
                     pad_ref[1:H + 1, 1:W + 1, :],
                     pad_ref[1:H + 1, 2:W + 2, :]], axis=-1)

            x = (jnp.arange(H * W * C, dtype=jnp.float32)
                 .reshape(H, W, C).astype(jnp.bfloat16))
            out = pl.pallas_call(
                k,
                out_shape=jax.ShapeDtypeStruct((H, W, 3 * C), jnp.bfloat16),
                scratch_shapes=[pltpu.VMEM((H + 2, W + 2, C), jnp.bfloat16)],
            )(x)
            jax.block_until_ready(out)
            xp = jnp.pad(x.astype(jnp.float32), ((0, 0), (1, 1), (0, 0)))
            exp = jnp.concatenate(
                [xp[:, 0:W], xp[:, 1:W + 1], xp[:, 2:W + 2]], axis=-1)
            return bool(jnp.allclose(out.astype(jnp.float32), exp))

        _FEATURE_CACHE["halo"] = _probe(run)
    return _FEATURE_CACHE["halo"]


# ---------------------------------------------------------------------------
# Fused conv-chain kernel.
#
# kinds per layer:
#   "c1"    : 1x1 conv + bias + LeakyReLU
#   "c3"    : 3x3 conv (same padding via VMEM halo) + bias + LeakyReLU
#   "cskip" : 1x1 conv applied to the backbone skip input, plus the
#             pre-computed (already upsampled) f32 lateral partial product
#   "plat"  : trailing lateral partial product for the NEXT chain's first
#             1x1 conv, computed at this chain's (low) resolution; no bias/act
# ---------------------------------------------------------------------------
def _fused_chain_kernel(*refs, kinds, has_p, out_layer, H, W, opt3):
    idx = 0
    x_ref = refs[idx]
    idx += 1
    p_ref = None
    if has_p:
        p_ref = refs[idx]
        idx += 1
    lparams = []
    for k in kinds:
        if k == "plat":
            lparams.append((refs[idx],))
            idx += 1
        else:
            lparams.append((refs[idx], refs[idx + 1]))
            idx += 2
    n_out = 1 + int(kinds[-1] == "plat")
    out_refs = list(refs[idx: idx + n_out])
    idx += n_out
    pad_ref = refs[idx]

    # Zero only the 1-pixel halo border; the interior is fully overwritten
    # (over exactly the :cin channels that are then read) before every 3x3
    # layer.  Unconditional per grid step so it stays correct when the batch
    # axis is sharded across TensorCores.
    if any(k == "c3" for k in kinds):
        cpad = pad_ref.shape[-1]
        zr = jnp.zeros((1, W + 2, cpad), pad_ref.dtype)
        zc = jnp.zeros((H + 2, 1, cpad), pad_ref.dtype)
        pad_ref[0:1] = zr
        pad_ref[H + 1:H + 2] = zr
        pad_ref[:, 0:1, :] = zc
        pad_ref[:, W + 1:W + 2, :] = zc

    cur = x_ref[0]                       # (H, W, Cin), bf16
    out_pos = 0
    for li, kind in enumerate(kinds):
        if kind == "plat":
            (w_ref,) = lparams[li]
            cin = cur.shape[-1]
            pprod = jnp.dot(cur.reshape(H * W, cin), w_ref[...],
                            preferred_element_type=jnp.float32)
            out_refs[out_pos][0] = pprod.reshape(H, W, -1).astype(
                out_refs[out_pos].dtype)
            out_pos += 1
            continue

        w_ref, b_ref = lparams[li]
        cin = cur.shape[-1]
        if kind in ("c1", "cskip"):
            acc = jnp.dot(cur.reshape(H * W, cin), w_ref[...],
                          preferred_element_type=jnp.float32)
            if kind == "cskip":
                # f32 lateral partial product (already at this resolution).
                acc = acc + p_ref[0].reshape(H * W, acc.shape[-1])
        else:  # "c3": same-padded 3x3 via the VMEM halo scratch
            acc = None
            if opt3:
                # bf16 halo; 3 deep contractions (K = 3*cin) per layer.
                pad_ref[1:H + 1, 1:W + 1, :cin] = cur
                for dy in range(3):
                    xs = jnp.concatenate(
                        [pad_ref[dy:dy + H, 0:W, :cin],
                         pad_ref[dy:dy + H, 1:W + 1, :cin],
                         pad_ref[dy:dy + H, 2:W + 2, :cin]],
                        axis=-1).reshape(H * W, 3 * cin)
                    d = jnp.dot(xs, w_ref[dy],
                                preferred_element_type=jnp.float32)
                    acc = d if acc is None else acc + d
            else:
                # Fallback (proven path): f32 halo, 9 shallow taps.
                pad_ref[1:H + 1, 1:W + 1, :cin] = cur.astype(pad_ref.dtype)
                for dy in range(3):
                    for dx in range(3):
                        xs = pad_ref[dy:dy + H, dx:dx + W, :cin]
                        xs = xs.astype(jnp.bfloat16).reshape(H * W, cin)
                        d = jnp.dot(xs, w_ref[dy * 3 + dx],
                                    preferred_element_type=jnp.float32)
                        acc = d if acc is None else acc + d

        y = acc + b_ref[...]                     # folded-BN bias (f32)
        y = jnp.maximum(y, 0.1 * y)              # LeakyReLU(0.1)
        cur = y.reshape(H, W, -1).astype(jnp.bfloat16)

        if li == out_layer:
            out_refs[out_pos][0] = cur.astype(out_refs[out_pos].dtype)
            out_pos += 1


def _const_index_map(ndim):
    def imap(n):
        return (0,) * ndim
    return imap


def _fused_chain(x, layers, plat_w=None, p=None, out_layer=4):
    """x: (N,H,W,Cin) bf16; layers: list of layer param dicts.

    Returns (main_bf16_output, [f32 lateral partial product if plat_w])."""
    N, H, W, Cin = x.shape
    opt3 = _halo_feature_ok()
    wres = _resident_weights_ok()

    kinds = []
    args = [x]
    in_specs = [pl.BlockSpec((1, H, W, Cin), lambda n: (n, 0, 0, 0))]
    has_p = p is not None
    if has_p:
        Cp = p.shape[-1]
        args.append(p)
        in_specs.append(pl.BlockSpec((1, H, W, Cp), lambda n: (n, 0, 0, 0)))

    def wspec(a):
        if wres:
            # Grid-invariant operand: single VMEM-resident copy, not pipelined.
            return pl.BlockSpec(memory_space=pltpu.MemorySpace.VMEM)
        return pl.BlockSpec(a.shape, _const_index_map(a.ndim))

    c3_cins = []
    for lp in layers:
        if "w_skip" in lp:
            kinds.append("cskip")
            args += [lp["w_skip"], lp["b"]]
            in_specs += [wspec(lp["w_skip"]), wspec(lp["b"])]
        elif lp["ks"] == 1:
            kinds.append("c1")
            args += [lp["w"], lp["b"]]
            in_specs += [wspec(lp["w"]), wspec(lp["b"])]
        else:
            kinds.append("c3")
            w9 = lp["w"]                                  # (9, cin, cout)
            cin, cout = w9.shape[1], w9.shape[2]
            c3_cins.append(cin)
            w_pass = w9.reshape(3, 3 * cin, cout) if opt3 else w9
            args += [w_pass, lp["b"]]
            in_specs += [wspec(w_pass), wspec(lp["b"])]
    if plat_w is not None:
        kinds.append("plat")
        args.append(plat_w)
        in_specs.append(wspec(plat_w))
    assert ("cskip" in kinds) == has_p

    pad_cin = max(c3_cins) if c3_cins else 8
    pad_dtype = jnp.bfloat16 if opt3 else jnp.float32

    out_shapes = []
    out_specs = []
    cout_main = layers[out_layer]["w"].shape[-1]
    out_shapes.append(jax.ShapeDtypeStruct((N, H, W, cout_main), jnp.bfloat16))
    out_specs.append(pl.BlockSpec((1, H, W, cout_main),
                                  lambda n: (n, 0, 0, 0)))
    if plat_w is not None:
        cplat = plat_w.shape[-1]
        out_shapes.append(jax.ShapeDtypeStruct((N, H, W, cplat), jnp.float32))
        out_specs.append(pl.BlockSpec((1, H, W, cplat),
                                      lambda n: (n, 0, 0, 0)))

    # Explicit scoped-VMEM budget: resident params + pipelined streams +
    # halo scratch + an estimate of the widest layer's live working set.
    def nb(a):
        return int(a.size) * jnp.dtype(a.dtype).itemsize

    param_bytes = sum(nb(a) for a in args[1 + int(has_p):])
    if not wres:
        param_bytes *= 2                           # double-buffered fallback
    stream_bytes = 2 * (H * W * Cin * 2)
    if has_p:
        stream_bytes += 2 * (H * W * p.shape[-1] * 4)
    out_bytes = sum(2 * math.prod(s.shape[1:]) * jnp.dtype(s.dtype).itemsize
                    for s in out_shapes)
    pad_bytes = (H + 2) * (W + 2) * pad_cin * jnp.dtype(pad_dtype).itemsize
    work_bytes = 0
    for lp in layers:
        w = lp["w_skip"] if "w_skip" in lp else lp["w"]
        lcin = w.shape[-2] if w.ndim == 2 else w.shape[1]
        lcout = w.shape[-1]
        work_bytes = max(work_bytes, H * W * (8 * lcin + 10 * lcout))
    need = param_bytes + stream_bytes + out_bytes + pad_bytes + work_bytes
    # NOTE: at real widths on v7x (64 MiB physical) this must be paired with
    # the spatial-tiling TODO above.
    vmem_limit = int(min(max(1.5 * need + (8 << 20), 32 << 20), 100 << 20))

    kernel = functools.partial(
        _fused_chain_kernel, kinds=tuple(kinds), has_p=has_p,
        out_layer=out_layer, H=H, W=W, opt3=opt3)

    outs = pl.pallas_call(
        kernel,
        out_shape=tuple(out_shapes),
        grid=(N,),
        in_specs=in_specs,
        out_specs=tuple(out_specs),
        scratch_shapes=[pltpu.VMEM((H + 2, W + 2, pad_cin), pad_dtype)],
        compiler_params=pltpu.CompilerParams(
            dimension_semantics=("parallel",),
            vmem_limit_bytes=vmem_limit),
    )(*args)
    return outs if isinstance(outs, (tuple, list)) else (outs,)


# ---------------------------------------------------------------------------
# Parameter construction (deterministic, synthetic; BN folded into weights).
# ---------------------------------------------------------------------------
def _make_cbl_params(key, cin, cout, ks):
    k1, k2, k3, k4, k5 = jax.random.split(key, 5)
    w = 0.1 * jax.random.normal(k1, (ks, ks, cin, cout), jnp.float32)
    gamma = 1.0 + 0.1 * jax.random.normal(k2, (cout,), jnp.float32)
    beta = 0.1 * jax.random.normal(k3, (cout,), jnp.float32)
    mean = 0.1 * jax.random.normal(k4, (cout,), jnp.float32)
    var = jnp.abs(1.0 + 0.1 * jax.random.normal(k5, (cout,), jnp.float32))
    scale = gamma / jnp.sqrt(var + _BN_EPS)
    bias = beta - mean * scale
    w_folded = (w * scale).astype(jnp.bfloat16)     # BN scale folded into conv
    if ks == 1:
        w_folded = w_folded.reshape(cin, cout)
    else:
        w_folded = w_folded.reshape(ks * ks, cin, cout)   # (dy*3+dx, cin, cout)
    return {"w": w_folded, "b": bias.reshape(1, cout).astype(jnp.float32),
            "ks": ks}


def _make_embedding_params(key, filters_list, in_filters, split_lateral=None):
    f0, f1 = filters_list
    chain = [(in_filters, f0, 1), (f0, f1, 3), (f1, f0, 1), (f0, f1, 3),
             (f1, f0, 1)]
    keys = jax.random.split(key, len(chain))
    layers = [_make_cbl_params(k, ci, co, ks)
              for k, (ci, co, ks) in zip(keys, chain)]
    if split_lateral is not None:
        # torch.cat([upsampled_lateral, skip], dim=channels): rows [0:c_lat]
        # of the first 1x1 weight multiply the (upsampled) lateral.
        l0 = layers[0]
        layers[0] = {"kind": "cskip", "ks": 1,
                     "w_lat": l0["w"][:split_lateral],
                     "w_skip": l0["w"][split_lateral:],
                     "b": l0["b"]}
    return layers


def make_yolofpn_params(key, width, in_channels):
    base_ch = int(512 * width)
    k0, k1, k2, k3, k4 = jax.random.split(key, 5)
    return {
        "out0": _make_embedding_params(k0, [base_ch, base_ch * 2],
                                       in_channels[2]),
        "out1_cbl": _make_cbl_params(k1, base_ch, base_ch // 2, 1),
        "out1": _make_embedding_params(
            k2, [base_ch // 2, base_ch], in_channels[1] + base_ch // 2,
            split_lateral=base_ch // 2),
        "out2_cbl": _make_cbl_params(k3, base_ch // 2, base_ch // 4, 1),
        "out2": _make_embedding_params(
            k4, [base_ch // 4, base_ch // 2], in_channels[0] + base_ch // 4,
            split_lateral=base_ch // 4),
        "out_channels": [base_ch, base_ch // 2, base_ch // 4],
    }


# ---------------------------------------------------------------------------
# Forward pass (mirrors YOLOFPN.forward, spp off).
# ---------------------------------------------------------------------------
def _upsample2x(x):
    # nn.Upsample(scale_factor=2, mode='nearest') in NHWC.
    return jnp.repeat(jnp.repeat(x, 2, axis=1), 2, axis=2)


def yolofpn_forward(params, out_features,
                    in_features=("dark3", "dark4", "dark5")):
    x2, x1, x0 = [out_features[f].astype(jnp.bfloat16) for f in in_features]

    # Chain A: out0 embedding + out1_cbl + lateral half of out1's first conv.
    out0, p1 = _fused_chain(x0, params["out0"] + [params["out1_cbl"]],
                            plat_w=params["out1"][0]["w_lat"])
    p1_up = _upsample2x(p1)          # small f32 partial product, never a concat

    # Chain B: out1 embedding (+ skip/partial fused first conv) + out2_cbl
    # + lateral half of out2's first conv.
    out1, p2 = _fused_chain(x1, params["out1"] + [params["out2_cbl"]],
                            p=p1_up, plat_w=params["out2"][0]["w_lat"])
    p2_up = _upsample2x(p2)

    # Chain C: out2 embedding.
    (out2,) = _fused_chain(x2, params["out2"], p=p2_up)
    return out0, out1, out2


# ---------------------------------------------------------------------------
# Plain-JAX (XLA) reference following the original upsample+concat dataflow,
# with the same folded bf16 parameters and the same bf16 rounding points.
# ---------------------------------------------------------------------------
def _ref_conv_lrelu(x, w, b, ks):
    wf = w.astype(jnp.float32)
    if ks == 1:
        y = jnp.einsum("nhwc,co->nhwo", x, wf)
    else:
        cin = x.shape[-1]
        cout = wf.shape[-1]
        w4 = wf.reshape(3, 3, cin, cout)
        H, W = x.shape[1], x.shape[2]
        xp = jnp.pad(x, ((0, 0), (1, 1), (1, 1), (0, 0)))
        y = sum(jnp.einsum("nhwc,co->nhwo", xp[:, dy:dy + H, dx:dx + W, :],
                           w4[dy, dx])
                for dy in range(3) for dx in range(3))
    y = y + b.reshape(1, 1, 1, -1)
    y = jnp.maximum(y, 0.1 * y)
    return y.astype(jnp.bfloat16).astype(jnp.float32)


def yolofpn_reference(params, feats, in_features=("dark3", "dark4", "dark5")):
    x2, x1, x0 = [feats[f].astype(jnp.bfloat16).astype(jnp.float32)
                  for f in in_features]

    def run_embed(x, layers):
        for lp in layers:
            if "w_skip" in lp:
                w = jnp.concatenate([lp["w_lat"], lp["w_skip"]], axis=0)
                x = _ref_conv_lrelu(x, w, lp["b"], 1)
            else:
                x = _ref_conv_lrelu(x, lp["w"], lp["b"], lp["ks"])
        return x

    out0 = run_embed(x0, params["out0"])
    x1_lat = _ref_conv_lrelu(out0, params["out1_cbl"]["w"],
                             params["out1_cbl"]["b"], 1)
    x1_in = jnp.concatenate([_upsample2x(x1_lat), x1], axis=-1)
    out1 = run_embed(x1_in, params["out1"])
    x2_lat = _ref_conv_lrelu(out1, params["out2_cbl"]["w"],
                             params["out2_cbl"]["b"], 1)
    x2_in = jnp.concatenate([_upsample2x(x2_lat), x2], axis=-1)
    out2 = run_embed(x2_in, params["out2"])
    return out0, out1, out2


# ---------------------------------------------------------------------------
if __name__ == "__main__":
    root = jax.random.PRNGKey(0)
    kparams, kd3, kd4, kd5 = jax.random.split(root, 4)

    # Small, shape-consistent config: width = 1/64 -> base_ch = 8,
    # in_channels scaled the same way: [4, 8, 16].
    width = 1.0 / 64.0
    in_channels = [4, 8, 16]
    params = make_yolofpn_params(kparams, width, in_channels)

    N = 2
    feats = {
        "dark3": jax.random.normal(kd3, (N, 16, 16, in_channels[0]),
                                   jnp.float32),
        "dark4": jax.random.normal(kd4, (N, 8, 8, in_channels[1]),
                                   jnp.float32),
        "dark5": jax.random.normal(kd5, (N, 4, 4, in_channels[2]),
                                   jnp.float32),
    }

    out0, out1, out2 = yolofpn_forward(params, feats)
    jax.block_until_ready((out0, out1, out2))

    assert out0.shape == (N, 4, 4, params["out_channels"][0])
    assert out1.shape == (N, 8, 8, params["out_channels"][1])
    assert out2.shape == (N, 16, 16, params["out_channels"][2])

    # Numerical check against the plain-JAX reference.
    r0, r1, r2 = yolofpn_reference(params, feats)
    for got, want in ((out0, r0), (out1, r1), (out2, r2)):
        g = got.astype(jnp.float32)
        assert bool(jnp.allclose(g, want, rtol=2e-2, atol=2e-2)), \
            float(jnp.max(jnp.abs(g - want)))

    print("KERNEL_OK")
</pallas_src>

<mosaic_0001>
module attributes {stable_mosaic.version = 11 : i64} {
  func.func @k(%arg0: memref<4x4x2xbf16, #tpu.memory_space<vmem>>, %arg1: memref<4x4x6xbf16, #tpu.memory_space<vmem>>, %arg2: memref<6x6x2xbf16, #tpu.memory_space<vmem>>) attributes {dimension_semantics = [], scalar_prefetch = 0 : i64, scratch_operands = 1 : i64, tpu.core_type = #tpu.core_type<tc>} {
    %cst = arith.constant 0.000000e+00 : bf16
    %0 = vector.broadcast %cst : bf16 to vector<1x6x2xbf16>
    %cst_0 = arith.constant 0.000000e+00 : bf16
    %1 = vector.broadcast %cst_0 : bf16 to vector<6x1x2xbf16>
    %c0 = arith.constant 0 : index
    %c0_1 = arith.constant 0 : index
    %c0_2 = arith.constant 0 : index
    %2 = vector.load %arg2[%c0, %c0_1, %c0_2] : memref<6x6x2xbf16, #tpu.memory_space<vmem>>, vector<1x6x2xbf16>
    tpu.vector_store %arg2[%c0, %c0_1, %c0_2], %0 {strides = array<i32>} : memref<6x6x2xbf16, #tpu.memory_space<vmem>>, vector<1x6x2xbf16>,
    %c5 = arith.constant 5 : index
    %c0_3 = arith.constant 0 : index
    %c0_4 = arith.constant 0 : index
    %3 = vector.load %arg2[%c5, %c0_3, %c0_4] : memref<6x6x2xbf16, #tpu.memory_space<vmem>>, vector<1x6x2xbf16>
    tpu.vector_store %arg2[%c5, %c0_3, %c0_4], %0 {strides = array<i32>} : memref<6x6x2xbf16, #tpu.memory_space<vmem>>, vector<1x6x2xbf16>,
    %c0_5 = arith.constant 0 : index
    %c0_6 = arith.constant 0 : index
    %c0_7 = arith.constant 0 : index
    %4 = vector.load %arg2[%c0_5, %c0_6, %c0_7] : memref<6x6x2xbf16, #tpu.memory_space<vmem>>, vector<6x1x2xbf16>
    tpu.vector_store %arg2[%c0_5, %c0_6, %c0_7], %1 {strides = array<i32>} : memref<6x6x2xbf16, #tpu.memory_space<vmem>>, vector<6x1x2xbf16>,
    %c0_8 = arith.constant 0 : index
    %c5_9 = arith.constant 5 : index
    %c0_10 = arith.constant 0 : index
    %5 = vector.load %arg2[%c0_8, %c5_9, %c0_10] : memref<6x6x2xbf16, #tpu.memory_space<vmem>>, vector<6x1x2xbf16>
    tpu.vector_store %arg2[%c0_8, %c5_9, %c0_10], %1 {strides = array<i32>} : memref<6x6x2xbf16, #tpu.memory_space<vmem>>, vector<6x1x2xbf16>,
    %c0_11 = arith.constant 0 : index
    %c0_12 = arith.constant 0 : index
    %c0_13 = arith.constant 0 : index
    %6 = vector.load %arg0[%c0_11, %c0_12, %c0_13] : memref<4x4x2xbf16, #tpu.memory_space<vmem>>, vector<4x4x2xbf16>
    %c1 = arith.constant 1 : index
    %c1_14 = arith.constant 1 : index
    %c0_15 = arith.constant 0 : index
    %7 = vector.load %arg2[%c1, %c1_14, %c0_15] : memref<6x6x2xbf16, #tpu.memory_space<vmem>>, vector<4x4x2xbf16>
    tpu.vector_store %arg2[%c1, %c1_14, %c0_15], %6 {strides = array<i32>} : memref<6x6x2xbf16, #tpu.memory_space<vmem>>, vector<4x4x2xbf16>,
    %c1_16 = arith.constant 1 : index
    %c0_17 = arith.constant 0 : index
    %c0_18 = arith.constant 0 : index
    %8 = vector.load %arg2[%c1_16, %c0_17, %c0_18] : memref<6x6x2xbf16, #tpu.memory_space<vmem>>, vector<4x4x2xbf16>
    %c1_19 = arith.constant 1 : index
    %c1_20 = arith.constant 1 : index
    %c0_21 = arith.constant 0 : index
    %9 = vector.load %arg2[%c1_19, %c1_20, %c0_21] : memref<6x6x2xbf16, #tpu.memory_space<vmem>>, vector<4x4x2xbf16>
    %c1_22 = arith.constant 1 : index
    %c2 = arith.constant 2 : index
    %c0_23 = arith.constant 0 : index
    %10 = vector.load %arg2[%c1_22, %c2, %c0_23] : memref<6x6x2xbf16, #tpu.memory_space<vmem>>, vector<4x4x2xbf16>
    %11 = tpu.concatenate %8, %9, %10 in 2 : vector<4x4x2xbf16>, vector<4x4x2xbf16>, vector<4x4x2xbf16> -> vector<4x4x6xbf16>
    %c0_24 = arith.constant 0 : index
    %c0_25 = arith.constant 0 : index
    %c0_26 = arith.constant 0 : index
    %12 = vector.load %arg1[%c0_24, %c0_25, %c0_26] : memref<4x4x6xbf16, #tpu.memory_space<vmem>>, vector<4x4x6xbf16>
    tpu.vector_store %arg1[%c0_24, %c0_25, %c0_26], %11 {strides = array<i32>} : memref<4x4x6xbf16, #tpu.memory_space<vmem>>, vector<4x4x6xbf16>,
    return
  }
}

module attributes {stable_mosaic.version = 11 : i64} {
  func.func @k(%arg0: i32, %arg1: memref<8x128xf32, #tpu.memory_space<vmem>>, %arg2: memref<8x128xf32, #tpu.memory_space<vmem>>, %arg3: memref<8x128xf32, #tpu.memory_space<vmem>>) attributes {dimension_semantics = [#tpu.dimension_semantics<parallel>], iteration_bounds = array<i64: 2>, scalar_prefetch = 0 : i64, scratch_operands = 0 : i64, tpu.core_type = #tpu.core_type<tc>, window_params = [{pipeline_mode = #tpu.pipeline_mode<synchronous>, transform_indices = @transform_0, window_bounds = array<i64: 8, 128>}, {pipeline_mode = #tpu.pipeline_mode<synchronous>, transform_indices = @transform_1, window_bounds = array<i64: 8, 128>}, {pipeline_mode = #tpu.pipeline_mode<synchronous>, transform_indices = @transform_2, window_bounds = array<i64: 8, 128>}]} {
    %c0 = arith.constant 0 : index
    %c0_0 = arith.constant 0 : index
    %0 = vector.load %arg2[%c0, %c0_0] : memref<8x128xf32, #tpu.memory_space<vmem>>, vector<8x128xf32>
    %c0_1 = arith.constant 0 : index
    %c0_2 = arith.constant 0 : index
    %1 = vector.load %arg1[%c0_1, %c0_2] : memref<8x128xf32, #tpu.memory_space<vmem>>, vector<8x128xf32>
    %2 = arith.addf %0, %1 : vector<8x128xf32>
    %c0_3 = arith.constant 0 : index
    %c0_4 = arith.constant 0 : index
    %3 = vector.load %arg3[%c0_3, %c0_4] : memref<8x128xf32, #tpu.memory_space<vmem>>, vector<8x128xf32>
    tpu.vector_store %arg3[%c0_3, %c0_4], %2 {strides = array<i32>} : memref<8x128xf32, #tpu.memory_space<vmem>>, vector<8x128xf32>,
    return
  }
  func.func @transform_0(%arg0: i32) -> (i32, i32) {
    %c0_i32 = arith.constant 0 : i32
    %c0_i32_0 = arith.constant 0 : i32
    %c0_i32_1 = arith.constant 0 : i32
    return %c0_i32, %c0_i32_0 : i32, i32
  }
  func.func @transform_1(%arg0: i32) -> (i32, i32) {
    %c0_i32 = arith.constant 0 : i32
    %c0_i32_0 = arith.constant 0 : i32
    %c0_i32_1 = arith.constant 0 : i32
    return %c0_i32, %c0_i32_0 : i32, i32
  }
  func.func @transform_2(%arg0: i32) -> (i32, i32) {
    %c0_i32 = arith.constant 0 : i32
    %c0_i32_0 = arith.constant 0 : i32
    %c0_i32_1 = arith.constant 0 : i32
    return %c0_i32, %c0_i32_0 : i32, i32
  }
}

module attributes {stable_mosaic.version = 11 : i64} {
  func.func @_fused_chain_kernel(%arg0: i32, %arg1: memref<1x4x4x16xbf16, #tpu.memory_space<vmem>>, %arg2: memref<16x8xbf16, #tpu.memory_space<vmem>>, %arg3: memref<1x8xf32, #tpu.memory_space<vmem>>, %arg4: memref<9x8x16xbf16, #tpu.memory_space<vmem>>, %arg5: memref<1x16xf32, #tpu.memory_space<vmem>>, %arg6: memref<16x8xbf16, #tpu.memory_space<vmem>>, %arg7: memref<1x8xf32, #tpu.memory_space<vmem>>, %arg8: memref<9x8x16xbf16, #tpu.memory_space<vmem>>, %arg9: memref<1x16xf32, #tpu.memory_space<vmem>>, %arg10: memref<16x8xbf16, #tpu.memory_space<vmem>>, %arg11: memref<1x8xf32, #tpu.memory_space<vmem>>, %arg12: memref<8x4xbf16, #tpu.memory_space<vmem>>, %arg13: memref<1x4xf32, #tpu.memory_space<vmem>>, %arg14: memref<4x4xbf16, #tpu.memory_space<vmem>>, %arg15: memref<1x4x4x8xbf16, #tpu.memory_space<vmem>>, %arg16: memref<1x4x4x4xf32, #tpu.memory_space<vmem>>, %arg17: memref<6x6x8xf32, #tpu.memory_space<vmem>>) attributes {dimension_semantics = [#tpu.dimension_semantics<parallel>], iteration_bounds = array<i64: 2>, scalar_prefetch = 0 : i64, scratch_operands = 1 : i64, tpu.core_type = #tpu.core_type<tc>, window_params = [{transform_indices = @transform_0, window_bounds = array<i64: 1, 4, 4, 16>}, {pipeline_mode = #tpu.pipeline_mode<synchronous>, transform_indices = @transform_1, window_bounds = array<i64: 16, 8>}, {pipeline_mode = #tpu.pipeline_mode<synchronous>, transform_indices = @transform_2, window_bounds = array<i64: 1, 8>}, {pipeline_mode = #tpu.pipeline_mode<synchronous>, transform_indices = @transform_3, window_bounds = array<i64: 9, 8, 16>}, {pipeline_mode = #tpu.pipeline_mode<synchronous>, transform_indices = @transform_4, window_bounds = array<i64: 1, 16>}, {pipeline_mode = #tpu.pipeline_mode<synchronous>, transform_indices = @transform_5, window_bounds = array<i64: 16, 8>}, {pipeline_mode = #tpu.pipeline_mode<synchronous>, transform_indices = @transform_6, window_bounds = array<i64: 1, 8>}, {pipeline_mode = #tpu.pipeline_mode<synchronous>, transform_indices = @transform_7, window_bounds = array<i64: 9, 8, 16>}, {pipeline_mode = #tpu.pipeline_mode<synchronous>, transform_indices = @transform_8, window_bounds = array<i64: 1, 16>}, {pipeline_mode = #tpu.pipeline_mode<synchronous>, transform_indices = @transform_9, window_bounds = array<i64: 16, 8>}, {pipeline_mode = #tpu.pipeline_mode<synchronous>, transform_indices = @transform_10, window_bounds = array<i64: 1, 8>}, {pipeline_mode = #tpu.pipeline_mode<synchronous>, transform_indices = @transform_11, window_bounds = array<i64: 8, 4>}, {pipeline_mode = #tpu.pipeline_mode<synchronous>, transform_indices = @transform_12, window_bounds = array<i64: 1, 4>}, {pipeline_mode = #tpu.pipeline_mode<synchronous>, transform_indices = @transform_13, window_bounds = array<i64: 4, 4>}, {transform_indices = @transform_14, window_bounds = array<i64: 1, 4, 4, 8>}, {transform_indices = @transform_15, window_bounds = array<i64: 1, 4, 4, 4>}]} {
    %cst = arith.constant 0.000000e+00 : f32
    %0 = vector.broadcast %cst : f32 to vector<1x6x8xf32>
    %cst_0 = arith.constant 0.000000e+00 : f32
    %1 = vector.broadcast %cst_0 : f32 to vector<6x1x8xf32>
    %c0 = arith.constant 0 : index
    %c0_1 = arith.constant 0 : index
    %c0_2 = arith.constant 0 : index
    %2 = vector.load %arg17[%c0, %c0_1, %c0_2] : memref<6x6x8xf32, #tpu.memory_space<vmem>>, vector<1x6x8xf32>
    tpu.vector_store %arg17[%c0, %c0_1, %c0_2], %0 {strides = array<i32>} : memref<6x6x8xf32, #tpu.memory_space<vmem>>, vector<1x6x8xf32>,
    %c5 = arith.constant 5 : index
    %c0_3 = arith.constant 0 : index
    %c0_4 = arith.constant 0 : index
    %3 = vector.load %arg17[%c5, %c0_3, %c0_4] : memref<6x6x8xf32, #tpu.memory_space<vmem>>, vector<1x6x8xf32>
    tpu.vector_store %arg17[%c5, %c0_3, %c0_4], %0 {strides = array<i32>} : memref<6x6x8xf32, #tpu.memory_space<vmem>>, vector<1x6x8xf32>,
    %c0_5 = arith.constant 0 : index
    %c0_6 = arith.constant 0 : index
    %c0_7 = arith.constant 0 : index
    %4 = vector.load %arg17[%c0_5, %c0_6, %c0_7] : memref<6x6x8xf32, #tpu.memory_space<vmem>>, vector<6x1x8xf32>
    tpu.vector_store %arg17[%c0_5, %c0_6, %c0_7], %1 {strides = array<i32>} : memref<6x6x8xf32, #tpu.memory_space<vmem>>, vector<6x1x8xf32>,
    %c0_8 = arith.constant 0 : index
    %c5_9 = arith.constant 5 : index
    %c0_10 = arith.constant 0 : index
    %5 = vector.load %arg17[%c0_8, %c5_9, %c0_10] : memref<6x6x8xf32, #tpu.memory_space<vmem>>, vector<6x1x8xf32>
    tpu.vector_store %arg17[%c0_8, %c5_9, %c0_10], %1 {strides = array<i32>} : memref<6x6x8xf32, #tpu.memory_space<vmem>>, vector<6x1x8xf32>,
    %c0_11 = arith.constant 0 : index
    %c0_12 = arith.constant 0 : index
    %c0_13 = arith.constant 0 : index
    %c0_14 = arith.constant 0 : index
    %6 = vector.load %arg1[%c0_11, %c0_12, %c0_13, %c0_14] : memref<1x4x4x16xbf16, #tpu.memory_space<vmem>>, vector<1x4x4x16xbf16>
    %7 = vector.shape_cast %6 : vector<1x4x4x16xbf16> to vector<4x4x16xbf16>
    %8 = vector.shape_cast %7 : vector<4x4x16xbf16> to vector<16x16xbf16>
    %c0_15 = arith.constant 0 : index
    %c0_16 = arith.constant 0 : index
    %9 = vector.load %arg2[%c0_15, %c0_16] : memref<16x8xbf16, #tpu.memory_space<vmem>>, vector<16x8xbf16>
    %cst_17 = arith.constant dense<0.000000e+00> : vector<16x8xf32>
    %10 = tpu.matmul %8, %9, %cst_17 {dimension_numbers = #tpu.dot_dimension_numbers<[1], [0], [0], [1], [0, 0, 1, 1], [], []>} : vector<16x16xbf16>, vector<16x8xbf16>, vector<16x8xf32> -> vector<16x8xf32>
    %c0_18 = arith.constant 0 : index
    %c0_19 = arith.constant 0 : index
    %11 = vector.load %arg3[%c0_18, %c0_19] : memref<1x8xf32, #tpu.memory_space<vmem>>, vector<1x8xf32>
    %12 = vector.broadcast %11 : vector<1x8xf32> to vector<16x8xf32>
    %13 = arith.addf %10, %12 : vector<16x8xf32>
    %cst_20 = arith.constant 1.000000e-01 : f32
    %14 = vector.broadcast %cst_20 : f32 to vector<16x8xf32>
    %15 = arith.mulf %14, %13 : vector<16x8xf32>
    %16 = arith.maximumf %13, %15 : vector<16x8xf32>
    %17 = vector.shape_cast %16 : vector<16x8xf32> to vector<4x4x8xf32>
    %18 = arith.truncf %17 : vector<4x4x8xf32> to vector<4x4x8xbf16>
    %19 = arith.extf %18 : vector<4x4x8xbf16> to vector<4x4x8xf32>
    %c1 = arith.constant 1 : index
    %c1_21 = arith.constant 1 : index
    %c0_22 = arith.constant 0 : index
    %20 = vector.load %arg17[%c1, %c1_21, %c0_22] : memref<6x6x8xf32, #tpu.memory_space<vmem>>, vector<4x4x8xf32>
    tpu.vector_store %arg17[%c1, %c1_21, %c0_22], %19 {strides = array<i32>} : memref<6x6x8xf32, #tpu.memory_space<vmem>>, vector<4x4x8xf32>,
    %c0_23 = arith.constant 0 : index
    %c0_24 = arith.constant 0 : index
    %c0_25 = arith.constant 0 : index
    %21 = vector.load %arg17[%c0_23, %c0_24, %c0_25] : memref<6x6x8xf32, #tpu.memory_space<vmem>>, vector<4x4x8xf32>
    %22 = arith.truncf %21 : vector<4x4x8xf32> to vector<4x4x8xbf16>
    %23 = vector.shape_cast %22 : vector<4x4x8xbf16> to vector<16x8xbf16>
    %c0_26 = arith.constant 0 : index
    %c0_27 = arith.constant 0 : index
    %c0_28 = arith.constant 0 : index
    %24 = vector.load %arg4[%c0_26, %c0_27, %c0_28] : memref<9x8x16xbf16, #tpu.memory_space<vmem>>, vector<1x8x16xbf16>
    %25 = vector.shape_cast %24 : vector<1x8x16xbf16> to vector<8x16xbf16>
    %cst_29 = arith.constant dense<0.000000e+00> : vector<16x16xf32>
    %26 = tpu.matmul %23, %25, %cst_29 {dimension_numbers = #tpu.dot_dimension_numbers<[1], [0], [0], [1], [0, 0, 1, 1], [], []>} : vector<16x8xbf16>, vector<8x16xbf16>, vector<16x16xf32> -> vector<16x16xf32>
    %c0_30 = arith.constant 0 : index
    %c1_31 = arith.constant 1 : index
    %c0_32 = arith.constant 0 : index
    %27 = vector.load %arg17[%c0_30, %c1_31, %c0_32] : memref<6x6x8xf32, #tpu.memory_space<vmem>>, vector<4x4x8xf32>
    %28 = arith.truncf %27 : vector<4x4x8xf32> to vector<4x4x8xbf16>
    %29 = vector.shape_cast %28 : vector<4x4x8xbf16> to vector<16x8xbf16>
    %c1_33 = arith.constant 1 : index
    %c0_34 = arith.constant 0 : index
    %c0_35 = arith.constant 0 : index
    %30 = vector.load %arg4[%c1_33, %c0_34, %c0_35] : memref<9x8x16xbf16, #tpu.memory_space<vmem>>, vector<1x8x16xbf16>
    %31 = vector.shape_cast %30 : vector<1x8x16xbf16> to vector<8x16xbf16>
    %cst_36 = arith.constant dense<0.000000e+00> : vector<16x16xf32>
    %32 = tpu.matmul %29, %31, %cst_36 {dimension_numbers = #tpu.dot_dimension_numbers<[1], [0], [0], [1], [0, 0, 1, 1], [], []>} : vector<16x8xbf16>, vector<8x16xbf16>, vector<16x16xf32> -> vector<16x16xf32>
    %33 = arith.addf %26, %32 : vector<16x16xf32>
    %c0_37 = arith.constant 0 : index
    %c2 = arith.constant 2 : index
    %c0_38 = arith.constant 0 : index
    %34 = vector.load %arg17[%c0_37, %c2, %c0_38] : memref<6x6x8xf32, #tpu.memory_space<vmem>>, vector<4x4x8xf32>
    %35 = arith.truncf %34 : vector<4x4x8xf32> to vector<4x4x8xbf16>
    %36 = vector.shape_cast %35 : vector<4x4x8xbf16> to vector<16x8xbf16>
    %c2_39 = arith.constant 2 : index
    %c0_40 = arith.constant 0 : index
    %c0_41 = arith.constant 0 : index
    %37 = vector.load %arg4[%c2_39, %c0_40, %c0_41] : memref<9x8x16xbf16, #tpu.memory_space<vmem>>, vector<1x8x16xbf16>
    %38 = vector.shape_cast %37 : vector<1x8x16xbf16> to vector<8x16xbf16>
    %cst_42 = arith.constant dense<0.000000e+00> : vector<16x16xf32>
    %39 = tpu.matmul %36, %38, %cst_42 {dimension_numbers = #tpu.dot_dimension_numbers<[1], [0], [0], [1], [0, 0, 1, 1], [], []>} : vector<16x8xbf16>, vector<8x16xbf16>, vector<16x16xf32> -> vector<16x16xf32>
    %40 = arith.addf %33, %39 : vector<16x16xf32>
    %c1_43 = arith.constant 1 : index
    %c0_44 = arith.constant 0 : index
    %c0_45 = arith.constant 0 : index
    %41 = vector.load %arg17[%c1_43, %c0_44, %c0_45] : memref<6x6x8xf32, #tpu.memory_space<vmem>>, vector<4x4x8xf32>
    %42 = arith.truncf %41 : vector<4x4x8xf32> to vector<4x4x8xbf16>
    %43 = vector.shape_cast %42 : vector<4x4x8xbf16> to vector<16x8xbf16>
    %c3 = arith.constant 3 : index
    %c0_46 = arith.constant 0 : index
    %c0_47 = arith.constant 0 : index
    %44 = vector.load %arg4[%c3, %c0_46, %c0_47] : memref<9x8x16xbf16, #tpu.memory_space<vmem>>, vector<1x8x16xbf16>
    %45 = vector.shape_cast %44 : vector<1x8x16xbf16> to vector<8x16xbf16>
    %cst_48 = arith.constant dense<0.000000e+00> : vector<16x16xf32>
    %46 = tpu.matmul %43, %45, %cst_48 {dimension_numbers = #tpu.dot_dimension_numbers<[1], [0], [0], [1], [0, 0, 1, 1], [], []>} : vector<16x8xbf16>, vector<8x16xbf16>, vector<16x16xf32> -> vector<16x16xf32>
    %47 = arith.addf %40, %46 : vector<16x16xf32>
    %c1_49 = arith.constant 1 : index
    %c1_50 = arith.constant 1 : index
    %c0_51 = arith.constant 0 : index
    %48 = vector.load %arg17[%c1_49, %c1_50, %c0_51] : memref<6x6x8xf32, #tpu.memory_space<vmem>>, vector<4x4x8xf32>
    %49 = arith.truncf %48 : vector<4x4x8xf32> to vector<4x4x8xbf16>
    %50 = vector.shape_cast %49 : vector<4x4x8xbf16> to vector<16x8xbf16>
    %c4 = arith.constant 4 : index
    %c0_52 = arith.constant 0 : index
    %c0_53 = arith.constant 0 : index
    %51 = vector.load %arg4[%c4, %c0_52, %c0_53] : memref<9x8x16xbf16, #tpu.memory_space<vmem>>, vector<1x8x16xbf16>
    %52 = vector.shape_cast %51 : vector<1x8x16xbf16> to vector<8x16xbf16>
    %cst_54 = arith.constant dense<0.000000e+00> : vector<16x16xf32>
    %53 = tpu.matmul %50, %52, %cst_54 {dimension_numbers = #tpu.dot_dimension_numbers<[1], [0], [0], [1], [0, 0, 1, 1], [], []>} : vector<16x8xbf16>, vector<8x16xbf16>, vector<16x16xf32> -> vector<16x16xf32>
    %54 = arith.addf %47, %53 : vector<16x16xf32>
    %c1_55 = arith.constant 1 : index
    %c2_56 = arith.constant 2 : index
    %c0_57 = arith.constant 0 : index
    %55 = vector.load %arg17[%c1_55, %c2_56, %c0_57] : memref<6x6x8xf32, #tpu.memory_space<vmem>>, vector<4x4x8xf32>
    %56 = arith.truncf %55 : vector<4x4x8xf32> to vector<4x4x8xbf16>
    %57 = vector.shape_cast %56 : vector<4x4x8xbf16> to vector<16x8xbf16>
    %c5_58 = arith.constant 5 : index
    %c0_59 = arith.constant 0 : index
    %c0_60 = arith.constant 0 : index
    %58 = vector.load %arg4[%c5_58, %c0_59, %c0_60] : memref<9x8x16xbf16, #tpu.memory_space<vmem>>, vector<1x8x16xbf16>
    %59 = vector.shape_cast %58 : vector<1x8x16xbf16> to vector<8x16xbf16>
    %cst_61 = arith.constant dense<0.000000e+00> : vector<16x16xf32>
    %60 = tpu.matmul %57, %59, %cst_61 {dimension_numbers = #tpu.dot_dimension_numbers<[1], [0], [0], [1], [0, 0, 1, 1], [], []>} : vector<16x8xbf16>, vector<8x16xbf16>, vector<16x16xf32> -> vector<16x16xf32>
    %61 = arith.addf %54, %60 : vector<16x16xf32>
    %c2_62 = arith.constant 2 : index
    %c0_63 = arith.constant 0 : index
    %c0_64 = arith.constant 0 : index
    %62 = vector.load %arg17[%c2_62, %c0_63, %c0_64] : memref<6x6x8xf32, #tpu.memory_space<vmem>>, vector<4x4x8xf32>
    %63 = arith.truncf %62 : vector<4x4x8xf32> to vector<4x4x8xbf16>
    %64 = vector.shape_cast %63 : vector<4x4x8xbf16> to vector<16x8xbf16>
    %c6 = arith.constant 6 : index
    %c0_65 = arith.constant 0 : index
    %c0_66 = arith.constant 0 : index
    %65 = vector.load %arg4[%c6, %c0_65, %c0_66] : memref<9x8x16xbf16, #tpu.memory_space<vmem>>, vector<1x8x16xbf16>
    %66 = vector.shape_cast %65 : vector<1x8x16xbf16> to vector<8x16xbf16>
    %cst_67 = arith.constant dense<0.000000e+00> : vector<16x16xf32>
    %67 = tpu.matmul %64, %66, %cst_67 {dimension_numbers = #tpu.dot_dimension_numbers<[1], [0], [0], [1], [0, 0, 1, 1], [], []>} : vector<16x8xbf16>, vector<8x16xbf16>, vector<16x16xf32> -> vector<16x16xf32>
    %68 = arith.addf %61, %67 : vector<16x16xf32>
    %c2_68 = arith.constant 2 : index
    %c1_69 = arith.constant 1 : index
    %c0_70 = arith.constant 0 : index
    %69 = vector.load %arg17[%c2_68, %c1_69, %c0_70] : memref<6x6x8xf32, #tpu.memory_space<vmem>>, vector<4x4x8xf32>
    %70 = arith.truncf %69 : vector<4x4x8xf32> to vector<4x4x8xbf16>
    %71 = vector.shape_cast %70 : vector<4x4x8xbf16> to vector<16x8xbf16>
    %c7 = arith.constant 7 : index
    %c0_71 = arith.constant 0 : index
    %c0_72 = arith.constant 0 : index
    %72 = vector.load %arg4[%c7, %c0_71, %c0_72] : memref<9x8x16xbf16, #tpu.memory_space<vmem>>, vector<1x8x16xbf16>
    %73 = vector.shape_cast %72 : vector<1x8x16xbf16> to vector<8x16xbf16>
    %cst_73 = arith.constant dense<0.000000e+00> : vector<16x16xf32>
    %74 = tpu.matmul %71, %73, %cst_73 {dimension_numbers = #tpu.dot_dimension_numbers<[1], [0], [0], [1], [0, 0, 1, 1], [], []>} : vector<16x8xbf16>, vector<8x16xbf16>, vector<16x16xf32> -> vector<16x16xf32>
    %75 = arith.addf %68, %74 : vector<16x16xf32>
    %c2_74 = arith.constant 2 : index
    %c2_75 = arith.constant 2 : index
    %c0_76 = arith.constant 0 : index
    %76 = vector.load %arg17[%c2_74, %c2_75, %c0_76] : memref<6x6x8xf32, #tpu.memory_space<vmem>>, vector<4x4x8xf32>
    %77 = arith.truncf %76 : vector<4x4x8xf32> to vector<4x4x8xbf16>
    %78 = vector.shape_cast %77 : vector<4x4x8xbf16> to vector<16x8xbf16>
    %c8 = arith.constant 8 : index
    %c0_77 = arith.constant 0 : index
    %c0_78 = arith.constant 0 : index
    %79 = vector.load %arg4[%c8, %c0_77, %c0_78] : memref<9x8x16xbf16, #tpu.memory_space<vmem>>, vector<1x8x16xbf16>
    %80 = vector.shape_cast %79 : vector<1x8x16xbf16> to vector<8x16xbf16>
    %cst_79 = arith.constant dense<0.000000e+00> : vector<16x16xf32>
    %81 = tpu.matmul %78, %80, %cst_79 {dimension_numbers = #tpu.dot_dimension_numbers<[1], [0], [0], [1], [0, 0, 1, 1], [], []>} : vector<16x8xbf16>, vector<8x16xbf16>, vector<16x16xf32> -> vector<16x16xf32>
    %82 = arith.addf %75, %81 : vector<16x16xf32>
    %c0_80 = arith.constant 0 : index
    %c0_81 = arith.constant 0 : index
    %83 = vector.load %arg5[%c0_80, %c0_81] : memref<1x16xf32, #tpu.memory_space<vmem>>, vector<1x16xf32>
    %84 = vector.broadcast %83 : vector<1x16xf32> to vector<16x16xf32>
    %85 = arith.addf %82, %84 : vector<16x16xf32>
    %cst_82 = arith.constant 1.000000e-01 : f32
    %86 = vector.broadcast %cst_82 : f32 to vector<16x16xf32>
    %87 = arith.mulf %86, %85 : vector<16x16xf32>
    %88 = arith.maximumf %85, %87 : vector<16x16xf32>
    %89 = vector.shape_cast %88 : vector<16x16xf32> to vector<4x4x16xf32>
    %90 = arith.truncf %89 : vector<4x4x16xf32> to vector<4x4x16xbf16>
    %91 = vector.shape_cast %90 : vector<4x4x16xbf16> to vector<16x16xbf16>
    %c0_83 = arith.constant 0 : index
    %c0_84 = arith.constant 0 : index
    %92 = vector.load %arg6[%c0_83, %c0_84] : memref<16x8xbf16, #tpu.memory_space<vmem>>, vector<16x8xbf16>
    %cst_85 = arith.constant dense<0.000000e+00> : vector<16x8xf32>
    %93 = tpu.matmul %91, %92, %cst_85 {dimension_numbers = #tpu.dot_dimension_numbers<[1], [0], [0], [1], [0, 0, 1, 1], [], []>} : vector<16x16xbf16>, vector<16x8xbf16>, vector<16x8xf32> -> vector<16x8xf32>
    %c0_86 = arith.constant 0 : index
    %c0_87 = arith.constant 0 : index
    %94 = vector.load %arg7[%c0_86, %c0_87] : memref<1x8xf32, #tpu.memory_space<vmem>>, vector<1x8xf32>
    %95 = vector.broadcast %94 : vector<1x8xf32> to vector<16x8xf32>
    %96 = arith.addf %93, %95 : vector<16x8xf32>
    %cst_88 = arith.constant 1.000000e-01 : f32
    %97 = vector.broadcast %cst_88 : f32 to vector<16x8xf32>
    %98 = arith.mulf %97, %96 : vector<16x8xf32>
    %99 = arith.maximumf %96, %98 : vector<16x8xf32>
    %100 = vector.shape_cast %99 : vector<16x8xf32> to vector<4x4x8xf32>
    %101 = arith.truncf %100 : vector<4x4x8xf32> to vector<4x4x8xbf16>
    %102 = arith.extf %101 : vector<4x4x8xbf16> to vector<4x4x8xf32>
    %c1_89 = arith.constant 1 : index
    %c1_90 = arith.constant 1 : index
    %c0_91 = arith.constant 0 : index
    %103 = vector.load %arg17[%c1_89, %c1_90, %c0_91] : memref<6x6x8xf32, #tpu.memory_space<vmem>>, vector<4x4x8xf32>
    tpu.vector_store %arg17[%c1_89, %c1_90, %c0_91], %102 {strides = array<i32>} : memref<6x6x8xf32, #tpu.memory_space<vmem>>, vector<4x4x8xf32>,
    %c0_92 = arith.constant 0 : index
    %c0_93 = arith.constant 0 : index
    %c0_94 = arith.constant 0 : index
    %104 = vector.load %arg17[%c0_92, %c0_93, %c0_94] : memref<6x6x8xf32, #tpu.memory_space<vmem>>, vector<4x4x8xf32>
    %105 = arith.truncf %104 : vector<4x4x8xf32> to vector<4x4x8xbf16>
    %106 = vector.shape_cast %105 : vector<4x4x8xbf16> to vector<16x8xbf16>
    %c0_95 = arith.constant 0 : index
    %c0_96 = arith.constant 0 : index
    %c0_97 = arith.constant 0 : index
    %107 = vector.load %arg8[%c0_95, %c0_96, %c0_97] : memref<9x8x16xbf16, #tpu.memory_space<vmem>>, vector<1x8x16xbf16>
    %108 = vector.shape_cast %107 : vector<1x8x16xbf16> to vector<8x16xbf16>
    %cst_98 = arith.constant dense<0.000000e+00> : vector<16x16xf32>
    %109 = tpu.matmul %106, %108, %cst_98 {dimension_numbers = #tpu.dot_dimension_numbers<[1], [0], [0], [1], [0, 0, 1, 1], [], []>} : vector<16x8xbf16>, vector<8x16xbf16>, vector<16x16xf32> -> vector<16x16xf32>
    %c0_99 = arith.constant 0 : index
    %c1_100 = arith.constant 1 : index
    %c0_101 = arith.constant 0 : index
    %110 = vector.load %arg17[%c0_99, %c1_100, %c0_101] : memref<6x6x8xf32, #tpu.memory_space<vmem>>, vector<4x4x8xf32>
    %111 = arith.truncf %110 : vector<4x4x8xf32> to vector<4x4x8xbf16>
    %112 = vector.shape_cast %111 : vector<4x4x8xbf16> to vector<16x8xbf16>
    %c1_102 = arith.constant 1 : index
    %c0_103 = arith.constant 0 : index
    %c0_104 = arith.constant 0 : index
    %113 = vector.load %arg8[%c1_102, %c0_103, %c0_104] : memref<9x8x16xbf16, #tpu.memory_space<vmem>>, vector<1x8x16xbf16>
    %114 = vector.shape_cast %113 : vector<1x8x16xbf16> to vector<8x16xbf16>
    %cst_105 = arith.constant dense<0.000000e+00> : vector<16x16xf32>
    %115 = tpu.matmul %112, %114, %cst_105 {dimension_numbers = #tpu.dot_dimension_numbers<[1], [0], [0], [1], [0, 0, 1, 1], [], []>} : vector<16x8xbf16>, vector<8x16xbf16>, vector<16x16xf32> -> vector<16x16xf32>
    %116 = arith.addf %109, %115 : vector<16x16xf32>
    %c0_106 = arith.constant 0 : index
    %c2_107 = arith.constant 2 : index
    %c0_108 = arith.constant 0 : index
    %117 = vector.load %arg17[%c0_106, %c2_107, %c0_108] : memref<6x6x8xf32, #tpu.memory_space<vmem>>, vector<4x4x8xf32>
    %118 = arith.truncf %117 : vector<4x4x8xf32> to vector<4x4x8xbf16>
    %119 = vector.shape_cast %118 : vector<4x4x8xbf16> to vector<16x8xbf16>
    %c2_109 = arith.constant 2 : index
    %c0_110 = arith.constant 0 : index
    %c0_111 = arith.constant 0 : index
    %120 = vector.load %arg8[%c2_109, %c0_110, %c0_111] : memref<9x8x16xbf16, #tpu.memory_space<vmem>>, vector<1x8x16xbf16>
    %121 = vector.shape_cast %120 : vector<1x8x16xbf16> to vector<8x16xbf16>
    %cst_112 = arith.constant dense<0.000000e+00> : vector<16x16xf32>
    %122 = tpu.matmul %119, %121, %cst_112 {dimension_numbers = #tpu.dot_dimension_numbers<[1], [0], [0], [1], [0, 0, 1, 1], [], []>} : vector<16x8xbf16>, vector<8x16xbf16>, vector<16x16xf32> -> vector<16x16xf32>
    %123 = arith.addf %116, %122 : vector<16x16xf32>
    %c1_113 = arith.constant 1 : index
    %c0_114 = arith.constant 0 : index
    %c0_115 = arith.constant 0 : index
    %124 = vector.load %arg17[%c1_113, %c0_114, %c0_115] : memref<6x6x8xf32, #tpu.memory_space<vmem>>, vector<4x4x8xf32>
    %125 = arith.truncf %124 : vector<4x4x8xf32> to vector<4x4x8xbf16>
    %126 = vector.shape_cast %125 : vector<4x4x8xbf16> to vector<16x8xbf16>
    %c3_116 = arith.constant 3 : index
    %c0_117 = arith.constant 0 : index
    %c0_118 = arith.constant 0 : index
    %127 = vector.load %arg8[%c3_116, %c0_117, %c0_118] : memref<9x8x16xbf16, #tpu.memory_space<vmem>>, vector<1x8x16xbf16>
    %128 = vector.shape_cast %127 : vector<1x8x16xbf16> to vector<8x16xbf16>
    %cst_119 = arith.constant dense<0.000000e+00> : vector<16x16xf32>
    %129 = tpu.matmul %126, %128, %cst_119 {dimension_numbers = #tpu.dot_dimension_numbers<[1], [0], [0], [1], [0, 0, 1, 1], [], []>} : vector<16x8xbf16>, vector<8x16xbf16>, vector<16x16xf32> -> vector<16x16xf32>
    %130 = arith.addf %123, %129 : vector<16x16xf32>
    %c1_120 = arith.constant 1 : index
    %c1_121 = arith.constant 1 : index
    %c0_122 = arith.constant 0 : index
    %131 = vector.load %arg17[%c1_120, %c1_121, %c0_122] : memref<6x6x8xf32, #tpu.memory_space<vmem>>, vector<4x4x8xf32>
    %132 = arith.truncf %131 : vector<4x4x8xf32> to vector<4x4x8xbf16>
    %133 = vector.shape_cast %132 : vector<4x4x8xbf16> to vector<16x8xbf16>
    %c4_123 = arith.constant 4 : index
    %c0_124 = arith.constant 0 : index
    %c0_125 = arith.constant 0 : index
    %134 = vector.load %arg8[%c4_123, %c0_124, %c0_125] : memref<9x8x16xbf16, #tpu.memory_space<vmem>>, vector<1x8x16xbf16>
    %135 = vector.shape_cast %134 : vector<1x8x16xbf16> to vector<8x16xbf16>
    %cst_126 = arith.constant dense<0.000000e+00> : vector<16x16xf32>
    %136 = tpu.matmul %133, %135, %cst_126 {dimension_numbers = #tpu.dot_dimension_numbers<[1], [0], [0], [1], [0, 0, 1, 1], [], []>} : vector<16x8xbf16>, vector<8x16xbf16>, vector<16x16xf32> -> vector<16x16xf32>
    %137 = arith.addf %130, %136 : vector<16x16xf32>
    %c1_127 = arith.constant 1 : index
    %c2_128 = arith.constant 2 : index
    %c0_129 = arith.constant 0 : index
    %138 = vector.load %arg17[%c1_127, %c2_128, %c0_129] : memref<6x6x8xf32, #tpu.memory_space<vmem>>, vector<4x4x8xf32>
    %139 = arith.truncf %138 : vector<4x4x8xf32> to vector<4x4x8xbf16>
    %140 = vector.shape_cast %139 : vector<4x4x8xbf16> to vector<16x8xbf16>
    %c5_130 = arith.constant 5 : index
    %c0_131 = arith.constant 0 : index
    %c0_132 = arith.constant 0 : index
    %141 = vector.load %arg8[%c5_130, %c0_131, %c0_132] : memref<9x8x16xbf16, #tpu.memory_space<vmem>>, vector<1x8x16xbf16>
    %142 = vector.shape_cast %141 : vector<1x8x16xbf16> to vector<8x16xbf16>
    %cst_133 = arith.constant dense<0.000000e+00> : vector<16x16xf32>
    %143 = tpu.matmul %140, %142, %cst_133 {dimension_numbers = #tpu.dot_dimension_numbers<[1], [0], [0], [1], [0, 0, 1, 1], [], []>} : vector<16x8xbf16>, vector<8x16xbf16>, vector<16x16xf32> -> vector<16x16xf32>
    %144 = arith.addf %137, %143 : vector<16x16xf32>
    %c2_134 = arith.constant 2 : index
    %c0_135 = arith.constant 0 : index
    %c0_136 = arith.constant 0 : index
    %145 = vector.load %arg17[%c2_134, %c0_135, %c0_136] : memref<6x6x8xf32, #tpu.memory_space<vmem>>, vector<4x4x8xf32>
    %146 = arith.truncf %145 : vector<4x4x8xf32> to vector<4x4x8xbf16>
    %147 = vector.shape_cast %146 : vector<4x4x8xbf16> to vector<16x8xbf16>
    %c6_137 = arith.constant 6 : index
    %c0_138 = arith.constant 0 : index
    %c0_139 = arith.constant 0 : index
    %148 = vector.load %arg8[%c6_137, %c0_138, %c0_139] : memref<9x8x16xbf16, #tpu.memory_space<vmem>>, vector<1x8x16xbf16>
    %149 = vector.shape_cast %148 : vector<1x8x16xbf16> to vector<8x16xbf16>
    %cst_140 = arith.constant dense<0.000000e+00> : vector<16x16xf32>
    %150 = tpu.matmul %147, %149, %cst_140 {dimension_numbers = #tpu.dot_dimension_numbers<[1], [0], [0], [1], [0, 0, 1, 1], [], []>} : vector<16x8xbf16>, vector<8x16xbf16>, vector<16x16xf32> -> vector<16x16xf32>
    %151 = arith.addf %144, %150 : vector<16x16xf32>
    %c2_141 = arith.constant 2 : index
    %c1_142 = arith.constant 1 : index
    %c0_143 = arith.constant 0 : index
    %152 = vector.load %arg17[%c2_141, %c1_142, %c0_143] : memref<6x6x8xf32, #tpu.memory_space<vmem>>, vector<4x4x8xf32>
    %153 = arith.truncf %152 : vector<4x4x8xf32> to vector<4x4x8xbf16>
    %154 = vector.shape_cast %153 : vector<4x4x8xbf16> to vector<16x8xbf16>
    %c7_144 = arith.constant 7 : index
    %c0_145 = arith.constant 0 : index
    %c0_146 = arith.constant 0 : index
    %155 = vector.load %arg8[%c7_144, %c0_145, %c0_146] : memref<9x8x16xbf16, #tpu.memory_space<vmem>>, vector<1x8x16xbf16>
    %156 = vector.shape_cast %155 : vector<1x8x16xbf16> to vector<8x16xbf16>
    %cst_147 = arith.constant dense<0.000000e+00> : vector<16x16xf32>
    %157 = tpu.matmul %154, %156, %cst_147 {dimension_numbers = #tpu.dot_dimension_numbers<[1], [0], [0], [1], [0, 0, 1, 1], [], []>} : vector<16x8xbf16>, vector<8x16xbf16>, vector<16x16xf32> -> vector<16x16xf32>
    %158 = arith.addf %151, %157 : vector<16x16xf32>
    %c2_148 = arith.constant 2 : index
    %c2_149 = arith.constant 2 : index
    %c0_150 = arith.constant 0 : index
    %159 = vector.load %arg17[%c2_148, %c2_149, %c0_150] : memref<6x6x8xf32, #tpu.memory_space<vmem>>, vector<4x4x8xf32>
    %160 = arith.truncf %159 : vector<4x4x8xf32> to vector<4x4x8xbf16>
    %161 = vector.shape_cast %160 : vector<4x4x8xbf16> to vector<16x8xbf16>
    %c8_151 = arith.constant 8 : index
    %c0_152 = arith.constant 0 : index
    %c0_153 = arith.constant 0 : index
    %162 = vector.load %arg8[%c8_151, %c0_152, %c0_153] : memref<9x8x16xbf16, #tpu.memory_space<vmem>>, vector<1x8x16xbf16>
    %163 = vector.shape_cast %162 : vector<1x8x16xbf16> to vector<8x16xbf16>
    %cst_154 = arith.constant dense<0.000000e+00> : vector<16x16xf32>
    %164 = tpu.matmul %161, %163, %cst_154 {dimension_numbers = #tpu.dot_dimension_numbers<[1], [0], [0], [1], [0, 0, 1, 1], [], []>} : vector<16x8xbf16>, vector<8x16xbf16>, vector<16x16xf32> -> vector<16x16xf32>
    %165 = arith.addf %158, %164 : vector<16x16xf32>
    %c0_155 = arith.constant 0 : index
    %c0_156 = arith.constant 0 : index
    %166 = vector.load %arg9[%c0_155, %c0_156] : memref<1x16xf32, #tpu.memory_space<vmem>>, vector<1x16xf32>
    %167 = vector.broadcast %166 : vector<1x16xf32> to vector<16x16xf32>
    %168 = arith.addf %165, %167 : vector<16x16xf32>
    %cst_157 = arith.constant 1.000000e-01 : f32
    %169 = vector.broadcast %cst_157 : f32 to vector<16x16xf32>
    %170 = arith.mulf %169, %168 : vector<16x16xf32>
    %171 = arith.maximumf %168, %170 : vector<16x16xf32>
    %172 = vector.shape_cast %171 : vector<16x16xf32> to vector<4x4x16xf32>
    %173 = arith.truncf %172 : vector<4x4x16xf32> to vector<4x4x16xbf16>
    %174 = vector.shape_cast %173 : vector<4x4x16xbf16> to vector<16x16xbf16>
    %c0_158 = arith.constant 0 : index
    %c0_159 = arith.constant 0 : index
    %175 = vector.load %arg10[%c0_158, %c0_159] : memref<16x8xbf16, #tpu.memory_space<vmem>>, vector<16x8xbf16>
    %cst_160 = arith.constant dense<0.000000e+00> : vector<16x8xf32>
    %176 = tpu.matmul %174, %175, %cst_160 {dimension_numbers = #tpu.dot_dimension_numbers<[1], [0], [0], [1], [0, 0, 1, 1], [], []>} : vector<16x16xbf16>, vector<16x8xbf16>, vector<16x8xf32> -> vector<16x8xf32>
    %c0_161 = arith.constant 0 : index
    %c0_162 = arith.constant 0 : index
    %177 = vector.load %arg11[%c0_161, %c0_162] : memref<1x8xf32, #tpu.memory_space<vmem>>, vector<1x8xf32>
    %178 = vector.broadcast %177 : vector<1x8xf32> to vector<16x8xf32>
    %179 = arith.addf %176, %178 : vector<16x8xf32>
    %cst_163 = arith.constant 1.000000e-01 : f32
    %180 = vector.broadcast %cst_163 : f32 to vector<16x8xf32>
    %181 = arith.mulf %180, %179 : vector<16x8xf32>
    %182 = arith.maximumf %179, %181 : vector<16x8xf32>
    %183 = vector.shape_cast %182 : vector<16x8xf32> to vector<4x4x8xf32>
    %184 = arith.truncf %183 : vector<4x4x8xf32> to vector<4x4x8xbf16>
    %c0_164 = arith.constant 0 : index
    %c0_165 = arith.constant 0 : index
    %c0_166 = arith.constant 0 : index
    %c0_167 = arith.constant 0 : index
    %185 = vector.load %arg15[%c0_164, %c0_165, %c0_166, %c0_167] : memref<1x4x4x8xbf16, #tpu.memory_space<vmem>>, vector<1x4x4x8xbf16>
    %186 = vector.shape_cast %185 : vector<1x4x4x8xbf16> to vector<4x4x8xbf16>
    %187 = vector.shape_cast %184 : vector<4x4x8xbf16> to vector<1x4x4x8xbf16>
    tpu.vector_store %arg15[%c0_164, %c0_165, %c0_166, %c0_167], %187 {strides = array<i32>} : memref<1x4x4x8xbf16, #tpu.memory_space<vmem>>, vector<1x4x4x8xbf16>,
    %188 = vector.shape_cast %184 : vector<4x4x8xbf16> to vector<16x8xbf16>
    %c0_168 = arith.constant 0 : index
    %c0_169 = arith.constant 0 : index
    %189 = vector.load %arg12[%c0_168, %c0_169] : memref<8x4xbf16, #tpu.memory_space<vmem>>, vector<8x4xbf16>
    %cst_170 = arith.constant dense<0.000000e+00> : vector<16x4xf32>
    %190 = tpu.matmul %188, %189, %cst_170 {dimension_numbers = #tpu.dot_dimension_numbers<[1], [0], [0], [1], [0, 0, 1, 1], [], []>} : vector<16x8xbf16>, vector<8x4xbf16>, vector<16x4xf32> -> vector<16x4xf32>
    %c0_171 = arith.constant 0 : index
    %c0_172 = arith.constant 0 : index
    %191 = vector.load %arg13[%c0_171, %c0_172] : memref<1x4xf32, #tpu.memory_space<vmem>>, vector<1x4xf32>
    %192 = vector.broadcast %191 : vector<1x4xf32> to vector<16x4xf32>
    %193 = arith.addf %190, %192 : vector<16x4xf32>
    %cst_173 = arith.constant 1.000000e-01 : f32
    %194 = vector.broadcast %cst_173 : f32 to vector<16x4xf32>
    %195 = arith.mulf %194, %193 : vector<16x4xf32>
    %196 = arith.maximumf %193, %195 : vector<16x4xf32>
    %197 = vector.shape_cast %196 : vector<16x4xf32> to vector<4x4x4xf32>
    %198 = arith.truncf %197 : vector<4x4x4xf32> to vector<4x4x4xbf16>
    %199 = vector.shape_cast %198 : vector<4x4x4xbf16> to vector<16x4xbf16>
    %c0_174 = arith.constant 0 : index
    %c0_175 = arith.constant 0 : index
    %200 = vector.load %arg14[%c0_174, %c0_175] : memref<4x4xbf16, #tpu.memory_space<vmem>>, vector<4x4xbf16>
    %cst_176 = arith.constant dense<0.000000e+00> : vector<16x4xf32>
    %201 = tpu.matmul %199, %200, %cst_176 {dimension_numbers = #tpu.dot_dimension_numbers<[1], [0], [0], [1], [0, 0, 1, 1], [], []>} : vector<16x4xbf16>, vector<4x4xbf16>, vector<16x4xf32> -> vector<16x4xf32>
    %202 = vector.shape_cast %201 : vector<16x4xf32> to vector<4x4x4xf32>
    %c0_177 = arith.constant 0 : index
    %c0_178 = arith.constant 0 : index
    %c0_179 = arith.constant 0 : index
    %c0_180 = arith.constant 0 : index
    %203 = vector.load %arg16[%c0_177, %c0_178, %c0_179, %c0_180] : memref<1x4x4x4xf32, #tpu.memory_space<vmem>>, vector<1x4x4x4xf32>
    %204 = vector.shape_cast %203 : vector<1x4x4x4xf32> to vector<4x4x4xf32>
    %205 = vector.shape_cast %202 : vector<4x4x4xf32> to vector<1x4x4x4xf32>
    tpu.vector_store %arg16[%c0_177, %c0_178, %c0_179, %c0_180], %205 {strides = array<i32>} : memref<1x4x4x4xf32, #tpu.memory_space<vmem>>, vector<1x4x4x4xf32>,
    return
  }
  func.func @transform_0(%arg0: i32) -> (i32, i32, i32, i32) {
    %c0_i32 = arith.constant 0 : i32
    %c0_i32_0 = arith.constant 0 : i32
    %c0_i32_1 = arith.constant 0 : i32
    %c0_i32_2 = arith.constant 0 : i32
    return %arg0, %c0_i32, %c0_i32_0, %c0_i32_1 : i32, i32, i32, i32
  }
  func.func @transform_1(%arg0: i32) -> (i32, i32) {
    %c0_i32 = arith.constant 0 : i32
    %c0_i32_0 = arith.constant 0 : i32
    %c0_i32_1 = arith.constant 0 : i32
    return %c0_i32, %c0_i32_0 : i32, i32
  }
  func.func @transform_2(%arg0: i32) -> (i32, i32) {
    %c0_i32 = arith.constant 0 : i32
    %c0_i32_0 = arith.constant 0 : i32
    %c0_i32_1 = arith.constant 0 : i32
    return %c0_i32, %c0_i32_0 : i32, i32
  }
  func.func @transform_3(%arg0: i32) -> (i32, i32, i32) {
    %c0_i32 = arith.constant 0 : i32
    %c0_i32_0 = arith.constant 0 : i32
    %c0_i32_1 = arith.constant 0 : i32
    %c0_i32_2 = arith.constant 0 : i32
    return %c0_i32, %c0_i32_0, %c0_i32_1 : i32, i32, i32
  }
  func.func @transform_4(%arg0: i32) -> (i32, i32) {
    %c0_i32 = arith.constant 0 : i32
    %c0_i32_0 = arith.constant 0 : i32
    %c0_i32_1 = arith.constant 0 : i32
    return %c0_i32, %c0_i32_0 : i32, i32
  }
  func.func @transform_5(%arg0: i32) -> (i32, i32) {
    %c0_i32 = arith.constant 0 : i32
    %c0_i32_0 = arith.constant 0 : i32
    %c0_i32_1 = arith.constant 0 : i32
    return %c0_i32, %c0_i32_0 : i32, i32
  }
  func.func @transform_6(%arg0: i32) -> (i32, i32) {
    %c0_i32 = arith.constant 0 : i32
    %c0_i32_0 = arith.constant 0 : i32
    %c0_i32_1 = arith.constant 0 : i32
    return %c0_i32, %c0_i32_0 : i32, i32
  }
  func.func @transform_7(%arg0: i32) -> (i32, i32, i32) {
    %c0_i32 = arith.constant 0 : i32
    %c0_i32_0 = arith.constant 0 : i32
    %c0_i32_1 = arith.constant 0 : i32
    %c0_i32_2 = arith.constant 0 : i32
    return %c0_i32, %c0_i32_0, %c0_i32_1 : i32, i32, i32
  }
  func.func @transform_8(%arg0: i32) -> (i32, i32) {
    %c0_i32 = arith.constant 0 : i32
    %c0_i32_0 = arith.constant 0 : i32
    %c0_i32_1 = arith.constant 0 : i32
    return %c0_i32, %c0_i32_0 : i32, i32
  }
  func.func @transform_9(%arg0: i32) -> (i32, i32) {
    %c0_i32 = arith.constant 0 : i32
    %c0_i32_0 = arith.constant 0 : i32
    %c0_i32_1 = arith.constant 0 : i32
    return %c0_i32, %c0_i32_0 : i32, i32
  }
  func.func @transform_10(%arg0: i32) -> (i32, i32) {
    %c0_i32 = arith.constant 0 : i32
    %c0_i32_0 = arith.constant 0 : i32
    %c0_i32_1 = arith.constant 0 : i32
    return %c0_i32, %c0_i32_0 : i32, i32
  }
  func.func @transform_11(%arg0: i32) -> (i32, i32) {
    %c0_i32 = arith.constant 0 : i32
    %c0_i32_0 = arith.constant 0 : i32
    %c0_i32_1 = arith.constant 0 : i32
    return %c0_i32, %c0_i32_0 : i32, i32
  }
  func.func @transform_12(%arg0: i32) -> (i32, i32) {
    %c0_i32 = arith.constant 0 : i32
    %c0_i32_0 = arith.constant 0 : i32
    %c0_i32_1 = arith.constant 0 : i32
    return %c0_i32, %c0_i32_0 : i32, i32
  }
  func.func @transform_13(%arg0: i32) -> (i32, i32) {
    %c0_i32 = arith.constant 0 : i32
    %c0_i32_0 = arith.constant 0 : i32
    %c0_i32_1 = arith.constant 0 : i32
    return %c0_i32, %c0_i32_0 : i32, i32
  }
  func.func @transform_14(%arg0: i32) -> (i32, i32, i32, i32) {
    %c0_i32 = arith.constant 0 : i32
    %c0_i32_0 = arith.constant 0 : i32
    %c0_i32_1 = arith.constant 0 : i32
    %c0_i32_2 = arith.constant 0 : i32
    return %arg0, %c0_i32, %c0_i32_0, %c0_i32_1 : i32, i32, i32, i32
  }
  func.func @transform_15(%arg0: i32) -> (i32, i32, i32, i32) {
    %c0_i32 = arith.constant 0 : i32
    %c0_i32_0 = arith.constant 0 : i32
    %c0_i32_1 = arith.constant 0 : i32
    %c0_i32_2 = arith.constant 0 : i32
    return %arg0, %c0_i32, %c0_i32_0, %c0_i32_1 : i32, i32, i32, i32
  }
}

</mosaic_0001>

<llo_original>
// kernel: tpu_custom_call.1
$region0: #{tpu_custom_call.1}
  #allocation0 [shape = 'u32[]', space=smem, size = 0x4, offset = 0x4, fixed_abs, tag = 'smem constant byte address 0x4 - core index']
  #allocation1 [shape = 'u32[72,128]{1,0:T(1,128)}', space=vmem, size = 0x9000, scoped, tag = 'internal scratch']
  #allocation2 [shape = 'bf16[6,6,2]{2,1,0:T(8,128)(2,1)}', space=vmem, size = 0x3000, scoped, tag = 'scratch operand']
  %s0 = inlined_call_operand.vmem [shape: bf16[4,4,2], index: 0, kind: input, shape index: {}]
  %s1 = inlined_call_operand.hbm [shape: bf16[4,4,6], index: 1, kind: output, shape index: {}]
  %s2 = sld [smem:[#allocation0]]
  $region14: #{tpu_custom_call.1} parent=0
    _
  %s4 = ssub.s32 1, %s2
  %s5 = scalar_select 0, %s4, %s2
  $region1: #{tpu_custom_call.1} parent=0
    #allocation3 [shape = 'u8[4096]{0}', space=vmem, size = 0x1000, scoped, tag = 'output window, operand 0, single buffered']
    #allocation4 [shape = 's32[1]{0}', space=sflag, size = 0x4, scoped, tag = 'scoped memory for tpu_custom_call.1']
    %6 = vsyncpa [#allocation4], 0
    // Predicated region
    $region2: #{tpu_custom_call.1} parent=1 // pred_check
      _
    $region3: #{tpu_custom_call.1} parent=1 // pred_check_branch
      %8 = sbr.rel (0) target = $region5
    $region4: #{tpu_custom_call.1} parent=1 // pred_region
      _
    $region5: #{tpu_custom_call.1} parent=1 // pred_fallthru
      _
    %vm10 = vcmask 10240
    %11 = vst.msk [vmem:[#allocation2] sm:$0x7] %vm10, 0
    %s12 = scalar_lea.vmem [#allocation2], 20
    %13 = vst.msk [vmem:[%s12] sm:$0x7] %vm10, 0
    %vm14 = vcmask 8192
    %vm15 = vsmask.f32 256
    %vm16 = vmand %vm14, %vm15
    %v17 = vld [vmem:[#allocation2] sm:$0x1]
    %v18 = vsel %vm16, 0, %v17
    %19 = vst [vmem:[#allocation2] sm:$0x1] %v18
    %v20 = vld [vmem:[#allocation2 + $0x4] sm:$0x1]
    %v21 = vsel %vm16, 0, %v20
    %22 = vst [vmem:[#allocation2 + $0x4] sm:$0x1] %v21
    %v23 = vld [vmem:[#allocation2 + $0x8] sm:$0x1]
    %v24 = vsel %vm16, 0, %v23
    %25 = vst [vmem:[#allocation2 + $0x8] sm:$0x1] %v24
    %v26 = vld [vmem:[#allocation2 + $0xc] sm:$0x1]
    %v27 = vsel %vm16, 0, %v26
    %28 = vst [vmem:[#allocation2 + $0xc] sm:$0x1] %v27
    %v29 = vld [vmem:[#allocation2 + $0x10] sm:$0x1]
    %v30 = vsel %vm16, 0, %v29
    %31 = vst [vmem:[#allocation2 + $0x10] sm:$0x1] %v30
    %v32 = vld [vmem:[#allocation2 + $0x14] sm:$0x1]
    %v33 = vsel %vm16, 0, %v32
    %34 = vst [vmem:[#allocation2 + $0x14] sm:$0x1] %v33
    %vm35 = vcmask 10242
    %vm36 = vsmask.f32 7946
    %vm37 = vmand %vm35, %vm36
    %v38 = vld [vmem:[#allocation2] sm:$0x4]
    %v39 = vsel %vm37, 0, %v38
    %40 = vst [vmem:[#allocation2] sm:$0x4] %v39
    %v41 = vld [vmem:[#allocation2 + $0x4] sm:$0x4]
    %v42 = vsel %vm37, 0, %v41
    %43 = vst [vmem:[#allocation2 + $0x4] sm:$0x4] %v42
    %v44 = vld [vmem:[#allocation2 + $0x8] sm:$0x4]
    %v45 = vsel %vm37, 0, %v44
    %46 = vst [vmem:[#allocation2 + $0x8] sm:$0x4] %v45
    %v47 = vld [vmem:[#allocation2 + $0xc] sm:$0x4]
    %v48 = vsel %vm37, 0, %v47
    %49 = vst [vmem:[#allocation2 + $0xc] sm:$0x4] %v48
    %v50 = vld [vmem:[#allocation2 + $0x10] sm:$0x4]
    %v51 = vsel %vm37, 0, %v50
    %52 = vst [vmem:[#allocation2 + $0x10] sm:$0x4] %v51
    %v53 = vld [vmem:[#allocation2 + $0x14] sm:$0x4]
    %v54 = vsel %vm37, 0, %v53
    %55 = vst [vmem:[#allocation2 + $0x14] sm:$0x4] %v54
    %v56 = vld [vmem:[%s0] sm:$0x3]
    %v57 = vld [vmem:[%s0 + $0x2] sm:$0x3]
    %v58 = vld [vmem:[%s0 + $0x4] sm:$0x3]
    %v59 = vld [vmem:[%s0 + $0x6] sm:$0x3]
    %61 = vst [vmem:[#allocation1] ss:$2 sm:$0xff] %v56
    %v62 = vld.sshfl [vmem:[#allocation1] sm:$0xff pattern:$0x75643120]
    %s64 = scalar_lea.vmem [#allocation1], 16
    %65 = vst [vmem:[%s64] ss:$2 sm:$0xff] %v57
    %v66 = vld.sshfl [vmem:[#allocation1 + $0x10] sm:$0xff pattern:$0x75643120]
    %s68 = scalar_lea.vmem [#allocation1], 32
    %69 = vst [vmem:[%s68] ss:$2 sm:$0xff] %v58
    %v70 = vld.sshfl [vmem:[#allocation1 + $0x20] sm:$0xff pattern:$0x75643120]
    %s72 = scalar_lea.vmem [#allocation1], 48
    %73 = vst [vmem:[%s72] ss:$2 sm:$0xff] %v59
    %v74 = vld.sshfl [vmem:[#allocation1 + $0x30] sm:$0xff pattern:$0x75643120]
    %v75 = vshrl.u32 %v62, 16
    %v77 = vrot.slane %v75, 7
    %v78 = vshll.u32 %v62, 16
    %v80 = vor.u32 %v77, %v78
    %v81 = vshrl.u32 %v66, 16
    %v83 = vrot.slane %v81, 7
    %v84 = vshll.u32 %v66, 16
    %v86 = vor.u32 %v83, %v84
    %v87 = vshrl.u32 %v70, 16
    %v89 = vrot.slane %v87, 7
    %v90 = vshll.u32 %v70, 16
    %v92 = vor.u32 %v89, %v90
    %v93 = vshrl.u32 %v74, 16
    %v95 = vrot.slane %v93, 7
    %v96 = vshll.u32 %v74, 16
    %v98 = vor.u32 %v95, %v96
    %s103 = scalar_lea.vmem [#allocation2], 4
    %vm104 = vcmask 10240
    %vm105 = vsmask.f32 2306
    %vm106 = vmand %vm104, %vm105
    %v107 = vld [vmem:[%s103] sm:$0x7]
    %v108 = vsel %vm106, %v80, %v107
    %109 = vst [vmem:[%s103] sm:$0x7] %v108
    %v110 = vld [vmem:[%s103 + $0x4] sm:$0x7]
    %v111 = vsel %vm106, %v86, %v110
    %112 = vst [vmem:[%s103 + $0x4] sm:$0x7] %v111
    %v113 = vld [vmem:[%s103 + $0x8] sm:$0x7]
    %v114 = vsel %vm106, %v92, %v113
    %115 = vst [vmem:[%s103 + $0x8] sm:$0x7] %v114
    %v116 = vld [vmem:[%s103 + $0xc] sm:$0x7]
    %v117 = vsel %vm106, %v98, %v116
    %118 = vst [vmem:[%s103 + $0xc] sm:$0x7] %v117
    %v119 = vld [vmem:[%s103] sm:$0x3]
    %v120 = vld [vmem:[%s103 + $0x4] sm:$0x3]
    %v121 = vld [vmem:[%s103 + $0x8] sm:$0x3]
    %v122 = vld [vmem:[%s103 + $0xc] sm:$0x3]
    %v123 = vld [vmem:[%s103] sm:$0x7]
    %v124 = vld [vmem:[%s103 + $0x4] sm:$0x7]
    %v125 = vld [vmem:[%s103 + $0x8] sm:$0x7]
    %v126 = vld [vmem:[%s103 + $0xc] sm:$0x7]
    %v127 = vld [vmem:[%s103] sm:$0x6]
    %v128 = vld [vmem:[%s103 + $0x4] sm:$0x6]
    %v129 = vld [vmem:[%s103 + $0x8] sm:$0x6]
    %v130 = vld [vmem:[%s103 + $0xc] sm:$0x6]
    %v135 = vunpack.c.l.b16 %v123
    %v136 = vunpack.c.l.b16 %v124
    %v137 = vunpack.c.l.b16 %v125
    %v138 = vunpack.c.l.b16 %v126
    %v139 = vpack.c.b16 %v135, %v135
    %v140 = vpack.c.b16 %v136, %v136
    %v141 = vpack.c.b16 %v137, %v137
    %v142 = vpack.c.b16 %v138, %v138
    %v144 = vshrl.u32 %v139, 16
    %v146 = vshll.u32 %v139, 16
    %v148 = vrot.slane %v146, 1
    %v149 = vor.u32 %v144, %v148
    %v151 = vshrl.u32 %v140, 16
    %v153 = vshll.u32 %v140, 16
    %v155 = vrot.slane %v153, 1
    %v156 = vor.u32 %v151, %v155
    %v158 = vshrl.u32 %v141, 16
    %v160 = vshll.u32 %v141, 16
    %v162 = vrot.slane %v160, 1
    %v163 = vor.u32 %v158, %v162
    %v165 = vshrl.u32 %v142, 16
    %v167 = vshll.u32 %v142, 16
    %v169 = vrot.slane %v167, 1
    %v170 = vor.u32 %v165, %v169
    %171 = vrot.lane.b32.xlu0 %v149, 2
    %v172 = vpop.permute.xlu0 %171
    %173 = vrot.lane.b32.xlu0 %v156, 2
    %v174 = vpop.permute.xlu0 %173
    %175 = vrot.lane.b32.xlu0 %v163, 2
    %v176 = vpop.permute.xlu0 %175
    %177 = vrot.lane.b32.xlu0 %v170, 2
    %v178 = vpop.permute.xlu0 %177
    %v183 = vunpack.c.l.b16 %v127
    %v184 = vunpack.c.l.b16 %v128
    %v185 = vunpack.c.l.b16 %v129
    %v186 = vunpack.c.l.b16 %v130
    %v187 = vpack.c.b16 %v183, %v183
    %v188 = vpack.c.b16 %v184, %v184
    %v189 = vpack.c.b16 %v185, %v185
    %v190 = vpack.c.b16 %v186, %v186
    %v191 = vrot.slane %v187, 1
    %v192 = vrot.slane %v188, 1
    %v193 = vrot.slane %v189, 1
    %v194 = vrot.slane %v190, 1
    %195 = vrot.lane.b32.xlu0 %v191, 4
    %v196 = vpop.permute.xlu0 %195
    %197 = vrot.lane.b32.xlu0 %v192, 4
    %v198 = vpop.permute.xlu0 %197
    %199 = vrot.lane.b32.xlu0 %v193, 4
    %v200 = vpop.permute.xlu0 %199
    %201 = vrot.lane.b32.xlu0 %v194, 4
    %v202 = vpop.permute.xlu0 %201
    %vm203 = vcmask 15360
    %v206 = vsel %vm203, %v119, %v172
    %v209 = vsel %vm203, %v120, %v174
    %v212 = vsel %vm203, %v121, %v176
    %v215 = vsel %vm203, %v122, %v178
    %vm216 = vcmask 31744
    %v218 = vsel %vm216, %v206, %v196
    %v221 = vsel %vm216, %v209, %v198
    %v224 = vsel %vm216, %v212, %v200
    %v227 = vsel %vm216, %v215, %v202
    %vm229 = vcmask 41984
    %230 = vst.msk [vmem:[#allocation3] sm:$0x3] %vm229, %v218
    %231 = vst.msk [vmem:[#allocation3 + $0x2] sm:$0x3] %vm229, %v221
    %232 = vst.msk [vmem:[#allocation3 + $0x4] sm:$0x3] %vm229, %v224
    %233 = vst.msk [vmem:[#allocation3 + $0x6] sm:$0x3] %vm229, %v227
    // Predicated region
    $region6: #{tpu_custom_call.1} parent=1 // pred_check
      _
    $region7: #{tpu_custom_call.1} parent=1 // pred_check_branch
      %235 = sbr.rel (0) target = $region9
    $region8: #{tpu_custom_call.1} parent=1 // pred_region
      %237 = vsyncadd [#allocation4], 0
      %s238 = sshll.u32 [#allocation3], 4
      %s239 = int_to_ptr.vmem [resolvable:$true] %s238
      %s240 = sshll.u32 %s1, 4
      %s241 = int_to_ptr.hbm [resolvable:$true] %s240
      %246 = dma.vmem_to_hbm [thread:$0]  %s239, 128, %s241, [#allocation4], 32, 32, 2
    $region9: #{tpu_custom_call.1} parent=1 // pred_fallthru
      _
    // Predicated region
    $region10: #{tpu_custom_call.1} parent=1 // pred_check
      _
    $region11: #{tpu_custom_call.1} parent=1 // pred_check_branch
      %248 = sbr.rel (0) target = $region13
    $region12: #{tpu_custom_call.1} parent=1 // pred_region
      %250 = dma.done [#allocation4], 128
    $region13: #{tpu_custom_call.1} parent=1 // pred_fallthru
      _
    %251 = vsyncpa [#allocation4], 1

// kernel: tpu_custom_call.1
$region0: #{tpu_custom_call.1}
  #allocation0 [shape = 'u32[]', space=smem, size = 0x4, offset = 0x4, fixed_abs, tag = 'smem constant byte address 0x4 - core index']
  #allocation1 [shape = 'u32[72,128]{1,0:T(1,128)}', space=vmem, size = 0x9000, scoped, tag = 'internal scratch']
  %s0 = inlined_call_operand.hbm [shape: f32[8,128], index: 0, kind: input, shape index: {}]
  %s1 = inlined_call_operand.hbm [shape: f32[8,128], index: 1, kind: input, shape index: {}]
  %s2 = inlined_call_operand.hbm [shape: f32[8,128], index: 2, kind: output, shape index: {}]
  %s3 = sld [smem:[#allocation0]]
  $region49: #{tpu_custom_call.1} parent=0
    _
  %s5 = ssub.s32 1, %s3
  %s6 = scalar_select 0, %s5, %s3
  $region1: #{tpu_custom_call.1} parent=0
    #allocation2 [shape = 'u8[4096]{0}', space=vmem, size = 0x1000, scoped, tag = 'input window, operand 0, single buffered']
    #allocation3 [shape = 's32[2]{0}', space=sflag, size = 0x8, scoped, tag = 'scoped memory for tpu_custom_call.1']
    #allocation4 [shape = 's32[2]{0}', space=sflag, size = 0x8, scoped, tag = 'scoped memory for tpu_custom_call.1']
    #allocation5 [shape = 'u8[4096]{0}', space=vmem, size = 0x1000, scoped, tag = 'input window, operand 1, single buffered']
    #allocation6 [shape = 's32[1]{0}', space=sflag, size = 0x4, scoped, tag = 'scoped memory for tpu_custom_call.1']
    #allocation7 [shape = 'u8[4096]{0}', space=vmem, size = 0x1000, scoped, tag = 'output window, operand 0, single buffered']
    %7 = vsyncpa [#allocation3], 0
    %8 = vsyncpa [#allocation6], 0
    %9 = vsyncpa [#allocation4], 0
    loop: start=0, step=1, limit=4
    $region2: #{tpu_custom_call.1} parent=1 // loop_pre_header
      _
    $region3: #{tpu_custom_call.1} parent=1 // loop_header
      %s11 = sphi 0, %s15
      %p12 = scmp.ge.s32.totalorder %s11, 4
      %s19 = sphi 0, %s19
      %s21 = sphi 0, %s19
      %s22 = sphi 0, %s21
      %s36 = sphi 0, %s22
      %s40 = sphi 0, %s40
      %s42 = sphi 0, %s40
      %s43 = sphi 0, %s42
      %s57 = sphi 0, %s43
      %s61 = sphi 0, %s61
      %s63 = sphi 0, %s61
      %s64 = sphi 0, %s63
      %s78 = sphi 0, %s64
    $region4: #{tpu_custom_call.1} parent=1 // loop_header_branch
      %14 = sbr.rel (%p12) target = $region8
    $region5: #{tpu_custom_call.1} parent=1 // loop_body
      %s16 = ssub.s32 %s11, 1
      %s17 = ssub.s32 %s11, 2
      %s18 = sadd.s32 %s11, 1
      %s20 = sadd.s32 %s19, 1
      %p23 = scmp.eq.s32.totalorder %s11, 1
      %p24 = scmp.ne.s32.totalorder %s19, %s21
      %p25 = scmp.eq.s32.totalorder %s11, 0
      %p26 = por %p24, %p25
      %p27 = scmp.ne.s32.totalorder %s19, %s21
      %p28 = scmp.eq.s32.totalorder %s16, 1
      %p29 = por %p27, %p28
      %p30 = scmp.ne.s32.totalorder %s21, %s22
      %p31 = scmp.eq.s32.totalorder %s16, 0
      %p32 = por %p30, %p31
      %p33 = scmp.ne.s32.totalorder %s21, %s22
      %p34 = scmp.eq.s32.totalorder %s17, 1
      %p35 = por %p33, %p34
      %p37 = scmp.ne.s32.totalorder %s22, %s36
      %p38 = scmp.eq.s32.totalorder %s17, 0
      %p39 = por %p37, %p38
      %s41 = sadd.s32 %s40, 1
      %p44 = scmp.eq.s32.totalorder %s11, 1
      %p45 = scmp.ne.s32.totalorder %s40, %s42
      %p46 = scmp.eq.s32.totalorder %s11, 0
      %p47 = por %p45, %p46
      %p48 = scmp.ne.s32.totalorder %s40, %s42
      %p49 = scmp.eq.s32.totalorder %s16, 1
      %p50 = por %p48, %p49
      %p51 = scmp.ne.s32.totalorder %s42, %s43
      %p52 = scmp.eq.s32.totalorder %s16, 0
      %p53 = por %p51, %p52
      %p54 = scmp.ne.s32.totalorder %s42, %s43
      %p55 = scmp.eq.s32.totalorder %s17, 1
      %p56 = por %p54, %p55
      %p58 = scmp.ne.s32.totalorder %s43, %s57
      %p59 = scmp.eq.s32.totalorder %s17, 0
      %p60 = por %p58, %p59
      %s62 = sadd.s32 %s61, 1
      %p65 = scmp.eq.s32.totalorder %s11, 1
      %p66 = scmp.ne.s32.totalorder %s61, %s63
      %p67 = scmp.eq.s32.totalorder %s11, 0
      %p68 = por %p66, %p67
      %p69 = scmp.ne.s32.totalorder %s61, %s63
      %p70 = scmp.eq.s32.totalorder %s16, 1
      %p71 = por %p69, %p70
      %p72 = scmp.ne.s32.totalorder %s63, %s64
      %p73 = scmp.eq.s32.totalorder %s16, 0
      %p74 = por %p72, %p73
      %p75 = scmp.ne.s32.totalorder %s63, %s64
      %p76 = scmp.eq.s32.totalorder %s17, 1
      %p77 = por %p75, %p76
      %p79 = scmp.ne.s32.totalorder %s64, %s78
      %p80 = scmp.eq.s32.totalorder %s17, 0
      %p81 = por %p79, %p80
      %p82 = scmp.le.s32.totalorder 1, %s11
      %p83 = scmp.lt.s32.totalorder %s11, 3
      %p84 = pnand %p82, %p83
      %p85 = pneg %p84
      // Predicated region
      $region9: #{tpu_custom_call.1} parent=5 // pred_check
        _
      $region10: #{tpu_custom_call.1} parent=5 // pred_check_branch
        %87 = sbr.rel (%p84) target = $region12
      $region11: #{tpu_custom_call.1} parent=5 // pred_region
        %s88 = ssub.s32 %s11, 1
        // Predicated region
        $region13: #{tpu_custom_call.1} parent=11 // pred_check
          %p89 = pneg %p32
        $region14: #{tpu_custom_call.1} parent=11 // pred_check_branch
          %91 = sbr.rel (%p89) target = $region16
        $region15: #{tpu_custom_call.1} parent=11 // pred_region
          %93 = vsyncadd [#allocation3], 0
          %s95 = sshll.u32 %s0, 4
          %s96 = int_to_ptr.hbm [resolvable:$true] %s95
          %s97 = sshll.u32 [#allocation2], 4
          %s98 = int_to_ptr.vmem [resolvable:$true] %s97
          %100 = dma.hbm_to_vmem [thread:$0]  %s96, 128, %s98, [#allocation3]
        $region16: #{tpu_custom_call.1} parent=11 // pred_fallthru
          _
        // Predicated region
        $region17: #{tpu_custom_call.1} parent=11 // pred_check
          %p101 = pneg %p53
        $region18: #{tpu_custom_call.1} parent=11 // pred_check_branch
          %103 = sbr.rel (%p101) target = $region20
        $region19: #{tpu_custom_call.1} parent=11 // pred_region
          %105 = vsyncadd [#allocation6], 0
          %s107 = sshll.u32 %s1, 4
          %s108 = int_to_ptr.hbm [resolvable:$true] %s107
          %s109 = sshll.u32 [#allocation5], 4
          %s110 = int_to_ptr.vmem [resolvable:$true] %s109
          %112 = dma.hbm_to_vmem [thread:$0]  %s108, 128, %s110, [#allocation6]
        $region20: #{tpu_custom_call.1} parent=11 // pred_fallthru
          _
      $region12: #{tpu_custom_call.1} parent=5 // pred_fallthru
        _
      %p113 = scmp.lt.s32.totalorder %s11, 2
      // Predicated region
      $region21: #{tpu_custom_call.1} parent=5 // pred_check
        %p114 = pneg %p113
      $region22: #{tpu_custom_call.1} parent=5 // pred_check_branch
        %116 = sbr.rel (%p114) target = $region24
      $region23: #{tpu_custom_call.1} parent=5 // pred_region
        _
      $region24: #{tpu_custom_call.1} parent=5 // pred_fallthru
        _
      %p117 = scmp.le.s32.totalorder 1, %s11
      %p118 = scmp.lt.s32.totalorder %s11, 3
      %p119 = pnand %p117, %p118
      %p120 = pneg %p119
      // Predicated region
      $region25: #{tpu_custom_call.1} parent=5 // pred_check
        _
      $region26: #{tpu_custom_call.1} parent=5 // pred_check_branch
        %122 = sbr.rel (%p119) target = $region28
      $region27: #{tpu_custom_call.1} parent=5 // pred_region
        %s123 = ssub.s32 %s11, 1
        // Predicated region
        $region29: #{tpu_custom_call.1} parent=27 // pred_check
          %p124 = pneg %p32
        $region30: #{tpu_custom_call.1} parent=27 // pred_check_branch
          %126 = sbr.rel (%p124) target = $region32
        $region31: #{tpu_custom_call.1} parent=27 // pred_region
          %128 = dma.done [#allocation3], 128
        $region32: #{tpu_custom_call.1} parent=27 // pred_fallthru
          _
        // Predicated region
        $region33: #{tpu_custom_call.1} parent=27 // pred_check
          %p129 = pneg %p53
        $region34: #{tpu_custom_call.1} parent=27 // pred_check_branch
          %131 = sbr.rel (%p129) target = $region36
        $region35: #{tpu_custom_call.1} parent=27 // pred_region
          %133 = dma.done [#allocation6], 128
        $region36: #{tpu_custom_call.1} parent=27 // pred_fallthru
          _
        %p134 = pneg %p32
        %p135 = pneg %p29
        %p136 = pneg %p53
        %p137 = pneg %p50
        %p138 = pneg %p74
        %p139 = pneg %p71
        %v140 = vld [vmem:[#allocation5] sm:$0xff]
        %v141 = vld [vmem:[#allocation2] sm:$0xff]
        %v142 = vadd.f32 %v140, %v141
        %143 = vst [vmem:[#allocation7] sm:$0xff] %v142
        // Predicated region
        $region37: #{tpu_custom_call.1} parent=27 // pred_check
          %p144 = pneg %p71
        $region38: #{tpu_custom_call.1} parent=27 // pred_check_branch
          %146 = sbr.rel (%p144) target = $region40
        $region39: #{tpu_custom_call.1} parent=27 // pred_region
          %148 = vsyncadd [#allocation4], 0
          %s150 = sshll.u32 [#allocation7], 4
          %s151 = int_to_ptr.vmem [resolvable:$true] %s150
          %s152 = sshll.u32 %s2, 4
          %s153 = int_to_ptr.hbm [resolvable:$true] %s152
          %155 = dma.vmem_to_hbm [thread:$0]  %s151, 128, %s153, [#allocation4]
        $region40: #{tpu_custom_call.1} parent=27 // pred_fallthru
          _
        // Predicated region
        $region41: #{tpu_custom_call.1} parent=27 // pred_check
          %p156 = pneg %p71
        $region42: #{tpu_custom_call.1} parent=27 // pred_check_branch
          %158 = sbr.rel (%p156) target = $region44
        $region43: #{tpu_custom_call.1} parent=27 // pred_region
          %160 = dma.done [#allocation4], 128
        $region44: #{tpu_custom_call.1} parent=27 // pred_fallthru
          _
      $region28: #{tpu_custom_call.1} parent=5 // pred_fallthru
        _
      %p161 = scmp.le.s32.totalorder 2, %s11
      // Predicated region
      $region45: #{tpu_custom_call.1} parent=5 // pred_check
        %p162 = pneg %p161
      $region46: #{tpu_custom_call.1} parent=5 // pred_check_branch
        %164 = sbr.rel (%p162) target = $region48
      $region47: #{tpu_custom_call.1} parent=5 // pred_region
        %s165 = ssub.s32 %s11, 2
      $region48: #{tpu_custom_call.1} parent=5 // pred_fallthru
        _
    $region6: #{tpu_custom_call.1} parent=1 // loop_footer
      %s15 = sadd.s32 1, %s11
    $region7: #{tpu_custom_call.1} parent=1 // loop_footer_branch
      %10 = sbr.rel target = $region3
    $region8: #{tpu_custom_call.1} parent=1 // loop_exit
      _
    %166 = vsyncpa [#allocation3], 1
    %s167 = scalar_lea.sflag [#allocation3], 1
    %168 = vsyncpa %s167, 1
    %169 = vsyncpa [#allocation6], 1
    %170 = vsyncpa [#allocation4], 1
    %s171 = scalar_lea.sflag [#allocation4], 1
    %172 = vsyncpa %s171, 1

// kernel: tpu_custom_call.1
$region0: #{tpu_custom_call.1}
  #allocation0 [shape = 'u32[]', space=smem, size = 0x4, offset = 0x4, fixed_abs, tag = 'smem constant byte address 0x4 - core index']
  #allocation1 [shape = 'u32[72,128]{1,0:T(1,128)}', space=vmem, size = 0x9000, scoped, tag = 'internal scratch']
  #allocation2 [shape = 'f32[6,6,8]{2,1,0:T(8,128)}', space=vmem, size = 0x6000, scoped, tag = 'scratch operand']
  %s0 = inlined_call_operand.vmem [shape: bf16[2,4,4,16], index: 0, kind: input, shape index: {}]
  %s1 = inlined_call_operand.vmem [shape: bf16[16,8], index: 1, kind: input, shape index: {}]
  %s2 = inlined_call_operand.vmem [shape: f32[1,8], index: 2, kind: input, shape index: {}]
  %s3 = inlined_call_operand.hbm [shape: bf16[9,8,16], index: 3, kind: input, shape index: {}]
  %s4 = inlined_call_operand.vmem [shape: f32[1,16], index: 4, kind: input, shape index: {}]
  %s5 = inlined_call_operand.vmem [shape: bf16[16,8], index: 5, kind: input, shape index: {}]
  %s6 = inlined_call_operand.vmem [shape: f32[1,8], index: 6, kind: input, shape index: {}]
  %s7 = inlined_call_operand.hbm [shape: bf16[9,8,16], index: 7, kind: input, shape index: {}]
  %s8 = inlined_call_operand.vmem [shape: f32[1,16], index: 8, kind: input, shape index: {}]
  %s9 = inlined_call_operand.vmem [shape: bf16[16,8], index: 9, kind: input, shape index: {}]
  %s10 = inlined_call_operand.vmem [shape: f32[1,8], index: 10, kind: input, shape index: {}]
  %s11 = inlined_call_operand.vmem [shape: bf16[8,4], index: 11, kind: input, shape index: {}]
  %s12 = inlined_call_operand.vmem [shape: f32[1,4], index: 12, kind: input, shape index: {}]
  %s13 = inlined_call_operand.vmem [shape: bf16[4,4], index: 13, kind: input, shape index: {}]
  %s14 = inlined_call_operand.hbm [shape: bf16[2,4,4,8], index: 14, kind: output, shape index: {0}]
  %s15 = inlined_call_operand.hbm [shape: f32[2,4,4,4], index: 15, kind: output, shape index: {1}]
  %16 = xla_tuple %s14, %s15
  %s17 = sld [smem:[#allocation0]]
  $region105: #{tpu_custom_call.1} parent=0
    _
  %s19 = ssub.s32 1, %s17
  %s20 = scalar_select 0, %s19, %s17
  $region1: #{tpu_custom_call.1} parent=0
    #allocation3 [shape = 'u8[18432]{0}', space=vmem, size = 0x4800, scoped, tag = 'input window, operand 3, single buffered']
    #allocation4 [shape = 's32[2]{0}', space=sflag, size = 0x8, scoped, tag = 'scoped memory for tpu_custom_call.1']
    #allocation5 [shape = 's32[2]{0}', space=sflag, size = 0x8, scoped, tag = 'scoped memory for tpu_custom_call.1']
    #allocation6 [shape = 'u8[18432]{0}', space=vmem, size = 0x4800, scoped, tag = 'input window, operand 7, single buffered']
    #allocation7 [shape = 's32[1]{0}', space=sflag, size = 0x4, scoped, tag = 'scoped memory for tpu_custom_call.1']
    #allocation8 [shape = 'u8[8192]{0}', space=vmem, size = 0x2000, scoped, tag = 'output window, operand 0']
    #allocation9 [shape = 'u8[16384]{0}', space=vmem, size = 0x4000, scoped, tag = 'output window, operand 1']
    #allocation10 [shape = 's32[2]{0}', space=sflag, size = 0x8, scoped, tag = 'scoped memory for tpu_custom_call.1']
    %21 = vsyncpa [#allocation4], 0
    %22 = vsyncpa [#allocation7], 0
    %23 = vsyncpa [#allocation5], 0
    %s24 = scalar_lea.sflag [#allocation5], 1
    %25 = vsyncpa %s24, 0
    %26 = vsyncpa [#allocation10], 0
    %s27 = scalar_lea.sflag [#allocation10], 1
    %28 = vsyncpa %s27, 0
    loop: start=0, step=1, limit=4
    $region2: #{tpu_custom_call.1} parent=1 // loop_pre_header
      _
    $region3: #{tpu_custom_call.1} parent=1 // loop_header
      %s30 = sphi 0, %s34
      %p31 = scmp.ge.s32.totalorder %s30, 4
      %s40 = sphi 0, %s42
      %s43 = sphi 0, %s40
      %s44 = sphi 0, %s43
      %s60 = sphi 0, %s44
      %s64 = sphi 0, %s64
      %s66 = sphi 0, %s64
      %s67 = sphi 0, %s66
      %s81 = sphi 0, %s67
      %s85 = sphi 0, %s85
      %s87 = sphi 0, %s85
      %s88 = sphi 0, %s87
      %s102 = sphi 0, %s88
      %s106 = sphi 0, %s106
      %s108 = sphi 0, %s106
      %s109 = sphi 0, %s108
      %s123 = sphi 0, %s109
      %s127 = sphi 0, %s127
      %s129 = sphi 0, %s127
      %s130 = sphi 0, %s129
      %s144 = sphi 0, %s130
      %s148 = sphi 0, %s148
      %s150 = sphi 0, %s148
      %s151 = sphi 0, %s150
      %s165 = sphi 0, %s151
      %s169 = sphi 0, %s169
      %s171 = sphi 0, %s169
      %s172 = sphi 0, %s171
      %s186 = sphi 0, %s172
      %s190 = sphi 0, %s190
      %s192 = sphi 0, %s190
      %s193 = sphi 0, %s192
      %s207 = sphi 0, %s193
      %s211 = sphi 0, %s211
      %s213 = sphi 0, %s211
      %s214 = sphi 0, %s213
      %s228 = sphi 0, %s214
      %s232 = sphi 0, %s232
      %s234 = sphi 0, %s232
      %s235 = sphi 0, %s234
      %s249 = sphi 0, %s235
      %s253 = sphi 0, %s253
      %s255 = sphi 0, %s253
      %s256 = sphi 0, %s255
      %s270 = sphi 0, %s256
      %s274 = sphi 0, %s274
      %s276 = sphi 0, %s274
      %s277 = sphi 0, %s276
      %s291 = sphi 0, %s277
      %s295 = sphi 0, %s295
      %s297 = sphi 0, %s295
      %s298 = sphi 0, %s297
      %s312 = sphi 0, %s298
      %s316 = sphi 0, %s316
      %s318 = sphi 0, %s316
      %s319 = sphi 0, %s318
      %s333 = sphi 0, %s319
      %s339 = sphi 0, %s341
      %s342 = sphi 0, %s339
      %s343 = sphi 0, %s342
      %s359 = sphi 0, %s343
      %s365 = sphi 0, %s367
      %s368 = sphi 0, %s365
      %s369 = sphi 0, %s368
      %s385 = sphi 0, %s369
    $region4: #{tpu_custom_call.1} parent=1 // loop_header_branch
      %33 = sbr.rel (%p31) target = $region8
    $region5: #{tpu_custom_call.1} parent=1 // loop_body
      %s35 = ssub.s32 %s30, 1
      %s36 = ssub.s32 %s30, 2
      %s37 = sadd.s32 %s30, 1
      %s38 = ssub.s32 %s30, %s37
      %p39 = scmp.eq.s32.totalorder %s38, 0
      %s41 = sadd.s32 %s40, 1
      %s42 = scalar_select %p39, %s40, %s41
      %p45 = pneg %p39
      %p46 = scmp.eq.s32.totalorder %s30, 1
      %p47 = por %p45, %p46
      %p48 = scmp.ne.s32.totalorder %s40, %s43
      %p49 = scmp.eq.s32.totalorder %s30, 0
      %p50 = por %p48, %p49
      %p51 = scmp.ne.s32.totalorder %s40, %s43
      %p52 = scmp.eq.s32.totalorder %s35, 1
      %p53 = por %p51, %p52
      %p54 = scmp.ne.s32.totalorder %s43, %s44
      %p55 = scmp.eq.s32.totalorder %s35, 0
      %p56 = por %p54, %p55
      %p57 = scmp.ne.s32.totalorder %s43, %s44
      %p58 = scmp.eq.s32.totalorder %s36, 1
      %p59 = por %p57, %p58
      %p61 = scmp.ne.s32.totalorder %s44, %s60
      %p62 = scmp.eq.s32.totalorder %s36, 0
      %p63 = por %p61, %p62
      %s65 = sadd.s32 %s64, 1
      %p68 = scmp.eq.s32.totalorder %s30, 1
      %p69 = scmp.ne.s32.totalorder %s64, %s66
      %p70 = scmp.eq.s32.totalorder %s30, 0
      %p71 = por %p69, %p70
      %p72 = scmp.ne.s32.totalorder %s64, %s66
      %p73 = scmp.eq.s32.totalorder %s35, 1
      %p74 = por %p72, %p73
      %p75 = scmp.ne.s32.totalorder %s66, %s67
      %p76 = scmp.eq.s32.totalorder %s35, 0
      %p77 = por %p75, %p76
      %p78 = scmp.ne.s32.totalorder %s66, %s67
      %p79 = scmp.eq.s32.totalorder %s36, 1
      %p80 = por %p78, %p79
      %p82 = scmp.ne.s32.totalorder %s67, %s81
      %p83 = scmp.eq.s32.totalorder %s36, 0
      %p84 = por %p82, %p83
      %s86 = sadd.s32 %s85, 1
      %p89 = scmp.eq.s32.totalorder %s30, 1
      %p90 = scmp.ne.s32.totalorder %s85, %s87
      %p91 = scmp.eq.s32.totalorder %s30, 0
      %p92 = por %p90, %p91
      %p93 = scmp.ne.s32.totalorder %s85, %s87
      %p94 = scmp.eq.s32.totalorder %s35, 1
      %p95 = por %p93, %p94
      %p96 = scmp.ne.s32.totalorder %s87, %s88
      %p97 = scmp.eq.s32.totalorder %s35, 0
      %p98 = por %p96, %p97
      %p99 = scmp.ne.s32.totalorder %s87, %s88
      %p100 = scmp.eq.s32.totalorder %s36, 1
      %p101 = por %p99, %p100
      %p103 = scmp.ne.s32.totalorder %s88, %s102
      %p104 = scmp.eq.s32.totalorder %s36, 0
      %p105 = por %p103, %p104
      %s107 = sadd.s32 %s106, 1
      %p110 = scmp.eq.s32.totalorder %s30, 1
      %p111 = scmp.ne.s32.totalorder %s106, %s108
      %p112 = scmp.eq.s32.totalorder %s30, 0
      %p113 = por %p111, %p112
      %p114 = scmp.ne.s32.totalorder %s106, %s108
      %p115 = scmp.eq.s32.totalorder %s35, 1
      %p116 = por %p114, %p115
      %p117 = scmp.ne.s32.totalorder %s108, %s109
      %p118 = scmp.eq.s32.totalorder %s35, 0
      %p119 = por %p117, %p118
      %p120 = scmp.ne.s32.totalorder %s108, %s109
      %p121 = scmp.eq.s32.totalorder %s36, 1
      %p122 = por %p120, %p121
      %p124 = scmp.ne.s32.totalorder %s109, %s123
      %p125 = scmp.eq.s32.totalorder %s36, 0
      %p126 = por %p124, %p125
      %s128 = sadd.s32 %s127, 1
      %p131 = scmp.eq.s32.totalorder %s30, 1
      %p132 = scmp.ne.s32.totalorder %s127, %s129
      %p133 = scmp.eq.s32.totalorder %s30, 0
      %p134 = por %p132, %p133
      %p135 = scmp.ne.s32.totalorder %s127, %s129
      %p136 = scmp.eq.s32.totalorder %s35, 1
      %p137 = por %p135, %p136
      %p138 = scmp.ne.s32.totalorder %s129, %s130
      %p139 = scmp.eq.s32.totalorder %s35, 0
      %p140 = por %p138, %p139
      %p141 = scmp.ne.s32.totalorder %s129, %s130
      %p142 = scmp.eq.s32.totalorder %s36, 1
      %p143 = por %p141, %p142
      %p145 = scmp.ne.s32.totalorder %s130, %s144
      %p146 = scmp.eq.s32.totalorder %s36, 0
      %p147 = por %p145, %p146
      %s149 = sadd.s32 %s148, 1
      %p152 = scmp.eq.s32.totalorder %s30, 1
      %p153 = scmp.ne.s32.totalorder %s148, %s150
      %p154 = scmp.eq.s32.totalorder %s30, 0
      %p155 = por %p153, %p154
      %p156 = scmp.ne.s32.totalorder %s148, %s150
      %p157 = scmp.eq.s32.totalorder %s35, 1
      %p158 = por %p156, %p157
      %p159 = scmp.ne.s32.totalorder %s150, %s151
      %p160 = scmp.eq.s32.totalorder %s35, 0
      %p161 = por %p159, %p160
      %p162 = scmp.ne.s32.totalorder %s150, %s151
      %p163 = scmp.eq.s32.totalorder %s36, 1
      %p164 = por %p162, %p163
      %p166 = scmp.ne.s32.totalorder %s151, %s165
      %p167 = scmp.eq.s32.totalorder %s36, 0
      %p168 = por %p166, %p167
      %s170 = sadd.s32 %s169, 1
      %p173 = scmp.eq.s32.totalorder %s30, 1
      %p174 = scmp.ne.s32.totalorder %s169, %s171
      %p175 = scmp.eq.s32.totalorder %s30, 0
      %p176 = por %p174, %p175
      %p177 = scmp.ne.s32.totalorder %s169, %s171
      %p178 = scmp.eq.s32.totalorder %s35, 1
      %p179 = por %p177, %p178
      %p180 = scmp.ne.s32.totalorder %s171, %s172
      %p181 = scmp.eq.s32.totalorder %s35, 0
      %p182 = por %p180, %p181
      %p183 = scmp.ne.s32.totalorder %s171, %s172
      %p184 = scmp.eq.s32.totalorder %s36, 1
      %p185 = por %p183, %p184
      %p187 = scmp.ne.s32.totalorder %s172, %s186
      %p188 = scmp.eq.s32.totalorder %s36, 0
      %p189 = por %p187, %p188
      %s191 = sadd.s32 %s190, 1
      %p194 = scmp.eq.s32.totalorder %s30, 1
      %p195 = scmp.ne.s32.totalorder %s190, %s192
      %p196 = scmp.eq.s32.totalorder %s30, 0
      %p197 = por %p195, %p196
      %p198 = scmp.ne.s32.totalorder %s190, %s192
      %p199 = scmp.eq.s32.totalorder %s35, 1
      %p200 = por %p198, %p199
      %p201 = scmp.ne.s32.totalorder %s192, %s193
      %p202 = scmp.eq.s32.totalorder %s35, 0
      %p203 = por %p201, %p202
      %p204 = scmp.ne.s32.totalorder %s192, %s193
      %p205 = scmp.eq.s32.totalorder %s36, 1
      %p206 = por %p204, %p205
      %p208 = scmp.ne.s32.totalorder %s193, %s207
      %p209 = scmp.eq.s32.totalorder %s36, 0
      %p210 = por %p208, %p209
      %s212 = sadd.s32 %s211, 1
      %p215 = scmp.eq.s32.totalorder %s30, 1
      %p216 = scmp.ne.s32.totalorder %s211, %s213
      %p217 = scmp.eq.s32.totalorder %s30, 0
      %p218 = por %p216, %p217
      %p219 = scmp.ne.s32.totalorder %s211, %s213
      %p220 = scmp.eq.s32.totalorder %s35, 1
      %p221 = por %p219, %p220
      %p222 = scmp.ne.s32.totalorder %s213, %s214
      %p223 = scmp.eq.s32.totalorder %s35, 0
      %p224 = por %p222, %p223
      %p225 = scmp.ne.s32.totalorder %s213, %s214
      %p226 = scmp.eq.s32.totalorder %s36, 1
      %p227 = por %p225, %p226
      %p229 = scmp.ne.s32.totalorder %s214, %s228
      %p230 = scmp.eq.s32.totalorder %s36, 0
      %p231 = por %p229, %p230
      %s233 = sadd.s32 %s232, 1
      %p236 = scmp.eq.s32.totalorder %s30, 1
      %p237 = scmp.ne.s32.totalorder %s232, %s234
      %p238 = scmp.eq.s32.totalorder %s30, 0
      %p239 = por %p237, %p238
      %p240 = scmp.ne.s32.totalorder %s232, %s234
      %p241 = scmp.eq.s32.totalorder %s35, 1
      %p242 = por %p240, %p241
      %p243 = scmp.ne.s32.totalorder %s234, %s235
      %p244 = scmp.eq.s32.totalorder %s35, 0
      %p245 = por %p243, %p244
      %p246 = scmp.ne.s32.totalorder %s234, %s235
      %p247 = scmp.eq.s32.totalorder %s36, 1
      %p248 = por %p246, %p247
      %p250 = scmp.ne.s32.totalorder %s235, %s249
      %p251 = scmp.eq.s32.totalorder %s36, 0
      %p252 = por %p250, %p251
      %s254 = sadd.s32 %s253, 1
      %p257 = scmp.eq.s32.totalorder %s30, 1
      %p258 = scmp.ne.s32.totalorder %s253, %s255
      %p259 = scmp.eq.s32.totalorder %s30, 0
      %p260 = por %p258, %p259
      %p261 = scmp.ne.s32.totalorder %s253, %s255
      %p262 = scmp.eq.s32.totalorder %s35, 1
      %p263 = por %p261, %p262
      %p264 = scmp.ne.s32.totalorder %s255, %s256
      %p265 = scmp.eq.s32.totalorder %s35, 0
      %p266 = por %p264, %p265
      %p267 = scmp.ne.s32.totalorder %s255, %s256
      %p268 = scmp.eq.s32.totalorder %s36, 1
      %p269 = por %p267, %p268
      %p271 = scmp.ne.s32.totalorder %s256, %s270
      %p272 = scmp.eq.s32.totalorder %s36, 0
      %p273 = por %p271, %p272
      %s275 = sadd.s32 %s274, 1
      %p278 = scmp.eq.s32.totalorder %s30, 1
      %p279 = scmp.ne.s32.totalorder %s274, %s276
      %p280 = scmp.eq.s32.totalorder %s30, 0
      %p281 = por %p279, %p280
      %p282 = scmp.ne.s32.totalorder %s274, %s276
      %p283 = scmp.eq.s32.totalorder %s35, 1
      %p284 = por %p282, %p283
      %p285 = scmp.ne.s32.totalorder %s276, %s277
      %p286 = scmp.eq.s32.totalorder %s35, 0
      %p287 = por %p285, %p286
      %p288 = scmp.ne.s32.totalorder %s276, %s277
      %p289 = scmp.eq.s32.totalorder %s36, 1
      %p290 = por %p288, %p289
      %p292 = scmp.ne.s32.totalorder %s277, %s291
      %p293 = scmp.eq.s32.totalorder %s36, 0
      %p294 = por %p292, %p293
      %s296 = sadd.s32 %s295, 1
      %p299 = scmp.eq.s32.totalorder %s30, 1
      %p300 = scmp.ne.s32.totalorder %s295, %s297
      %p301 = scmp.eq.s32.totalorder %s30, 0
      %p302 = por %p300, %p301
      %p303 = scmp.ne.s32.totalorder %s295, %s297
      %p304 = scmp.eq.s32.totalorder %s35, 1
      %p305 = por %p303, %p304
      %p306 = scmp.ne.s32.totalorder %s297, %s298
      %p307 = scmp.eq.s32.totalorder %s35, 0
      %p308 = por %p306, %p307
      %p309 = scmp.ne.s32.totalorder %s297, %s298
      %p310 = scmp.eq.s32.totalorder %s36, 1
      %p311 = por %p309, %p310
      %p313 = scmp.ne.s32.totalorder %s298, %s312
      %p314 = scmp.eq.s32.totalorder %s36, 0
      %p315 = por %p313, %p314
      %s317 = sadd.s32 %s316, 1
      %p320 = scmp.eq.s32.totalorder %s30, 1
      %p321 = scmp.ne.s32.totalorder %s316, %s318
      %p322 = scmp.eq.s32.totalorder %s30, 0
      %p323 = por %p321, %p322
      %p324 = scmp.ne.s32.totalorder %s316, %s318
      %p325 = scmp.eq.s32.totalorder %s35, 1
      %p326 = por %p324, %p325
      %p327 = scmp.ne.s32.totalorder %s318, %s319
      %p328 = scmp.eq.s32.totalorder %s35, 0
      %p329 = por %p327, %p328
      %p330 = scmp.ne.s32.totalorder %s318, %s319
      %p331 = scmp.eq.s32.totalorder %s36, 1
      %p332 = por %p330, %p331
      %p334 = scmp.ne.s32.totalorder %s319, %s333
      %p335 = scmp.eq.s32.totalorder %s36, 0
      %p336 = por %p334, %p335
      %s337 = ssub.s32 %s30, %s37
      %p338 = scmp.eq.s32.totalorder %s337, 0
      %s340 = sadd.s32 %s339, 1
      %s341 = scalar_select %p338, %s339, %s340
      %p344 = pneg %p338
      %p345 = scmp.eq.s32.totalorder %s30, 1
      %p346 = por %p344, %p345
      %p347 = scmp.ne.s32.totalorder %s339, %s342
      %p348 = scmp.eq.s32.totalorder %s30, 0
      %p349 = por %p347, %p348
      %p350 = scmp.ne.s32.totalorder %s339, %s342
      %p351 = scmp.eq.s32.totalorder %s35, 1
      %p352 = por %p350, %p351
      %p353 = scmp.ne.s32.totalorder %s342, %s343
      %p354 = scmp.eq.s32.totalorder %s35, 0
      %p355 = por %p353, %p354
      %p356 = scmp.ne.s32.totalorder %s342, %s343
      %p357 = scmp.eq.s32.totalorder %s36, 1
      %p358 = por %p356, %p357
      %p360 = scmp.ne.s32.totalorder %s343, %s359
      %p361 = scmp.eq.s32.totalorder %s36, 0
      %p362 = por %p360, %p361
      %s363 = ssub.s32 %s30, %s37
      %p364 = scmp.eq.s32.totalorder %s363, 0
      %s366 = sadd.s32 %s365, 1
      %s367 = scalar_select %p364, %s365, %s366
      %p370 = pneg %p364
      %p371 = scmp.eq.s32.totalorder %s30, 1
      %p372 = por %p370, %p371
      %p373 = scmp.ne.s32.totalorder %s365, %s368
      %p374 = scmp.eq.s32.totalorder %s30, 0
      %p375 = por %p373, %p374
      %p376 = scmp.ne.s32.totalorder %s365, %s368
      %p377 = scmp.eq.s32.totalorder %s35, 1
      %p378 = por %p376, %p377
      %p379 = scmp.ne.s32.totalorder %s368, %s369
      %p380 = scmp.eq.s32.totalorder %s35, 0
      %p381 = por %p379, %p380
      %p382 = scmp.ne.s32.totalorder %s368, %s369
      %p383 = scmp.eq.s32.totalorder %s36, 1
      %p384 = por %p382, %p383
      %p386 = scmp.ne.s32.totalorder %s369, %s385
      %p387 = scmp.eq.s32.totalorder %s36, 0
      %p388 = por %p386, %p387
      %p389 = scmp.le.s32.totalorder 1, %s30
      %p390 = scmp.lt.s32.totalorder %s30, 3
      %p391 = pnand %p389, %p390
      %p392 = pneg %p391
      // Predicated region
      $region9: #{tpu_custom_call.1} parent=5 // pred_check
        _
      $region10: #{tpu_custom_call.1} parent=5 // pred_check_branch
        %394 = sbr.rel (%p391) target = $region12
      $region11: #{tpu_custom_call.1} parent=5 // pred_region
        %s395 = ssub.s32 %s30, 1
        // Predicated region
        $region13: #{tpu_custom_call.1} parent=11 // pred_check
          %p396 = pneg %p77
        $region14: #{tpu_custom_call.1} parent=11 // pred_check_branch
          %398 = sbr.rel (%p396) target = $region16
        $region15: #{tpu_custom_call.1} parent=11 // pred_region
          _
        $region16: #{tpu_custom_call.1} parent=11 // pred_fallthru
          _
        // Predicated region
        $region17: #{tpu_custom_call.1} parent=11 // pred_check
          %p399 = pneg %p98
        $region18: #{tpu_custom_call.1} parent=11 // pred_check_branch
          %401 = sbr.rel (%p399) target = $region20
        $region19: #{tpu_custom_call.1} parent=11 // pred_region
          _
        $region20: #{tpu_custom_call.1} parent=11 // pred_fallthru
          _
        // Predicated region
        $region21: #{tpu_custom_call.1} parent=11 // pred_check
          %p402 = pneg %p119
        $region22: #{tpu_custom_call.1} parent=11 // pred_check_branch
          %404 = sbr.rel (%p402) target = $region24
        $region23: #{tpu_custom_call.1} parent=11 // pred_region
          %406 = vsyncadd [#allocation4], 0
          %s407 = sshll.u32 %s3, 4
          %s408 = int_to_ptr.hbm [resolvable:$true] %s407
          %s409 = sshll.u32 [#allocation3], 4
          %s410 = int_to_ptr.vmem [resolvable:$true] %s409
          %415 = dma.hbm_to_vmem [thread:$0]  %s408, 576, %s410, [#allocation4], 64, 64, 4
        $region24: #{tpu_custom_call.1} parent=11 // pred_fallthru
          _
        // Predicated region
        $region25: #{tpu_custom_call.1} parent=11 // pred_check
          %p416 = pneg %p140
        $region26: #{tpu_custom_call.1} parent=11 // pred_check_branch
          %418 = sbr.rel (%p416) target = $region28
        $region27: #{tpu_custom_call.1} parent=11 // pred_region
          _
        $region28: #{tpu_custom_call.1} parent=11 // pred_fallthru
          _
        // Predicated region
        $region29: #{tpu_custom_call.1} parent=11 // pred_check
          %p419 = pneg %p161
        $region30: #{tpu_custom_call.1} parent=11 // pred_check_branch
          %421 = sbr.rel (%p419) target = $region32
        $region31: #{tpu_custom_call.1} parent=11 // pred_region
          _
        $region32: #{tpu_custom_call.1} parent=11 // pred_fallthru
          _
        // Predicated region
        $region33: #{tpu_custom_call.1} parent=11 // pred_check
          %p422 = pneg %p182
        $region34: #{tpu_custom_call.1} parent=11 // pred_check_branch
          %424 = sbr.rel (%p422) target = $region36
        $region35: #{tpu_custom_call.1} parent=11 // pred_region
          _
        $region36: #{tpu_custom_call.1} parent=11 // pred_fallthru
          _
        // Predicated region
        $region37: #{tpu_custom_call.1} parent=11 // pred_check
          %p425 = pneg %p203
        $region38: #{tpu_custom_call.1} parent=11 // pred_check_branch
          %427 = sbr.rel (%p425) target = $region40
        $region39: #{tpu_custom_call.1} parent=11 // pred_region
          %429 = vsyncadd [#allocation7], 0
          %s430 = sshll.u32 %s7, 4
          %s431 = int_to_ptr.hbm [resolvable:$true] %s430
          %s432 = sshll.u32 [#allocation6], 4
          %s433 = int_to_ptr.vmem [resolvable:$true] %s432
          %438 = dma.hbm_to_vmem [thread:$0]  %s431, 576, %s433, [#allocation7], 64, 64, 4
        $region40: #{tpu_custom_call.1} parent=11 // pred_fallthru
          _
        // Predicated region
        $region41: #{tpu_custom_call.1} parent=11 // pred_check
          %p439 = pneg %p224
        $region42: #{tpu_custom_call.1} parent=11 // pred_check_branch
          %441 = sbr.rel (%p439) target = $region44
        $region43: #{tpu_custom_call.1} parent=11 // pred_region
          _
        $region44: #{tpu_custom_call.1} parent=11 // pred_fallthru
          _
        // Predicated region
        $region45: #{tpu_custom_call.1} parent=11 // pred_check
          %p442 = pneg %p245
        $region46: #{tpu_custom_call.1} parent=11 // pred_check_branch
          %444 = sbr.rel (%p442) target = $region48
        $region47: #{tpu_custom_call.1} parent=11 // pred_region
          _
        $region48: #{tpu_custom_call.1} parent=11 // pred_fallthru
          _
        // Predicated region
        $region49: #{tpu_custom_call.1} parent=11 // pred_check
          %p445 = pneg %p266
        $region50: #{tpu_custom_call.1} parent=11 // pred_check_branch
          %447 = sbr.rel (%p445) target = $region52
        $region51: #{tpu_custom_call.1} parent=11 // pred_region
          _
        $region52: #{tpu_custom_call.1} parent=11 // pred_fallthru
          _
        // Predicated region
        $region53: #{tpu_custom_call.1} parent=11 // pred_check
          %p448 = pneg %p287
        $region54: #{tpu_custom_call.1} parent=11 // pred_check_branch
          %450 = sbr.rel (%p448) target = $region56
        $region55: #{tpu_custom_call.1} parent=11 // pred_region
          _
        $region56: #{tpu_custom_call.1} parent=11 // pred_fallthru
          _
        // Predicated region
        $region57: #{tpu_custom_call.1} parent=11 // pred_check
          %p451 = pneg %p308
        $region58: #{tpu_custom_call.1} parent=11 // pred_check_branch
          %453 = sbr.rel (%p451) target = $region60
        $region59: #{tpu_custom_call.1} parent=11 // pred_region
          _
        $region60: #{tpu_custom_call.1} parent=11 // pred_fallthru
          _
        // Predicated region
        $region61: #{tpu_custom_call.1} parent=11 // pred_check
          %p454 = pneg %p329
        $region62: #{tpu_custom_call.1} parent=11 // pred_check_branch
          %456 = sbr.rel (%p454) target = $region64
        $region63: #{tpu_custom_call.1} parent=11 // pred_region
          _
        $region64: #{tpu_custom_call.1} parent=11 // pred_fallthru
          _
      $region12: #{tpu_custom_call.1} parent=5 // pred_fallthru
        _
      %p457 = scmp.lt.s32.totalorder %s30, 2
      // Predicated region
      $region65: #{tpu_custom_call.1} parent=5 // pred_check
        %p458 = pneg %p457
      $region66: #{tpu_custom_call.1} parent=5 // pred_check_branch
        %460 = sbr.rel (%p458) target = $region68
      $region67: #{tpu_custom_call.1} parent=5 // pred_region
        // Predicated region
        $region69: #{tpu_custom_call.1} parent=67 // pred_check
          %p461 = pneg %p50
        $region70: #{tpu_custom_call.1} parent=67 // pred_check_branch
          %463 = sbr.rel (%p461) target = $region72
        $region71: #{tpu_custom_call.1} parent=67 // pred_region
          %p464 = scmp.lt.s32.totalorder %s30, 1
          %s465 = scalar_select %p464, %s30, 1
          %s466 = smul.addr %s465, 4
          %s467 = smul.addr %s466, 2
          %s468 = scalar_lea.vmem %s0, %s467
        $region72: #{tpu_custom_call.1} parent=67 // pred_fallthru
          _
      $region68: #{tpu_custom_call.1} parent=5 // pred_fallthru
        _
      %p469 = scmp.le.s32.totalorder 1, %s30
      %p470 = scmp.lt.s32.totalorder %s30, 3
      %p471 = pnand %p469, %p470
      %p472 = pneg %p471
      // Predicated region
      $region73: #{tpu_custom_call.1} parent=5 // pred_check
        _
      $region74: #{tpu_custom_call.1} parent=5 // pred_check_branch
        %474 = sbr.rel (%p471) target = $region76
      $region75: #{tpu_custom_call.1} parent=5 // pred_region
        %s475 = ssub.s32 %s30, 1
        // Predicated region
        $region77: #{tpu_custom_call.1} parent=75 // pred_check
          %p476 = pneg %p119
        $region78: #{tpu_custom_call.1} parent=75 // pred_check_branch
          %478 = sbr.rel (%p476) target = $region80
        $region79: #{tpu_custom_call.1} parent=75 // pred_region
          %480 = dma.done [#allocation4], 576
        $region80: #{tpu_custom_call.1} parent=75 // pred_fallthru
          _
        // Predicated region
        $region81: #{tpu_custom_call.1} parent=75 // pred_check
          %p481 = pneg %p203
        $region82: #{tpu_custom_call.1} parent=75 // pred_check_branch
          %483 = sbr.rel (%p481) target = $region84
        $region83: #{tpu_custom_call.1} parent=75 // pred_region
          %485 = dma.done [#allocation7], 576
        $region84: #{tpu_custom_call.1} parent=75 // pred_fallthru
          _
        %p486 = scmp.lt.s32.totalorder %s35, 1
        %s487 = scalar_select %p486, %s35, 1
        %s488 = smul.addr %s487, 4
        %s489 = smul.addr %s488, 2
        %s490 = scalar_lea.vmem %s0, %s489
        %p491 = pneg %p56
        %p492 = pneg %p53
        %p493 = pneg %p77
        %p494 = pneg %p74
        %p495 = pneg %p98
        %p496 = pneg %p95
        %p497 = pneg %p119
        %p498 = pneg %p116
        %p499 = pneg %p140
        %p500 = pneg %p137
        %p501 = pneg %p161
        %p502 = pneg %p158
        %p503 = pneg %p182
        %p504 = pneg %p179
        %p505 = pneg %p203
        %p506 = pneg %p200
        %p507 = pneg %p224
        %p508 = pneg %p221
        %p509 = pneg %p245
        %p510 = pneg %p242
        %p511 = pneg %p266
        %p512 = pneg %p263
        %p513 = pneg %p287
        %p514 = pneg %p284
        %p515 = pneg %p308
        %p516 = pneg %p305
        %p517 = pneg %p329
        %p518 = pneg %p326
        %p519 = pneg %p355
        %p520 = pneg %p352
        %s521 = sand.u32 %s342, 1
        %s522 = scalar_lea.sflag [#allocation5], %s521
        %s523 = sand.u32 %s342, 1
        %s524 = smul.addr %s523, 8
        %s525 = scalar_lea.vmem [#allocation8], %s524
        %p526 = pneg %p381
        %p527 = pneg %p378
        %s528 = sand.u32 %s368, 1
        %s529 = scalar_lea.sflag [#allocation10], %s528
        %s530 = sand.u32 %s368, 1
        %s531 = smul.addr %s530, 16
        %s532 = scalar_lea.vmem [#allocation9], %s531
        %p533 = scmp.lt.s32.totalorder %s35, 1
        %s534 = scalar_select %p533, %s35, 1
        %s535 = smul.addr %s534, 4
        %s536 = smul.addr %s535, 2
        %s537 = scalar_lea.vmem %s0, %s536
        %vm539 = vcmask 62464
        %540 = vst.msk [vmem:[#allocation2] sm:$0x3f] %vm539, 0.0
        %s541 = scalar_lea.vmem [#allocation2], 40
        %542 = vst.msk [vmem:[%s541] sm:$0x3f] %vm539, 0.0
        %vm543 = vcmask 57344
        %544 = vst.msk [vmem:[#allocation2] sm:$0x1] %vm543, 0.0
        %545 = vst.msk [vmem:[#allocation2 + $0x8] sm:$0x1] %vm543, 0.0
        %546 = vst.msk [vmem:[#allocation2 + $0x10] sm:$0x1] %vm543, 0.0
        %547 = vst.msk [vmem:[#allocation2 + $0x18] sm:$0x1] %vm543, 0.0
        %548 = vst.msk [vmem:[#allocation2 + $0x20] sm:$0x1] %vm543, 0.0
        %549 = vst.msk [vmem:[#allocation2 + $0x28] sm:$0x1] %vm543, 0.0
        %550 = vst.msk [vmem:[#allocation2 + $0x5] sm:$0x1] %vm543, 0.0
        %551 = vst.msk [vmem:[#allocation2 + $0xd] sm:$0x1] %vm543, 0.0
        %552 = vst.msk [vmem:[#allocation2 + $0x15] sm:$0x1] %vm543, 0.0
        %553 = vst.msk [vmem:[#allocation2 + $0x1d] sm:$0x1] %vm543, 0.0
        %554 = vst.msk [vmem:[#allocation2 + $0x25] sm:$0x1] %vm543, 0.0
        %555 = vst.msk [vmem:[#allocation2 + $0x2d] sm:$0x1] %vm543, 0.0
        %v556 = vld [vmem:[%s537] sm:$0x3]
        %v557 = vld [vmem:[%s537 + $0x2] sm:$0x3]
        %v558 = vld [vmem:[%s537 + $0x4] sm:$0x3]
        %v559 = vld [vmem:[%s537 + $0x6] sm:$0x3]
        %v560 = vld [vmem:[%s1] sm:$0xf]
        %v561 = vld [vmem:[%s1 + $0x4] sm:$0xf]
        %v562 = vld [vmem:[%s2] sm:$0x1]
        %v564 = vperm.slane %v562, 0
        %567 = vst [vmem:[#allocation1] ss:$4 sm:$0xff] %v556
        %s569 = scalar_lea.vmem [#allocation1], 1
        %570 = vst [vmem:[%s569] ss:$4 sm:$0xff] %v557
        %s572 = scalar_lea.vmem [#allocation1], 2
        %573 = vst [vmem:[%s572] ss:$4 sm:$0xff] %v558
        %s575 = scalar_lea.vmem [#allocation1], 3
        %576 = vst [vmem:[%s575] ss:$4 sm:$0xff] %v559
        %v577 = vld.sshfl [vmem:[#allocation1] sm:$0xff pattern:$0x73625140]
        %v580 = vunpack.c.l.b16 %v560
        %v581 = vunpack.c.l.b16 %v561
        %v582 = vpack.c.b16 %v581, %v580
        %vm584 = vcmask 130048
        %v585 = vsel %vm584, %v577, 0
        %587 = vmatpush.bf16.msra.mxu0 0
        %588 = vmatpush.bf16.msra.mxu0 0
        %589 = vmatpush.bf16.msra.mxu0 0
        %590 = vmatpush.bf16.msra.mxu0 0
        %591 = vmatpush.bf16.msra.mxu0 0
        %592 = vmatpush.bf16.msra.mxu0 0
        %593 = vmatpush.bf16.msra.mxu0 0
        %594 = vmatpush.bf16.msra.mxu0 %v582
        %595 = vmatmul.bf16.gmra.mxu0 %v585
        %v596 = vpop.f32.mrf.mxu0
        %v597 = vadd.f32 %v564, %v596
        %v598 = vpop.f32.mrf.mxu0
        %v599 = vadd.f32 %v564, %v598
        %600 = vdwg.mxu0
        %v601 = vmul.f32 %v597, 0.1
        %v602 = vmul.f32 %v599, 0.1
        %v603 = vmax.f32 %v597, %v601
        %v604 = vmax.f32 %v599, %v602
        %v607 = vrot.slane %v603, 4
        %v608 = vrot.slane %v604, 4
        %v611 = vpack.c.bf16 %v603, %v603
        %v612 = vpack.c.bf16 %v607, %v607
        %v613 = vpack.c.bf16 %v604, %v604
        %v614 = vpack.c.bf16 %v608, %v608
        %v615 = vunpack.c.l.bf16 %v611
        %v616 = vunpack.c.l.bf16 %v612
        %v617 = vunpack.c.l.bf16 %v613
        %v618 = vunpack.c.l.bf16 %v614
        %s619 = scalar_lea.vmem [#allocation2], 8
        %vm620 = vcmask 60416
        %621 = vst.msk [vmem:[%s619 + $0x1] sm:$0xf] %vm620, %v615
        %622 = vst.msk [vmem:[%s619 + $0x9] sm:$0xf] %vm620, %v616
        %623 = vst.msk [vmem:[%s619 + $0x11] sm:$0xf] %vm620, %v617
        %624 = vst.msk [vmem:[%s619 + $0x19] sm:$0xf] %vm620, %v618
        %v625 = vld [vmem:[#allocation2] sm:$0xf]
        %v626 = vld [vmem:[#allocation2 + $0x8] sm:$0xf]
        %v627 = vld [vmem:[#allocation2 + $0x10] sm:$0xf]
        %v628 = vld [vmem:[#allocation2 + $0x18] sm:$0xf]
        %v629 = vpack.c.bf16 %v625, %v625
        %v630 = vpack.c.bf16 %v626, %v626
        %v631 = vpack.c.bf16 %v627, %v627
        %v632 = vpack.c.bf16 %v628, %v628
        %v633 = vld [vmem:[#allocation3] sm:$0xf]
        %v634 = vld [vmem:[#allocation2 + $0x1] sm:$0xf]
        %v635 = vld [vmem:[#allocation2 + $0x9] sm:$0xf]
        %v636 = vld [vmem:[#allocation2 + $0x11] sm:$0xf]
        %v637 = vld [vmem:[#allocation2 + $0x19] sm:$0xf]
        %v638 = vpack.c.bf16 %v634, %v634
        %v639 = vpack.c.bf16 %v635, %v635
        %v640 = vpack.c.bf16 %v636, %v636
        %v641 = vpack.c.bf16 %v637, %v637
        %s642 = scalar_lea.vmem [#allocation3], 4
        %v643 = vld [vmem:[%s642] sm:$0xf]
        %645 = vst [vmem:[#allocation1] ss:$4 sm:$0xff] %v638
        %s647 = scalar_lea.vmem [#allocation1], 1
        %648 = vst [vmem:[%s647] ss:$4 sm:$0xff] %v639
        %s650 = scalar_lea.vmem [#allocation1], 2
        %651 = vst [vmem:[%s650] ss:$4 sm:$0xff] %v640
        %s653 = scalar_lea.vmem [#allocation1], 3
        %654 = vst [vmem:[%s653] ss:$4 sm:$0xff] %v641
        %v655 = vld.sshfl [vmem:[#allocation1] sm:$0xff pattern:$0x73625140]
        %vm656 = vcmask 64512
        %v657 = vsel %vm656, %v655, 0
        %vm659 = vcmask 1043456
        %v661 = vsel %vm659, %v643, 0
        %663 = vmatpush.bf16.msra.mxu0 0
        %664 = vmatpush.bf16.msra.mxu0 0
        %665 = vmatpush.bf16.msra.mxu0 0
        %666 = vmatpush.bf16.msra.mxu0 0
        %667 = vmatpush.bf16.msra.mxu0 0
        %668 = vmatpush.bf16.msra.mxu0 0
        %669 = vmatpush.bf16.msra.mxu0 0
        %670 = vmatpush.bf16.msra.mxu0 %v661
        %671 = vmatmul.bf16.gmra.mxu0 %v657
        %v672 = vpop.f32.mrf.mxu0
        %v673 = vadd.f32 0.0, %v672
        %v674 = vpop.f32.mrf.mxu0
        %v675 = vadd.f32 0.0, %v674
        %676 = vdwg.mxu0
        %678 = vst [vmem:[#allocation1] ss:$4 sm:$0xff] %v629
        %s680 = scalar_lea.vmem [#allocation1], 1
        %681 = vst [vmem:[%s680] ss:$4 sm:$0xff] %v630
        %s683 = scalar_lea.vmem [#allocation1], 2
        %684 = vst [vmem:[%s683] ss:$4 sm:$0xff] %v631
        %s686 = scalar_lea.vmem [#allocation1], 3
        %687 = vst [vmem:[%s686] ss:$4 sm:$0xff] %v632
        %v688 = vld.sshfl [vmem:[#allocation1] sm:$0xff pattern:$0x73625140]
        %v689 = vsel %vm656, %v688, 0
        %v692 = vsel %vm659, %v633, 0
        %694 = vmatpush.bf16.msra.mxu0 0
        %695 = vmatpush.bf16.msra.mxu0 0
        %696 = vmatpush.bf16.msra.mxu0 0
        %697 = vmatpush.bf16.msra.mxu0 0
        %698 = vmatpush.bf16.msra.mxu0 0
        %699 = vmatpush.bf16.msra.mxu0 0
        %700 = vmatpush.bf16.msra.mxu0 0
        %701 = vmatpush.bf16.msra.mxu0 %v692
        %702 = vmatmul.bf16.gmra.mxu0 %v689
        %v703 = vpop.f32.mrf.mxu0
        %v704 = vadd.f32 %v673, %v703
        %v705 = vpop.f32.mrf.mxu0
        %v706 = vadd.f32 %v675, %v705
        %707 = vdwg.mxu0
        %v708 = vld [vmem:[#allocation2 + $0x2] sm:$0xf]
        %v709 = vld [vmem:[#allocation2 + $0xa] sm:$0xf]
        %v710 = vld [vmem:[#allocation2 + $0x12] sm:$0xf]
        %v711 = vld [vmem:[#allocation2 + $0x1a] sm:$0xf]
        %v712 = vpack.c.bf16 %v708, %v708
        %v713 = vpack.c.bf16 %v709, %v709
        %v714 = vpack.c.bf16 %v710, %v710
        %v715 = vpack.c.bf16 %v711, %v711
        %s716 = scalar_lea.vmem [#allocation3], 8
        %v717 = vld [vmem:[%s716] sm:$0xf]
        %719 = vst [vmem:[#allocation1] ss:$4 sm:$0xff] %v712
        %s721 = scalar_lea.vmem [#allocation1], 1
        %722 = vst [vmem:[%s721] ss:$4 sm:$0xff] %v713
        %s724 = scalar_lea.vmem [#allocation1], 2
        %725 = vst [vmem:[%s724] ss:$4 sm:$0xff] %v714
        %s727 = scalar_lea.vmem [#allocation1], 3
        %728 = vst [vmem:[%s727] ss:$4 sm:$0xff] %v715
        %v729 = vld.sshfl [vmem:[#allocation1] sm:$0xff pattern:$0x73625140]
        %v730 = vsel %vm656, %v729, 0
        %v733 = vsel %vm659, %v717, 0
        %735 = vmatpush.bf16.msra.mxu0 0
        %736 = vmatpush.bf16.msra.mxu0 0
        %737 = vmatpush.bf16.msra.mxu0 0
        %738 = vmatpush.bf16.msra.mxu0 0
        %739 = vmatpush.bf16.msra.mxu0 0
        %740 = vmatpush.bf16.msra.mxu0 0
        %741 = vmatpush.bf16.msra.mxu0 0
        %742 = vmatpush.bf16.msra.mxu0 %v733
        %743 = vmatmul.bf16.gmra.mxu0 %v730
        %v744 = vpop.f32.mrf.mxu0
        %v745 = vadd.f32 0.0, %v744
        %v746 = vpop.f32.mrf.mxu0
        %v747 = vadd.f32 0.0, %v746
        %748 = vdwg.mxu0
        %v749 = vadd.f32 %v704, %v745
        %v750 = vadd.f32 %v706, %v747
        %v751 = vld [vmem:[%s619] sm:$0xf]
        %v752 = vld [vmem:[%s619 + $0x8] sm:$0xf]
        %v753 = vld [vmem:[%s619 + $0x10] sm:$0xf]
        %v754 = vld [vmem:[%s619 + $0x18] sm:$0xf]
        %v755 = vpack.c.bf16 %v751, %v751
        %v756 = vpack.c.bf16 %v752, %v752
        %v757 = vpack.c.bf16 %v753, %v753
        %v758 = vpack.c.bf16 %v754, %v754
        %s759 = scalar_lea.vmem [#allocation3], 12
        %v760 = vld [vmem:[%s759] sm:$0xf]
        %762 = vst [vmem:[#allocation1] ss:$4 sm:$0xff] %v755
        %s764 = scalar_lea.vmem [#allocation1], 1
        %765 = vst [vmem:[%s764] ss:$4 sm:$0xff] %v756
        %s767 = scalar_lea.vmem [#allocation1], 2
        %768 = vst [vmem:[%s767] ss:$4 sm:$0xff] %v757
        %s770 = scalar_lea.vmem [#allocation1], 3
        %771 = vst [vmem:[%s770] ss:$4 sm:$0xff] %v758
        %v772 = vld.sshfl [vmem:[#allocation1] sm:$0xff pattern:$0x73625140]
        %v773 = vsel %vm656, %v772, 0
        %v776 = vsel %vm659, %v760, 0
        %778 = vmatpush.bf16.msra.mxu0 0
        %779 = vmatpush.bf16.msra.mxu0 0
        %780 = vmatpush.bf16.msra.mxu0 0
        %781 = vmatpush.bf16.msra.mxu0 0
        %782 = vmatpush.bf16.msra.mxu0 0
        %783 = vmatpush.bf16.msra.mxu0 0
        %784 = vmatpush.bf16.msra.mxu0 0
        %785 = vmatpush.bf16.msra.mxu0 %v776
        %786 = vmatmul.bf16.gmra.mxu0 %v773
        %v787 = vpop.f32.mrf.mxu0
        %v788 = vadd.f32 0.0, %v787
        %v789 = vpop.f32.mrf.mxu0
        %v790 = vadd.f32 0.0, %v789
        %791 = vdwg.mxu0
        %v792 = vadd.f32 %v749, %v788
        %v793 = vadd.f32 %v750, %v790
        %v794 = vld [vmem:[%s619 + $0x1] sm:$0xf]
        %v795 = vld [vmem:[%s619 + $0x9] sm:$0xf]
        %v796 = vld [vmem:[%s619 + $0x11] sm:$0xf]
        %v797 = vld [vmem:[%s619 + $0x19] sm:$0xf]
        %v798 = vpack.c.bf16 %v794, %v794
        %v799 = vpack.c.bf16 %v795, %v795
        %v800 = vpack.c.bf16 %v796, %v796
        %v801 = vpack.c.bf16 %v797, %v797
        %s802 = scalar_lea.vmem [#allocation3], 16
        %v803 = vld [vmem:[%s802] sm:$0xf]
        %805 = vst [vmem:[#allocation1] ss:$4 sm:$0xff] %v798
        %s807 = scalar_lea.vmem [#allocation1], 1
        %808 = vst [vmem:[%s807] ss:$4 sm:$0xff] %v799
        %s810 = scalar_lea.vmem [#allocation1], 2
        %811 = vst [vmem:[%s810] ss:$4 sm:$0xff] %v800
        %s813 = scalar_lea.vmem [#allocation1], 3
        %814 = vst [vmem:[%s813] ss:$4 sm:$0xff] %v801
        %v815 = vld.sshfl [vmem:[#allocation1] sm:$0xff pattern:$0x73625140]
        %v816 = vsel %vm656, %v815, 0
        %v819 = vsel %vm659, %v803, 0
        %821 = vmatpush.bf16.msra.mxu0 0
        %822 = vmatpush.bf16.msra.mxu0 0
        %823 = vmatpush.bf16.msra.mxu0 0
        %824 = vmatpush.bf16.msra.mxu0 0
        %825 = vmatpush.bf16.msra.mxu0 0
        %826 = vmatpush.bf16.msra.mxu0 0
        %827 = vmatpush.bf16.msra.mxu0 0
        %828 = vmatpush.bf16.msra.mxu0 %v819
        %829 = vmatmul.bf16.gmra.mxu0 %v816
        %v830 = vpop.f32.mrf.mxu0
        %v831 = vadd.f32 0.0, %v830
        %v832 = vpop.f32.mrf.mxu0
        %v833 = vadd.f32 0.0, %v832
        %834 = vdwg.mxu0
        %v835 = vadd.f32 %v792, %v831
        %v836 = vadd.f32 %v793, %v833
        %v837 = vld [vmem:[%s619 + $0x2] sm:$0xf]
        %v838 = vld [vmem:[%s619 + $0xa] sm:$0xf]
        %v839 = vld [vmem:[%s619 + $0x12] sm:$0xf]
        %v840 = vld [vmem:[%s619 + $0x1a] sm:$0xf]
        %v841 = vpack.c.bf16 %v837, %v837
        %v842 = vpack.c.bf16 %v838, %v838
        %v843 = vpack.c.bf16 %v839, %v839
        %v844 = vpack.c.bf16 %v840, %v840
        %s845 = scalar_lea.vmem [#allocation3], 20
        %v846 = vld [vmem:[%s845] sm:$0xf]
        %848 = vst [vmem:[#allocation1] ss:$4 sm:$0xff] %v841
        %s850 = scalar_lea.vmem [#allocation1], 1
        %851 = vst [vmem:[%s850] ss:$4 sm:$0xff] %v842
        %s853 = scalar_lea.vmem [#allocation1], 2
        %854 = vst [vmem:[%s853] ss:$4 sm:$0xff] %v843
        %s856 = scalar_lea.vmem [#allocation1], 3
        %857 = vst [vmem:[%s856] ss:$4 sm:$0xff] %v844
        %v858 = vld.sshfl [vmem:[#allocation1] sm:$0xff pattern:$0x73625140]
        %v859 = vsel %vm656, %v858, 0
        %v862 = vsel %vm659, %v846, 0
        %864 = vmatpush.bf16.msra.mxu0 0
        %865 = vmatpush.bf16.msra.mxu0 0
        %866 = vmatpush.bf16.msra.mxu0 0
        %867 = vmatpush.bf16.msra.mxu0 0
        %868 = vmatpush.bf16.msra.mxu0 0
        %869 = vmatpush.bf16.msra.mxu0 0
        %870 = vmatpush.bf16.msra.mxu0 0
        %871 = vmatpush.bf16.msra.mxu0 %v862
        %872 = vmatmul.bf16.gmra.mxu0 %v859
        %v873 = vpop.f32.mrf.mxu0
        %v874 = vadd.f32 0.0, %v873
        %v875 = vpop.f32.mrf.mxu0
        %v876 = vadd.f32 0.0, %v875
        %877 = vdwg.mxu0
        %v878 = vadd.f32 %v835, %v874
        %v879 = vadd.f32 %v836, %v876
        %s880 = scalar_lea.vmem [#allocation2], 16
        %v881 = vld [vmem:[%s880] sm:$0xf]
        %v882 = vld [vmem:[%s880 + $0x8] sm:$0xf]
        %v883 = vld [vmem:[%s880 + $0x10] sm:$0xf]
        %v884 = vld [vmem:[%s880 + $0x18] sm:$0xf]
        %v885 = vpack.c.bf16 %v881, %v881
        %v886 = vpack.c.bf16 %v882, %v882
        %v887 = vpack.c.bf16 %v883, %v883
        %v888 = vpack.c.bf16 %v884, %v884
        %s889 = scalar_lea.vmem [#allocation3], 24
        %v890 = vld [vmem:[%s889] sm:$0xf]
        %892 = vst [vmem:[#allocation1] ss:$4 sm:$0xff] %v885
        %s894 = scalar_lea.vmem [#allocation1], 1
        %895 = vst [vmem:[%s894] ss:$4 sm:$0xff] %v886
        %s897 = scalar_lea.vmem [#allocation1], 2
        %898 = vst [vmem:[%s897] ss:$4 sm:$0xff] %v887
        %s900 = scalar_lea.vmem [#allocation1], 3
        %901 = vst [vmem:[%s900] ss:$4 sm:$0xff] %v888
        %v902 = vld.sshfl [vmem:[#allocation1] sm:$0xff pattern:$0x73625140]
        %v903 = vsel %vm656, %v902, 0
        %v906 = vsel %vm659, %v890, 0
        %908 = vmatpush.bf16.msra.mxu0 0
        %909 = vmatpush.bf16.msra.mxu0 0
        %910 = vmatpush.bf16.msra.mxu0 0
        %911 = vmatpush.bf16.msra.mxu0 0
        %912 = vmatpush.bf16.msra.mxu0 0
        %913 = vmatpush.bf16.msra.mxu0 0
        %914 = vmatpush.bf16.msra.mxu0 0
        %915 = vmatpush.bf16.msra.mxu0 %v906
        %916 = vmatmul.bf16.gmra.mxu0 %v903
        %v917 = vpop.f32.mrf.mxu0
        %v918 = vadd.f32 0.0, %v917
        %v919 = vpop.f32.mrf.mxu0
        %v920 = vadd.f32 0.0, %v919
        %921 = vdwg.mxu0
        %v922 = vadd.f32 %v878, %v918
        %v923 = vadd.f32 %v879, %v920
        %v924 = vld [vmem:[%s880 + $0x1] sm:$0xf]
        %v925 = vld [vmem:[%s880 + $0x9] sm:$0xf]
        %v926 = vld [vmem:[%s880 + $0x11] sm:$0xf]
        %v927 = vld [vmem:[%s880 + $0x19] sm:$0xf]
        %v928 = vpack.c.bf16 %v924, %v924
        %v929 = vpack.c.bf16 %v925, %v925
        %v930 = vpack.c.bf16 %v926, %v926
        %v931 = vpack.c.bf16 %v927, %v927
        %s932 = scalar_lea.vmem [#allocation3], 28
        %v933 = vld [vmem:[%s932] sm:$0xf]
        %935 = vst [vmem:[#allocation1] ss:$4 sm:$0xff] %v928
        %s937 = scalar_lea.vmem [#allocation1], 1
        %938 = vst [vmem:[%s937] ss:$4 sm:$0xff] %v929
        %s940 = scalar_lea.vmem [#allocation1], 2
        %941 = vst [vmem:[%s940] ss:$4 sm:$0xff] %v930
        %s943 = scalar_lea.vmem [#allocation1], 3
        %944 = vst [vmem:[%s943] ss:$4 sm:$0xff] %v931
        %v945 = vld.sshfl [vmem:[#allocation1] sm:$0xff pattern:$0x73625140]
        %v946 = vsel %vm656, %v945, 0
        %v949 = vsel %vm659, %v933, 0
        %951 = vmatpush.bf16.msra.mxu0 0
        %952 = vmatpush.bf16.msra.mxu0 0
        %953 = vmatpush.bf16.msra.mxu0 0
        %954 = vmatpush.bf16.msra.mxu0 0
        %955 = vmatpush.bf16.msra.mxu0 0
        %956 = vmatpush.bf16.msra.mxu0 0
        %957 = vmatpush.bf16.msra.mxu0 0
        %958 = vmatpush.bf16.msra.mxu0 %v949
        %959 = vmatmul.bf16.gmra.mxu0 %v946
        %v960 = vpop.f32.mrf.mxu0
        %v961 = vadd.f32 0.0, %v960
        %v962 = vpop.f32.mrf.mxu0
        %v963 = vadd.f32 0.0, %v962
        %964 = vdwg.mxu0
        %v965 = vadd.f32 %v922, %v961
        %v966 = vadd.f32 %v923, %v963
        %v967 = vld [vmem:[%s880 + $0x2] sm:$0xf]
        %v968 = vld [vmem:[%s880 + $0xa] sm:$0xf]
        %v969 = vld [vmem:[%s880 + $0x12] sm:$0xf]
        %v970 = vld [vmem:[%s880 + $0x1a] sm:$0xf]
        %v971 = vpack.c.bf16 %v967, %v967
        %v972 = vpack.c.bf16 %v968, %v968
        %v973 = vpack.c.bf16 %v969, %v969
        %v974 = vpack.c.bf16 %v970, %v970
        %s975 = scalar_lea.vmem [#allocation3], 32
        %v976 = vld [vmem:[%s975] sm:$0xf]
        %978 = vst [vmem:[#allocation1] ss:$4 sm:$0xff] %v971
        %s980 = scalar_lea.vmem [#allocation1], 1
        %981 = vst [vmem:[%s980] ss:$4 sm:$0xff] %v972
        %s983 = scalar_lea.vmem [#allocation1], 2
        %984 = vst [vmem:[%s983] ss:$4 sm:$0xff] %v973
        %s986 = scalar_lea.vmem [#allocation1], 3
        %987 = vst [vmem:[%s986] ss:$4 sm:$0xff] %v974
        %v988 = vld.sshfl [vmem:[#allocation1] sm:$0xff pattern:$0x73625140]
        %v989 = vsel %vm656, %v988, 0
        %v992 = vsel %vm659, %v976, 0
        %994 = vmatpush.bf16.msra.mxu0 0
        %995 = vmatpush.bf16.msra.mxu0 0
        %996 = vmatpush.bf16.msra.mxu0 0
        %997 = vmatpush.bf16.msra.mxu0 0
        %998 = vmatpush.bf16.msra.mxu0 0
        %999 = vmatpush.bf16.msra.mxu0 0
        %1000 = vmatpush.bf16.msra.mxu0 0
        %1001 = vmatpush.bf16.msra.mxu0 %v992
        %1002 = vmatmul.bf16.gmra.mxu0 %v989
        %v1003 = vpop.f32.mrf.mxu0
        %v1004 = vadd.f32 0.0, %v1003
        %v1005 = vpop.f32.mrf.mxu0
        %v1006 = vadd.f32 0.0, %v1005
        %1007 = vdwg.mxu0
        %v1008 = vadd.f32 %v965, %v1004
        %v1009 = vadd.f32 %v966, %v1006
        %v1010 = vld [vmem:[%s4] sm:$0x1]
        %v1012 = vperm.slane %v1010, 0
        %v1014 = vadd.f32 %v1008, %v1012
        %v1015 = vadd.f32 %v1009, %v1012
        %v1016 = vmul.f32 %v1014, 0.1
        %v1017 = vmul.f32 %v1015, 0.1
        %v1018 = vmax.f32 %v1014, %v1016
        %v1019 = vmax.f32 %v1015, %v1017
        %v1022 = vrot.slane %v1018, 4
        %v1023 = vrot.slane %v1019, 4
        %v1026 = vpack.c.bf16 %v1018, %v1018
        %v1027 = vpack.c.bf16 %v1022, %v1022
        %v1028 = vpack.c.bf16 %v1019, %v1019
        %v1029 = vpack.c.bf16 %v1023, %v1023
        %v1030 = vld [vmem:[%s5] sm:$0xf]
        %v1031 = vld [vmem:[%s5 + $0x4] sm:$0xf]
        %v1032 = vld [vmem:[%s6] sm:$0x1]
        %v1034 = vperm.slane %v1032, 0
        %1037 = vst [vmem:[#allocation1] ss:$4 sm:$0xff] %v1026
        %s1039 = scalar_lea.vmem [#allocation1], 1
        %1040 = vst [vmem:[%s1039] ss:$4 sm:$0xff] %v1027
        %s1042 = scalar_lea.vmem [#allocation1], 2
        %1043 = vst [vmem:[%s1042] ss:$4 sm:$0xff] %v1028
        %s1045 = scalar_lea.vmem [#allocation1], 3
        %1046 = vst [vmem:[%s1045] ss:$4 sm:$0xff] %v1029
        %v1047 = vld.sshfl [vmem:[#allocation1] sm:$0xff pattern:$0x73625140]
        %v1050 = vunpack.c.l.b16 %v1030
        %v1051 = vunpack.c.l.b16 %v1031
        %v1052 = vpack.c.b16 %v1051, %v1050
        %v1054 = vsel %vm584, %v1047, 0
        %1056 = vmatpush.bf16.msra.mxu0 0
        %1057 = vmatpush.bf16.msra.mxu0 0
        %1058 = vmatpush.bf16.msra.mxu0 0
        %1059 = vmatpush.bf16.msra.mxu0 0
        %1060 = vmatpush.bf16.msra.mxu0 0
        %1061 = vmatpush.bf16.msra.mxu0 0
        %1062 = vmatpush.bf16.msra.mxu0 0
        %1063 = vmatpush.bf16.msra.mxu0 %v1052
        %1064 = vmatmul.bf16.gmra.mxu0 %v1054
        %v1065 = vpop.f32.mrf.mxu0
        %v1066 = vadd.f32 %v1034, %v1065
        %v1067 = vpop.f32.mrf.mxu0
        %v1068 = vadd.f32 %v1034, %v1067
        %1069 = vdwg.mxu0
        %v1070 = vmul.f32 %v1066, 0.1
        %v1071 = vmul.f32 %v1068, 0.1
        %v1072 = vmax.f32 %v1066, %v1070
        %v1073 = vmax.f32 %v1068, %v1071
        %v1076 = vrot.slane %v1072, 4
        %v1077 = vrot.slane %v1073, 4
        %v1080 = vpack.c.bf16 %v1072, %v1072
        %v1081 = vpack.c.bf16 %v1076, %v1076
        %v1082 = vpack.c.bf16 %v1073, %v1073
        %v1083 = vpack.c.bf16 %v1077, %v1077
        %v1084 = vunpack.c.l.bf16 %v1080
        %v1085 = vunpack.c.l.bf16 %v1081
        %v1086 = vunpack.c.l.bf16 %v1082
        %v1087 = vunpack.c.l.bf16 %v1083
        %1088 = vst.msk [vmem:[%s619 + $0x1] sm:$0xf] %vm620, %v1084
        %1089 = vst.msk [vmem:[%s619 + $0x9] sm:$0xf] %vm620, %v1085
        %1090 = vst.msk [vmem:[%s619 + $0x11] sm:$0xf] %vm620, %v1086
        %1091 = vst.msk [vmem:[%s619 + $0x19] sm:$0xf] %vm620, %v1087
        %v1092 = vld [vmem:[#allocation2] sm:$0xf]
        %v1093 = vld [vmem:[#allocation2 + $0x8] sm:$0xf]
        %v1094 = vld [vmem:[#allocation2 + $0x10] sm:$0xf]
        %v1095 = vld [vmem:[#allocation2 + $0x18] sm:$0xf]
        %v1096 = vpack.c.bf16 %v1092, %v1092
        %v1097 = vpack.c.bf16 %v1093, %v1093
        %v1098 = vpack.c.bf16 %v1094, %v1094
        %v1099 = vpack.c.bf16 %v1095, %v1095
        %v1100 = vld [vmem:[#allocation6] sm:$0xf]
        %v1101 = vld [vmem:[#allocation2 + $0x1] sm:$0xf]
        %v1102 = vld [vmem:[#allocation2 + $0x9] sm:$0xf]
        %v1103 = vld [vmem:[#allocation2 + $0x11] sm:$0xf]
        %v1104 = vld [vmem:[#allocation2 + $0x19] sm:$0xf]
        %v1105 = vpack.c.bf16 %v1101, %v1101
        %v1106 = vpack.c.bf16 %v1102, %v1102
        %v1107 = vpack.c.bf16 %v1103, %v1103
        %v1108 = vpack.c.bf16 %v1104, %v1104
        %s1109 = scalar_lea.vmem [#allocation6], 4
        %v1110 = vld [vmem:[%s1109] sm:$0xf]
        %1112 = vst [vmem:[#allocation1] ss:$4 sm:$0xff] %v1105
        %s1114 = scalar_lea.vmem [#allocation1], 1
        %1115 = vst [vmem:[%s1114] ss:$4 sm:$0xff] %v1106
        %s1117 = scalar_lea.vmem [#allocation1], 2
        %1118 = vst [vmem:[%s1117] ss:$4 sm:$0xff] %v1107
        %s1120 = scalar_lea.vmem [#allocation1], 3
        %1121 = vst [vmem:[%s1120] ss:$4 sm:$0xff] %v1108
        %v1122 = vld.sshfl [vmem:[#allocation1] sm:$0xff pattern:$0x73625140]
        %v1123 = vsel %vm656, %v1122, 0
        %v1126 = vsel %vm659, %v1110, 0
        %1128 = vmatpush.bf16.msra.mxu0 0
        %1129 = vmatpush.bf16.msra.mxu0 0
        %1130 = vmatpush.bf16.msra.mxu0 0
        %1131 = vmatpush.bf16.msra.mxu0 0
        %1132 = vmatpush.bf16.msra.mxu0 0
        %1133 = vmatpush.bf16.msra.mxu0 0
        %1134 = vmatpush.bf16.msra.mxu0 0
        %1135 = vmatpush.bf16.msra.mxu0 %v1126
        %1136 = vmatmul.bf16.gmra.mxu0 %v1123
        %v1137 = vpop.f32.mrf.mxu0
        %v1138 = vadd.f32 0.0, %v1137
        %v1139 = vpop.f32.mrf.mxu0
        %v1140 = vadd.f32 0.0, %v1139
        %1141 = vdwg.mxu0
        %1143 = vst [vmem:[#allocation1] ss:$4 sm:$0xff] %v1096
        %s1145 = scalar_lea.vmem [#allocation1], 1
        %1146 = vst [vmem:[%s1145] ss:$4 sm:$0xff] %v1097
        %s1148 = scalar_lea.vmem [#allocation1], 2
        %1149 = vst [vmem:[%s1148] ss:$4 sm:$0xff] %v1098
        %s1151 = scalar_lea.vmem [#allocation1], 3
        %1152 = vst [vmem:[%s1151] ss:$4 sm:$0xff] %v1099
        %v1153 = vld.sshfl [vmem:[#allocation1] sm:$0xff pattern:$0x73625140]
        %v1154 = vsel %vm656, %v1153, 0
        %v1157 = vsel %vm659, %v1100, 0
        %1159 = vmatpush.bf16.msra.mxu0 0
        %1160 = vmatpush.bf16.msra.mxu0 0
        %1161 = vmatpush.bf16.msra.mxu0 0
        %1162 = vmatpush.bf16.msra.mxu0 0
        %1163 = vmatpush.bf16.msra.mxu0 0
        %1164 = vmatpush.bf16.msra.mxu0 0
        %1165 = vmatpush.bf16.msra.mxu0 0
        %1166 = vmatpush.bf16.msra.mxu0 %v1157
        %1167 = vmatmul.bf16.gmra.mxu0 %v1154
        %v1168 = vpop.f32.mrf.mxu0
        %v1169 = vadd.f32 %v1138, %v1168
        %v1170 = vpop.f32.mrf.mxu0
        %v1171 = vadd.f32 %v1140, %v1170
        %1172 = vdwg.mxu0
        %v1173 = vld [vmem:[#allocation2 + $0x2] sm:$0xf]
        %v1174 = vld [vmem:[#allocation2 + $0xa] sm:$0xf]
        %v1175 = vld [vmem:[#allocation2 + $0x12] sm:$0xf]
        %v1176 = vld [vmem:[#allocation2 + $0x1a] sm:$0xf]
        %v1177 = vpack.c.bf16 %v1173, %v1173
        %v1178 = vpack.c.bf16 %v1174, %v1174
        %v1179 = vpack.c.bf16 %v1175, %v1175
        %v1180 = vpack.c.bf16 %v1176, %v1176
        %s1181 = scalar_lea.vmem [#allocation6], 8
        %v1182 = vld [vmem:[%s1181] sm:$0xf]
        %1184 = vst [vmem:[#allocation1] ss:$4 sm:$0xff] %v1177
        %s1186 = scalar_lea.vmem [#allocation1], 1
        %1187 = vst [vmem:[%s1186] ss:$4 sm:$0xff] %v1178
        %s1189 = scalar_lea.vmem [#allocation1], 2
        %1190 = vst [vmem:[%s1189] ss:$4 sm:$0xff] %v1179
        %s1192 = scalar_lea.vmem [#allocation1], 3
        %1193 = vst [vmem:[%s1192] ss:$4 sm:$0xff] %v1180
        %v1194 = vld.sshfl [vmem:[#allocation1] sm:$0xff pattern:$0x73625140]
        %v1195 = vsel %vm656, %v1194, 0
        %v1198 = vsel %vm659, %v1182, 0
        %1200 = vmatpush.bf16.msra.mxu0 0
        %1201 = vmatpush.bf16.msra.mxu0 0
        %1202 = vmatpush.bf16.msra.mxu0 0
        %1203 = vmatpush.bf16.msra.mxu0 0
        %1204 = vmatpush.bf16.msra.mxu0 0
        %1205 = vmatpush.bf16.msra.mxu0 0
        %1206 = vmatpush.bf16.msra.mxu0 0
        %1207 = vmatpush.bf16.msra.mxu0 %v1198
        %1208 = vmatmul.bf16.gmra.mxu0 %v1195
        %v1209 = vpop.f32.mrf.mxu0
        %v1210 = vadd.f32 0.0, %v1209
        %v1211 = vpop.f32.mrf.mxu0
        %v1212 = vadd.f32 0.0, %v1211
        %1213 = vdwg.mxu0
        %v1214 = vadd.f32 %v1169, %v1210
        %v1215 = vadd.f32 %v1171, %v1212
        %v1216 = vld [vmem:[%s619] sm:$0xf]
        %v1217 = vld [vmem:[%s619 + $0x8] sm:$0xf]
        %v1218 = vld [vmem:[%s619 + $0x10] sm:$0xf]
        %v1219 = vld [vmem:[%s619 + $0x18] sm:$0xf]
        %v1220 = vpack.c.bf16 %v1216, %v1216
        %v1221 = vpack.c.bf16 %v1217, %v1217
        %v1222 = vpack.c.bf16 %v1218, %v1218
        %v1223 = vpack.c.bf16 %v1219, %v1219
        %s1224 = scalar_lea.vmem [#allocation6], 12
        %v1225 = vld [vmem:[%s1224] sm:$0xf]
        %1227 = vst [vmem:[#allocation1] ss:$4 sm:$0xff] %v1220
        %s1229 = scalar_lea.vmem [#allocation1], 1
        %1230 = vst [vmem:[%s1229] ss:$4 sm:$0xff] %v1221
        %s1232 = scalar_lea.vmem [#allocation1], 2
        %1233 = vst [vmem:[%s1232] ss:$4 sm:$0xff] %v1222
        %s1235 = scalar_lea.vmem [#allocation1], 3
        %1236 = vst [vmem:[%s1235] ss:$4 sm:$0xff] %v1223
        %v1237 = vld.sshfl [vmem:[#allocation1] sm:$0xff pattern:$0x73625140]
        %v1238 = vsel %vm656, %v1237, 0
        %v1241 = vsel %vm659, %v1225, 0
        %1243 = vmatpush.bf16.msra.mxu0 0
        %1244 = vmatpush.bf16.msra.mxu0 0
        %1245 = vmatpush.bf16.msra.mxu0 0
        %1246 = vmatpush.bf16.msra.mxu0 0
        %1247 = vmatpush.bf16.msra.mxu0 0
        %1248 = vmatpush.bf16.msra.mxu0 0
        %1249 = vmatpush.bf16.msra.mxu0 0
        %1250 = vmatpush.bf16.msra.mxu0 %v1241
        %1251 = vmatmul.bf16.gmra.mxu0 %v1238
        %v1252 = vpop.f32.mrf.mxu0
        %v1253 = vadd.f32 0.0, %v1252
        %v1254 = vpop.f32.mrf.mxu0
        %v1255 = vadd.f32 0.0, %v1254
        %1256 = vdwg.mxu0
        %v1257 = vadd.f32 %v1214, %v1253
        %v1258 = vadd.f32 %v1215, %v1255
        %v1259 = vld [vmem:[%s619 + $0x1] sm:$0xf]
        %v1260 = vld [vmem:[%s619 + $0x9] sm:$0xf]
        %v1261 = vld [vmem:[%s619 + $0x11] sm:$0xf]
        %v1262 = vld [vmem:[%s619 + $0x19] sm:$0xf]
        %v1263 = vpack.c.bf16 %v1259, %v1259
        %v1264 = vpack.c.bf16 %v1260, %v1260
        %v1265 = vpack.c.bf16 %v1261, %v1261
        %v1266 = vpack.c.bf16 %v1262, %v1262
        %s1267 = scalar_lea.vmem [#allocation6], 16
        %v1268 = vld [vmem:[%s1267] sm:$0xf]
        %1270 = vst [vmem:[#allocation1] ss:$4 sm:$0xff] %v1263
        %s1272 = scalar_lea.vmem [#allocation1], 1
        %1273 = vst [vmem:[%s1272] ss:$4 sm:$0xff] %v1264
        %s1275 = scalar_lea.vmem [#allocation1], 2
        %1276 = vst [vmem:[%s1275] ss:$4 sm:$0xff] %v1265
        %s1278 = scalar_lea.vmem [#allocation1], 3
        %1279 = vst [vmem:[%s1278] ss:$4 sm:$0xff] %v1266
        %v1280 = vld.sshfl [vmem:[#allocation1] sm:$0xff pattern:$0x73625140]
        %v1281 = vsel %vm656, %v1280, 0
        %v1284 = vsel %vm659, %v1268, 0
        %1286 = vmatpush.bf16.msra.mxu0 0
        %1287 = vmatpush.bf16.msra.mxu0 0
        %1288 = vmatpush.bf16.msra.mxu0 0
        %1289 = vmatpush.bf16.msra.mxu0 0
        %1290 = vmatpush.bf16.msra.mxu0 0
        %1291 = vmatpush.bf16.msra.mxu0 0
        %1292 = vmatpush.bf16.msra.mxu0 0
        %1293 = vmatpush.bf16.msra.mxu0 %v1284
        %1294 = vmatmul.bf16.gmra.mxu0 %v1281
        %v1295 = vpop.f32.mrf.mxu0
        %v1296 = vadd.f32 0.0, %v1295
        %v1297 = vpop.f32.mrf.mxu0
        %v1298 = vadd.f32 0.0, %v1297
        %1299 = vdwg.mxu0
        %v1300 = vadd.f32 %v1257, %v1296
        %v1301 = vadd.f32 %v1258, %v1298
        %v1302 = vld [vmem:[%s619 + $0x2] sm:$0xf]
        %v1303 = vld [vmem:[%s619 + $0xa] sm:$0xf]
        %v1304 = vld [vmem:[%s619 + $0x12] sm:$0xf]
        %v1305 = vld [vmem:[%s619 + $0x1a] sm:$0xf]
        %v1306 = vpack.c.bf16 %v1302, %v1302
        %v1307 = vpack.c.bf16 %v1303, %v1303
        %v1308 = vpack.c.bf16 %v1304, %v1304
        %v1309 = vpack.c.bf16 %v1305, %v1305
        %s1310 = scalar_lea.vmem [#allocation6], 20
        %v1311 = vld [vmem:[%s1310] sm:$0xf]
        %1313 = vst [vmem:[#allocation1] ss:$4 sm:$0xff] %v1306
        %s1315 = scalar_lea.vmem [#allocation1], 1
        %1316 = vst [vmem:[%s1315] ss:$4 sm:$0xff] %v1307
        %s1318 = scalar_lea.vmem [#allocation1], 2
        %1319 = vst [vmem:[%s1318] ss:$4 sm:$0xff] %v1308
        %s1321 = scalar_lea.vmem [#allocation1], 3
        %1322 = vst [vmem:[%s1321] ss:$4 sm:$0xff] %v1309
        %v1323 = vld.sshfl [vmem:[#allocation1] sm:$0xff pattern:$0x73625140]
        %v1324 = vsel %vm656, %v1323, 0
        %v1327 = vsel %vm659, %v1311, 0
        %1329 = vmatpush.bf16.msra.mxu0 0
        %1330 = vmatpush.bf16.msra.mxu0 0
        %1331 = vmatpush.bf16.msra.mxu0 0
        %1332 = vmatpush.bf16.msra.mxu0 0
        %1333 = vmatpush.bf16.msra.mxu0 0
        %1334 = vmatpush.bf16.msra.mxu0 0
        %1335 = vmatpush.bf16.msra.mxu0 0
        %1336 = vmatpush.bf16.msra.mxu0 %v1327
        %1337 = vmatmul.bf16.gmra.mxu0 %v1324
        %v1338 = vpop.f32.mrf.mxu0
        %v1339 = vadd.f32 0.0, %v1338
        %v1340 = vpop.f32.mrf.mxu0
        %v1341 = vadd.f32 0.0, %v1340
        %1342 = vdwg.mxu0
        %v1343 = vadd.f32 %v1300, %v1339
        %v1344 = vadd.f32 %v1301, %v1341
        %v1345 = vld [vmem:[%s880] sm:$0xf]
        %v1346 = vld [vmem:[%s880 + $0x8] sm:$0xf]
        %v1347 = vld [vmem:[%s880 + $0x10] sm:$0xf]
        %v1348 = vld [vmem:[%s880 + $0x18] sm:$0xf]
        %v1349 = vpack.c.bf16 %v1345, %v1345
        %v1350 = vpack.c.bf16 %v1346, %v1346
        %v1351 = vpack.c.bf16 %v1347, %v1347
        %v1352 = vpack.c.bf16 %v1348, %v1348
        %s1353 = scalar_lea.vmem [#allocation6], 24
        %v1354 = vld [vmem:[%s1353] sm:$0xf]
        %1356 = vst [vmem:[#allocation1] ss:$4 sm:$0xff] %v1349
        %s1358 = scalar_lea.vmem [#allocation1], 1
        %1359 = vst [vmem:[%s1358] ss:$4 sm:$0xff] %v1350
        %s1361 = scalar_lea.vmem [#allocation1], 2
        %1362 = vst [vmem:[%s1361] ss:$4 sm:$0xff] %v1351
        %s1364 = scalar_lea.vmem [#allocation1], 3
        %1365 = vst [vmem:[%s1364] ss:$4 sm:$0xff] %v1352
        %v1366 = vld.sshfl [vmem:[#allocation1] sm:$0xff pattern:$0x73625140]
        %v1367 = vsel %vm656, %v1366, 0
        %v1370 = vsel %vm659, %v1354, 0
        %1372 = vmatpush.bf16.msra.mxu0 0
        %1373 = vmatpush.bf16.msra.mxu0 0
        %1374 = vmatpush.bf16.msra.mxu0 0
        %1375 = vmatpush.bf16.msra.mxu0 0
        %1376 = vmatpush.bf16.msra.mxu0 0
        %1377 = vmatpush.bf16.msra.mxu0 0
        %1378 = vmatpush.bf16.msra.mxu0 0
        %1379 = vmatpush.bf16.msra.mxu0 %v1370
        %1380 = vmatmul.bf16.gmra.mxu0 %v1367
        %v1381 = vpop.f32.mrf.mxu0
        %v1382 = vadd.f32 0.0, %v1381
        %v1383 = vpop.f32.mrf.mxu0
        %v1384 = vadd.f32 0.0, %v1383
        %1385 = vdwg.mxu0
        %v1386 = vadd.f32 %v1343, %v1382
        %v1387 = vadd.f32 %v1344, %v1384
        %v1388 = vld [vmem:[%s880 + $0x1] sm:$0xf]
        %v1389 = vld [vmem:[%s880 + $0x9] sm:$0xf]
        %v1390 = vld [vmem:[%s880 + $0x11] sm:$0xf]
        %v1391 = vld [vmem:[%s880 + $0x19] sm:$0xf]
        %v1392 = vpack.c.bf16 %v1388, %v1388
        %v1393 = vpack.c.bf16 %v1389, %v1389
        %v1394 = vpack.c.bf16 %v1390, %v1390
        %v1395 = vpack.c.bf16 %v1391, %v1391
        %s1396 = scalar_lea.vmem [#allocation6], 28
        %v1397 = vld [vmem:[%s1396] sm:$0xf]
        %1399 = vst [vmem:[#allocation1] ss:$4 sm:$0xff] %v1392
        %s1401 = scalar_lea.vmem [#allocation1], 1
        %1402 = vst [vmem:[%s1401] ss:$4 sm:$0xff] %v1393
        %s1404 = scalar_lea.vmem [#allocation1], 2
        %1405 = vst [vmem:[%s1404] ss:$4 sm:$0xff] %v1394
        %s1407 = scalar_lea.vmem [#allocation1], 3
        %1408 = vst [vmem:[%s1407] ss:$4 sm:$0xff] %v1395
        %v1409 = vld.sshfl [vmem:[#allocation1] sm:$0xff pattern:$0x73625140]
        %v1410 = vsel %vm656, %v1409, 0
        %v1413 = vsel %vm659, %v1397, 0
        %1415 = vmatpush.bf16.msra.mxu0 0
        %1416 = vmatpush.bf16.msra.mxu0 0
        %1417 = vmatpush.bf16.msra.mxu0 0
        %1418 = vmatpush.bf16.msra.mxu0 0
        %1419 = vmatpush.bf16.msra.mxu0 0
        %1420 = vmatpush.bf16.msra.mxu0 0
        %1421 = vmatpush.bf16.msra.mxu0 0
        %1422 = vmatpush.bf16.msra.mxu0 %v1413
        %1423 = vmatmul.bf16.gmra.mxu0 %v1410
        %v1424 = vpop.f32.mrf.mxu0
        %v1425 = vadd.f32 0.0, %v1424
        %v1426 = vpop.f32.mrf.mxu0
        %v1427 = vadd.f32 0.0, %v1426
        %1428 = vdwg.mxu0
        %v1429 = vadd.f32 %v1386, %v1425
        %v1430 = vadd.f32 %v1387, %v1427
        %v1431 = vld [vmem:[%s880 + $0x2] sm:$0xf]
        %v1432 = vld [vmem:[%s880 + $0xa] sm:$0xf]
        %v1433 = vld [vmem:[%s880 + $0x12] sm:$0xf]
        %v1434 = vld [vmem:[%s880 + $0x1a] sm:$0xf]
        %v1435 = vpack.c.bf16 %v1431, %v1431
        %v1436 = vpack.c.bf16 %v1432, %v1432
        %v1437 = vpack.c.bf16 %v1433, %v1433
        %v1438 = vpack.c.bf16 %v1434, %v1434
        %s1439 = scalar_lea.vmem [#allocation6], 32
        %v1440 = vld [vmem:[%s1439] sm:$0xf]
        %1442 = vst [vmem:[#allocation1] ss:$4 sm:$0xff] %v1435
        %s1444 = scalar_lea.vmem [#allocation1], 1
        %1445 = vst [vmem:[%s1444] ss:$4 sm:$0xff] %v1436
        %s1447 = scalar_lea.vmem [#allocation1], 2
        %1448 = vst [vmem:[%s1447] ss:$4 sm:$0xff] %v1437
        %s1450 = scalar_lea.vmem [#allocation1], 3
        %1451 = vst [vmem:[%s1450] ss:$4 sm:$0xff] %v1438
        %v1452 = vld.sshfl [vmem:[#allocation1] sm:$0xff pattern:$0x73625140]
        %v1453 = vsel %vm656, %v1452, 0
        %v1456 = vsel %vm659, %v1440, 0
        %1458 = vmatpush.bf16.msra.mxu0 0
        %1459 = vmatpush.bf16.msra.mxu0 0
        %1460 = vmatpush.bf16.msra.mxu0 0
        %1461 = vmatpush.bf16.msra.mxu0 0
        %1462 = vmatpush.bf16.msra.mxu0 0
        %1463 = vmatpush.bf16.msra.mxu0 0
        %1464 = vmatpush.bf16.msra.mxu0 0
        %1465 = vmatpush.bf16.msra.mxu0 %v1456
        %1466 = vmatmul.bf16.gmra.mxu0 %v1453
        %v1467 = vpop.f32.mrf.mxu0
        %v1468 = vadd.f32 0.0, %v1467
        %v1469 = vpop.f32.mrf.mxu0
        %v1470 = vadd.f32 0.0, %v1469
        %1471 = vdwg.mxu0
        %v1472 = vadd.f32 %v1429, %v1468
        %v1473 = vadd.f32 %v1430, %v1470
        %v1474 = vld [vmem:[%s8] sm:$0x1]
        %v1476 = vperm.slane %v1474, 0
        %v1478 = vadd.f32 %v1472, %v1476
        %v1479 = vadd.f32 %v1473, %v1476
        %v1480 = vmul.f32 %v1478, 0.1
        %v1481 = vmul.f32 %v1479, 0.1
        %v1482 = vmax.f32 %v1478, %v1480
        %v1483 = vmax.f32 %v1479, %v1481
        %v1486 = vrot.slane %v1482, 4
        %v1487 = vrot.slane %v1483, 4
        %v1490 = vpack.c.bf16 %v1482, %v1482
        %v1491 = vpack.c.bf16 %v1486, %v1486
        %v1492 = vpack.c.bf16 %v1483, %v1483
        %v1493 = vpack.c.bf16 %v1487, %v1487
        %v1494 = vld [vmem:[%s9] sm:$0xf]
        %v1495 = vld [vmem:[%s9 + $0x4] sm:$0xf]
        %v1496 = vld [vmem:[%s10] sm:$0x1]
        %v1498 = vperm.slane %v1496, 0
        %1501 = vst [vmem:[#allocation1] ss:$4 sm:$0xff] %v1490
        %s1503 = scalar_lea.vmem [#allocation1], 1
        %1504 = vst [vmem:[%s1503] ss:$4 sm:$0xff] %v1491
        %s1506 = scalar_lea.vmem [#allocation1], 2
        %1507 = vst [vmem:[%s1506] ss:$4 sm:$0xff] %v1492
        %s1509 = scalar_lea.vmem [#allocation1], 3
        %1510 = vst [vmem:[%s1509] ss:$4 sm:$0xff] %v1493
        %v1511 = vld.sshfl [vmem:[#allocation1] sm:$0xff pattern:$0x73625140]
        %v1514 = vunpack.c.l.b16 %v1494
        %v1515 = vunpack.c.l.b16 %v1495
        %v1516 = vpack.c.b16 %v1515, %v1514
        %v1518 = vsel %vm584, %v1511, 0
        %1520 = vmatpush.bf16.msra.mxu0 0
        %1521 = vmatpush.bf16.msra.mxu0 0
        %1522 = vmatpush.bf16.msra.mxu0 0
        %1523 = vmatpush.bf16.msra.mxu0 0
        %1524 = vmatpush.bf16.msra.mxu0 0
        %1525 = vmatpush.bf16.msra.mxu0 0
        %1526 = vmatpush.bf16.msra.mxu0 0
        %1527 = vmatpush.bf16.msra.mxu0 %v1516
        %1528 = vmatmul.bf16.gmra.mxu0 %v1518
        %v1529 = vpop.f32.mrf.mxu0
        %v1530 = vadd.f32 %v1498, %v1529
        %v1531 = vpop.f32.mrf.mxu0
        %v1532 = vadd.f32 %v1498, %v1531
        %1533 = vdwg.mxu0
        %v1534 = vmul.f32 %v1530, 0.1
        %v1535 = vmul.f32 %v1532, 0.1
        %v1536 = vmax.f32 %v1530, %v1534
        %v1537 = vmax.f32 %v1532, %v1535
        %v1540 = vrot.slane %v1536, 4
        %v1541 = vrot.slane %v1537, 4
        %v1544 = vpack.c.bf16 %v1536, %v1536
        %v1545 = vpack.c.bf16 %v1540, %v1540
        %v1546 = vpack.c.bf16 %v1537, %v1537
        %v1547 = vpack.c.bf16 %v1541, %v1541
        %vm1548 = vcmask 58368
        %1549 = vst.msk [vmem:[%s525] sm:$0x3] %vm1548, %v1544
        %1550 = vst.msk [vmem:[%s525 + $0x2] sm:$0x3] %vm1548, %v1545
        %1551 = vst.msk [vmem:[%s525 + $0x4] sm:$0x3] %vm1548, %v1546
        %1552 = vst.msk [vmem:[%s525 + $0x6] sm:$0x3] %vm1548, %v1547
        %v1553 = vld [vmem:[%s11] sm:$0xf]
        %v1554 = vld [vmem:[%s12] sm:$0x1]
        %v1556 = vperm.slane %v1554, 0
        %1559 = vst [vmem:[#allocation1] ss:$4 sm:$0xff] %v1544
        %s1561 = scalar_lea.vmem [#allocation1], 1
        %1562 = vst [vmem:[%s1561] ss:$4 sm:$0xff] %v1545
        %s1564 = scalar_lea.vmem [#allocation1], 2
        %1565 = vst [vmem:[%s1564] ss:$4 sm:$0xff] %v1546
        %s1567 = scalar_lea.vmem [#allocation1], 3
        %1568 = vst [vmem:[%s1567] ss:$4 sm:$0xff] %v1547
        %v1569 = vld.sshfl [vmem:[#allocation1] sm:$0xff pattern:$0x73625140]
        %v1570 = vsel %vm656, %v1569, 0
        %v1573 = vsel %vm659, %v1553, 0
        %1575 = vmatpush.bf16.msra.mxu0 0
        %1576 = vmatpush.bf16.msra.mxu0 0
        %1577 = vmatpush.bf16.msra.mxu0 0
        %1578 = vmatpush.bf16.msra.mxu0 0
        %1579 = vmatpush.bf16.msra.mxu0 0
        %1580 = vmatpush.bf16.msra.mxu0 0
        %1581 = vmatpush.bf16.msra.mxu0 0
        %1582 = vmatpush.bf16.msra.mxu0 %v1573
        %1583 = vmatmul.bf16.gmra.mxu0 %v1570
        %v1584 = vpop.f32.mrf.mxu0
        %v1585 = vadd.f32 %v1556, %v1584
        %v1586 = vpop.f32.mrf.mxu0
        %v1587 = vadd.f32 %v1556, %v1586
        %1588 = vdwg.mxu0
        %v1589 = vmul.f32 %v1585, 0.1
        %v1590 = vmul.f32 %v1587, 0.1
        %v1591 = vmax.f32 %v1585, %v1589
        %v1592 = vmax.f32 %v1587, %v1590
        %v1595 = vrot.slane %v1591, 4
        %v1596 = vrot.slane %v1592, 4
        %v1599 = vpack.c.bf16 %v1591, %v1591
        %v1600 = vpack.c.bf16 %v1595, %v1595
        %v1601 = vpack.c.bf16 %v1592, %v1592
        %v1602 = vpack.c.bf16 %v1596, %v1596
        %v1603 = vld [vmem:[%s13] sm:$0x3]
        %1605 = vst [vmem:[#allocation1] ss:$4 sm:$0xff] %v1599
        %s1607 = scalar_lea.vmem [#allocation1], 1
        %1608 = vst [vmem:[%s1607] ss:$4 sm:$0xff] %v1600
        %s1610 = scalar_lea.vmem [#allocation1], 2
        %1611 = vst [vmem:[%s1610] ss:$4 sm:$0xff] %v1601
        %s1613 = scalar_lea.vmem [#allocation1], 3
        %1614 = vst [vmem:[%s1613] ss:$4 sm:$0xff] %v1602
        %v1615 = vld.sshfl [vmem:[#allocation1] sm:$0xff pattern:$0x73625140]
        %vm1616 = vcmask 31744
        %v1617 = vsel %vm1616, %v1615, 0
        %vm1619 = vcmask 1041408
        %v1621 = vsel %vm1619, %v1603, 0
        %1623 = vmatpush.bf16.msra.mxu0 0
        %1624 = vmatpush.bf16.msra.mxu0 0
        %1625 = vmatpush.bf16.msra.mxu0 0
        %1626 = vmatpush.bf16.msra.mxu0 0
        %1627 = vmatpush.bf16.msra.mxu0 0
        %1628 = vmatpush.bf16.msra.mxu0 0
        %1629 = vmatpush.bf16.msra.mxu0 0
        %1630 = vmatpush.bf16.msra.mxu0 %v1621
        %1631 = vmatmul.bf16.gmra.mxu0 %v1617
        %v1632 = vpop.f32.mrf.mxu0
        %v1633 = vadd.f32 0.0, %v1632
        %v1634 = vpop.f32.mrf.mxu0
        %v1635 = vadd.f32 0.0, %v1634
        %1636 = vdwg.mxu0
        %v1639 = vrot.slane %v1633, 4
        %v1640 = vrot.slane %v1635, 4
        %vm1643 = vcmask 27648
        %1644 = vst.msk [vmem:[%s532] sm:$0xf] %vm1643, %v1633
        %1645 = vst.msk [vmem:[%s532 + $0x4] sm:$0xf] %vm1643, %v1639
        %1646 = vst.msk [vmem:[%s532 + $0x8] sm:$0xf] %vm1643, %v1635
        %1647 = vst.msk [vmem:[%s532 + $0xc] sm:$0xf] %vm1643, %v1640
        %s1648 = sand.u32 %s342, 1
        %s1649 = scalar_lea.sflag [#allocation5], %s1648
        %s1650 = sand.u32 %s342, 1
        %s1651 = smul.addr %s1650, 8
        %s1652 = scalar_lea.vmem [#allocation8], %s1651
        %s1653 = sand.u32 %s368, 1
        %s1654 = scalar_lea.sflag [#allocation10], %s1653
        %s1655 = sand.u32 %s368, 1
        %s1656 = smul.addr %s1655, 16
        %s1657 = scalar_lea.vmem [#allocation9], %s1656
        // Predicated region
        $region85: #{tpu_custom_call.1} parent=75 // pred_check
          %p1658 = pneg %p352
        $region86: #{tpu_custom_call.1} parent=75 // pred_check_branch
          %1660 = sbr.rel (%p1658) target = $region88
        $region87: #{tpu_custom_call.1} parent=75 // pred_region
          %1662 = vsyncadd %s1649, 0
          %s1663 = smul.addr %s35, 4
          %s1664 = smul.addr %s1663, 2
          %s1665 = scalar_lea.hbm %s14, %s1664
          %s1666 = sshll.u32 %s1652, 4
          %s1667 = int_to_ptr.vmem [resolvable:$true] %s1666
          %s1668 = sshll.u32 %s1665, 4
          %s1669 = int_to_ptr.hbm [resolvable:$true] %s1668
          %1674 = dma.vmem_to_hbm [thread:$0]  %s1667, 128, %s1669, %s1649, 32, 32, 2
        $region88: #{tpu_custom_call.1} parent=75 // pred_fallthru
          _
        // Predicated region
        $region89: #{tpu_custom_call.1} parent=75 // pred_check
          %p1675 = pneg %p378
        $region90: #{tpu_custom_call.1} parent=75 // pred_check_branch
          %1677 = sbr.rel (%p1675) target = $region92
        $region91: #{tpu_custom_call.1} parent=75 // pred_region
          %1679 = vsyncadd %s1654, 0
          %s1680 = smul.addr %s35, 4
          %s1681 = smul.addr %s1680, 4
          %s1682 = scalar_lea.hbm %s15, %s1681
          %s1683 = sshll.u32 %s1657, 4
          %s1684 = int_to_ptr.vmem [resolvable:$true] %s1683
          %s1685 = sshll.u32 %s1682, 4
          %s1686 = int_to_ptr.hbm [resolvable:$true] %s1685
          %1691 = dma.vmem_to_hbm [thread:$0]  %s1684, 256, %s1686, %s1654, 64, 64, 4
        $region92: #{tpu_custom_call.1} parent=75 // pred_fallthru
          _
      $region76: #{tpu_custom_call.1} parent=5 // pred_fallthru
        _
      %p1692 = scmp.le.s32.totalorder 2, %s30
      // Predicated region
      $region93: #{tpu_custom_call.1} parent=5 // pred_check
        %p1693 = pneg %p1692
      $region94: #{tpu_custom_call.1} parent=5 // pred_check_branch
        %1695 = sbr.rel (%p1693) target = $region96
      $region95: #{tpu_custom_call.1} parent=5 // pred_region
        %s1696 = ssub.s32 %s30, 2
        // Predicated region
        $region97: #{tpu_custom_call.1} parent=95 // pred_check
          %p1697 = pneg %p358
        $region98: #{tpu_custom_call.1} parent=95 // pred_check_branch
          %1699 = sbr.rel (%p1697) target = $region100
        $region99: #{tpu_custom_call.1} parent=95 // pred_region
          %s1700 = sand.u32 %s343, 1
          %s1701 = scalar_lea.sflag [#allocation5], %s1700
          %s1702 = sand.u32 %s343, 1
          %s1703 = smul.addr %s1702, 8
          %s1704 = scalar_lea.vmem [#allocation8], %s1703
          %1706 = dma.done %s1701, 128
        $region100: #{tpu_custom_call.1} parent=95 // pred_fallthru
          _
        // Predicated region
        $region101: #{tpu_custom_call.1} parent=95 // pred_check
          %p1707 = pneg %p384
        $region102: #{tpu_custom_call.1} parent=95 // pred_check_branch
          %1709 = sbr.rel (%p1707) target = $region104
        $region103: #{tpu_custom_call.1} parent=95 // pred_region
          %s1710 = sand.u32 %s369, 1
          %s1711 = scalar_lea.sflag [#allocation10], %s1710
          %s1712 = sand.u32 %s369, 1
          %s1713 = smul.addr %s1712, 16
          %s1714 = scalar_lea.vmem [#allocation9], %s1713
          %1716 = dma.done %s1711, 256
        $region104: #{tpu_custom_call.1} parent=95 // pred_fallthru
          _
      $region96: #{tpu_custom_call.1} parent=5 // pred_fallthru
        _
    $region6: #{tpu_custom_call.1} parent=1 // loop_footer
      %s34 = sadd.s32 1, %s30
    $region7: #{tpu_custom_call.1} parent=1 // loop_footer_branch
      %29 = sbr.rel target = $region3
    $region8: #{tpu_custom_call.1} parent=1 // loop_exit
      _
    %1717 = vsyncpa [#allocation4], 1
    %s1718 = scalar_lea.sflag [#allocation4], 1
    %1719 = vsyncpa %s1718, 1
    %1720 = vsyncpa [#allocation7], 1
    %1721 = vsyncpa [#allocation5], 1
    %s1722 = scalar_lea.sflag [#allocation5], 1
    %1723 = vsyncpa %s1722, 1
    %1724 = vsyncpa [#allocation10], 1
    %s1725 = scalar_lea.sflag [#allocation10], 1
    %1726 = vsyncpa %s1725, 1

</llo_original>
